<compile_context>
chip_gen: v5e
topology: v5e:2x2
jax: 0.10.0
libtpu: 0.0.40
codegen_flags: <defaults>
</compile_context>

<pallas_src>
import math

import jax
import jax.numpy as jnp
from jax.experimental import pallas as pl
from jax.experimental.pallas import tpu as pltpu

# ---- small shapes consistent with the module (hidden, inner = 4*hidden) ----
SEQ = 256                 # total rows (tokens)
HIDDEN = 128              # config.hidden_size
INNER = 4 * HIDDEN        # config.inner_hidden_size (= 4*hidden)

_GELU_C0 = 0.7978845608028654
_GELU_C0C1 = _GELU_C0 * 0.044715   # precomputed product: saves one vmul/element


def _gelu(x):
    """OpenAI tanh-approximation GELU (matches the PyTorch gelu_impl)."""
    t = x * (_GELU_C0 + _GELU_C0C1 * (x * x))      # = C0*x*(1 + C1*x*x)
    return 0.5 * x * (1.0 + jnp.tanh(t))


def mlp_kernel(x_ref, w1_ref, b1_ref, w2_ref, b2_ref, out_ref):
    # dense_h_to_4h: bf16 operands on the MXU, f32 accumulation + f32 bias add.
    h = jnp.dot(x_ref[...], w1_ref[...],
                preferred_element_type=jnp.float32) + b1_ref[...]   # [TILE, 4H] f32
    # GELU in f32; tanh goes to the EUP slot (free relative to VALU).
    g = _gelu(h)
    # dense_4h_to_h: cast activations to bf16 for the MXU, accumulate f32.
    out_ref[...] = (jnp.dot(g.astype(jnp.bfloat16), w2_ref[...],
                            preferred_element_type=jnp.float32)
                    + b2_ref[...]).astype(out_ref.dtype)            # [TILE, H] bf16


def _rows_per_tile(total_rows):
    """One grid step per TensorCore: 1 step (v5e/v6e, single TC), 2 on v7x."""
    try:
        kind = jax.devices()[0].device_kind.lower()
    except Exception:
        kind = ""
    n_tc = 2 if "v7" in kind else 1
    tile = total_rows // n_tc
    if tile == 0 or total_rows % n_tc != 0 or tile % 8 != 0:
        tile = total_rows
    return tile


def mlp(hidden_states, params):
    """hidden_states: [S, H] bf16.  Weights bf16, biases f32 (see init_params)."""
    S, H = hidden_states.shape
    assert H == HIDDEN
    tile = _rows_per_tile(S)
    grid = (S // tile,)

    w1, b1 = params["w_h_to_4h"], params["b_h_to_4h"]   # [H,4H] bf16, [1,4H] f32
    w2, b2 = params["w_4h_to_h"], params["b_4h_to_h"]   # [4H,H] bf16, [1,H]  f32

    cost = pl.CostEstimate(
        flops=4 * S * HIDDEN * INNER,                # two matmuls (2*M*N*K each)
        transcendentals=S * INNER,                   # one tanh per inner activation
        bytes_accessed=(hidden_states.size * 2 + w1.size * 2 + w2.size * 2
                        + b1.size * 4 + b2.size * 4 + S * HIDDEN * 2),
    )

    def call(single_buffer_weights):
        # Grid-invariant operands: single-buffered (they never change per step).
        pm = {"pipeline_mode": pl.Buffered(1)} if single_buffer_weights else {}
        in_specs = [
            pl.BlockSpec((tile, HIDDEN), lambda i: (i, 0)),         # x row tile
            pl.BlockSpec((HIDDEN, INNER), lambda i: (0, 0), **pm),  # W1 (resident)
            pl.BlockSpec((1, INNER), lambda i: (0, 0), **pm),       # b1
            pl.BlockSpec((INNER, HIDDEN), lambda i: (0, 0), **pm),  # W2 (resident)
            pl.BlockSpec((1, HIDDEN), lambda i: (0, 0), **pm),      # b2
        ]
        return pl.pallas_call(
            mlp_kernel,
            out_shape=jax.ShapeDtypeStruct((S, HIDDEN), jnp.bfloat16),
            grid=grid,
            in_specs=in_specs,
            out_specs=pl.BlockSpec((tile, HIDDEN), lambda i: (i, 0)),
            compiler_params=pltpu.CompilerParams(
                dimension_semantics=("parallel",)),
            cost_estimate=cost,
        )(hidden_states, w1, b1, w2, b2)

    try:
        return call(True)
    except Exception:
        # Fallback if pipeline_mode=pl.Buffered(1) is unsupported by this JAX
        # build; identical semantics, default double-buffered invariants.
        return call(False)


def reference(x_bf16, params):
    """Pure-JAX f32 reference mirroring PyTorch Mlp.forward (same bf16 weights)."""
    x = x_bf16.astype(jnp.float32)
    w1 = params["w_h_to_4h"].astype(jnp.float32)
    w2 = params["w_4h_to_h"].astype(jnp.float32)
    h = x @ w1 + params["b_h_to_4h"][0]
    g = _gelu(h)
    return g @ w2 + params["b_4h_to_h"][0]


def init_params(key):
    k1, k2, k3, k4 = jax.random.split(key, 4)
    lim1 = 1.0 / math.sqrt(HIDDEN)   # nn.Linear default init bound (fan_in = H)
    lim2 = 1.0 / math.sqrt(INNER)    # fan_in = 4H
    # Weights pre-transposed to [in, out] and stored ONCE in bf16 (no per-call
    # cast inside mlp()); biases kept f32, 2-D [1, out] for TPU layout.
    return {
        "w_h_to_4h": jax.random.uniform(
            k1, (HIDDEN, INNER), jnp.float32, -lim1, lim1).astype(jnp.bfloat16),
        "b_h_to_4h": jax.random.uniform(k2, (1, INNER), jnp.float32, -lim1, lim1),
        "w_4h_to_h": jax.random.uniform(
            k3, (INNER, HIDDEN), jnp.float32, -lim2, lim2).astype(jnp.bfloat16),
        "b_4h_to_h": jax.random.uniform(k4, (1, HIDDEN), jnp.float32, -lim2, lim2),
    }


if __name__ == "__main__":
    key = jax.random.PRNGKey(0)
    kx, kp = jax.random.split(key)
    params = init_params(kp)

    # Activations fed as bf16 from upstream (cast once, outside the kernel).
    hidden_states = jax.random.normal(kx, (SEQ, HIDDEN), jnp.float32).astype(jnp.bfloat16)

    out = jax.block_until_ready(mlp(hidden_states, params))
    ref = reference(hidden_states, params)

    assert out.shape == (SEQ, HIDDEN) and out.dtype == jnp.bfloat16
    # bf16 MXU operands + bf16 output vs f32 reference -> modest tolerance.
    assert jnp.allclose(out.astype(jnp.float32), ref, rtol=3e-2, atol=3e-2), \
        "mismatch vs JAX reference"
    print("KERNEL_OK")
</pallas_src>

<mosaic_0001>
module attributes {stable_mosaic.version = 11 : i64} {
  func.func @mlp_kernel(%arg0: i32, %arg1: memref<256x128xbf16, #tpu.memory_space<vmem>>, %arg2: memref<128x512xbf16, #tpu.memory_space<vmem>>, %arg3: memref<1x512xf32, #tpu.memory_space<vmem>>, %arg4: memref<512x128xbf16, #tpu.memory_space<vmem>>, %arg5: memref<1x128xf32, #tpu.memory_space<vmem>>, %arg6: memref<256x128xbf16, #tpu.memory_space<vmem>>) attributes {dimension_semantics = [#tpu.dimension_semantics<parallel>], iteration_bounds = array<i64: 1>, scalar_prefetch = 0 : i64, scratch_operands = 0 : i64, tpu.core_type = #tpu.core_type<tc>, window_params = [{transform_indices = @transform_0, window_bounds = array<i64: 256, 128>}, {pipeline_mode = #tpu.pipeline_mode<synchronous>, transform_indices = @transform_1, window_bounds = array<i64: 128, 512>}, {pipeline_mode = #tpu.pipeline_mode<synchronous>, transform_indices = @transform_2, window_bounds = array<i64: 1, 512>}, {pipeline_mode = #tpu.pipeline_mode<synchronous>, transform_indices = @transform_3, window_bounds = array<i64: 512, 128>}, {pipeline_mode = #tpu.pipeline_mode<synchronous>, transform_indices = @transform_4, window_bounds = array<i64: 1, 128>}, {transform_indices = @transform_5, window_bounds = array<i64: 256, 128>}]} {
    %c0 = arith.constant 0 : index
    %c0_0 = arith.constant 0 : index
    %0 = vector.load %arg1[%c0, %c0_0] : memref<256x128xbf16, #tpu.memory_space<vmem>>, vector<256x128xbf16>
    %c0_1 = arith.constant 0 : index
    %c0_2 = arith.constant 0 : index
    %1 = vector.load %arg2[%c0_1, %c0_2] : memref<128x512xbf16, #tpu.memory_space<vmem>>, vector<128x512xbf16>
    %cst = arith.constant dense<0.000000e+00> : vector<256x512xf32>
    %2 = tpu.matmul %0, %1, %cst {dimension_numbers = #tpu.dot_dimension_numbers<[1], [0], [0], [1], [0, 0, 1, 1], [], []>} : vector<256x128xbf16>, vector<128x512xbf16>, vector<256x512xf32> -> vector<256x512xf32>
    %c0_3 = arith.constant 0 : index
    %c0_4 = arith.constant 0 : index
    %3 = vector.load %arg3[%c0_3, %c0_4] : memref<1x512xf32, #tpu.memory_space<vmem>>, vector<1x512xf32>
    %4 = vector.broadcast %3 : vector<1x512xf32> to vector<256x512xf32>
    %5 = arith.addf %2, %4 : vector<256x512xf32>
    %6 = arith.mulf %5, %5 : vector<256x512xf32>
    %cst_5 = arith.constant 0.0356774069 : f32
    %7 = vector.broadcast %cst_5 : f32 to vector<256x512xf32>
    %8 = arith.mulf %7, %6 : vector<256x512xf32>
    %cst_6 = arith.constant 0.797884583 : f32
    %9 = vector.broadcast %cst_6 : f32 to vector<256x512xf32>
    %10 = arith.addf %9, %8 : vector<256x512xf32>
    %11 = arith.mulf %5, %10 : vector<256x512xf32>
    %cst_7 = arith.constant 5.000000e-01 : f32
    %12 = vector.broadcast %cst_7 : f32 to vector<256x512xf32>
    %13 = arith.mulf %12, %5 : vector<256x512xf32>
    %14 = math.tanh %11 : vector<256x512xf32>
    %cst_8 = arith.constant 1.000000e+00 : f32
    %15 = vector.broadcast %cst_8 : f32 to vector<256x512xf32>
    %16 = arith.addf %15, %14 : vector<256x512xf32>
    %17 = arith.mulf %13, %16 : vector<256x512xf32>
    %18 = arith.truncf %17 : vector<256x512xf32> to vector<256x512xbf16>
    %c0_9 = arith.constant 0 : index
    %c0_10 = arith.constant 0 : index
    %19 = vector.load %arg4[%c0_9, %c0_10] : memref<512x128xbf16, #tpu.memory_space<vmem>>, vector<512x128xbf16>
    %cst_11 = arith.constant dense<0.000000e+00> : vector<256x128xf32>
    %20 = tpu.matmul %18, %19, %cst_11 {dimension_numbers = #tpu.dot_dimension_numbers<[1], [0], [0], [1], [0, 0, 1, 1], [], []>} : vector<256x512xbf16>, vector<512x128xbf16>, vector<256x128xf32> -> vector<256x128xf32>
    %c0_12 = arith.constant 0 : index
    %c0_13 = arith.constant 0 : index
    %21 = vector.load %arg5[%c0_12, %c0_13] : memref<1x128xf32, #tpu.memory_space<vmem>>, vector<1x128xf32>
    %22 = vector.broadcast %21 : vector<1x128xf32> to vector<256x128xf32>
    %23 = arith.addf %20, %22 : vector<256x128xf32>
    %24 = arith.truncf %23 : vector<256x128xf32> to vector<256x128xbf16>
    %c0_14 = arith.constant 0 : index
    %c0_15 = arith.constant 0 : index
    %25 = vector.load %arg6[%c0_14, %c0_15] : memref<256x128xbf16, #tpu.memory_space<vmem>>, vector<256x128xbf16>
    tpu.vector_store %arg6[%c0_14, %c0_15], %24 {strides = array<i32>} : memref<256x128xbf16, #tpu.memory_space<vmem>>, vector<256x128xbf16>,
    return
  }
  func.func @transform_0(%arg0: i32) -> (i32, i32) {
    %c0_i32 = arith.constant 0 : i32
    %c0_i32_0 = arith.constant 0 : i32
    return %arg0, %c0_i32 : i32, i32
  }
  func.func @transform_1(%arg0: i32) -> (i32, i32) {
    %c0_i32 = arith.constant 0 : i32
    %c0_i32_0 = arith.constant 0 : i32
    %c0_i32_1 = arith.constant 0 : i32
    return %c0_i32, %c0_i32_0 : i32, i32
  }
  func.func @transform_2(%arg0: i32) -> (i32, i32) {
    %c0_i32 = arith.constant 0 : i32
    %c0_i32_0 = arith.constant 0 : i32
    %c0_i32_1 = arith.constant 0 : i32
    return %c0_i32, %c0_i32_0 : i32, i32
  }
  func.func @transform_3(%arg0: i32) -> (i32, i32) {
    %c0_i32 = arith.constant 0 : i32
    %c0_i32_0 = arith.constant 0 : i32
    %c0_i32_1 = arith.constant 0 : i32
    return %c0_i32, %c0_i32_0 : i32, i32
  }
  func.func @transform_4(%arg0: i32) -> (i32, i32) {
    %c0_i32 = arith.constant 0 : i32
    %c0_i32_0 = arith.constant 0 : i32
    %c0_i32_1 = arith.constant 0 : i32
    return %c0_i32, %c0_i32_0 : i32, i32
  }
  func.func @transform_5(%arg0: i32) -> (i32, i32) {
    %c0_i32 = arith.constant 0 : i32
    %c0_i32_0 = arith.constant 0 : i32
    return %arg0, %c0_i32 : i32, i32
  }
}

module attributes {stable_mosaic.version = 11 : i64} {
  func.func @mlp_kernel(%arg0: i32, %arg1: memref<256x128xbf16, #tpu.memory_space<vmem>>, %arg2: memref<128x512xbf16, #tpu.memory_space<vmem>>, %arg3: memref<1x512xf32, #tpu.memory_space<vmem>>, %arg4: memref<512x128xbf16, #tpu.memory_space<vmem>>, %arg5: memref<1x128xf32, #tpu.memory_space<vmem>>, %arg6: memref<256x128xbf16, #tpu.memory_space<vmem>>) attributes {dimension_semantics = [#tpu.dimension_semantics<parallel>], iteration_bounds = array<i64: 1>, scalar_prefetch = 0 : i64, scratch_operands = 0 : i64, tpu.core_type = #tpu.core_type<tc>, window_params = [{transform_indices = @transform_0, window_bounds = array<i64: 256, 128>}, {pipeline_mode = #tpu.pipeline_mode<synchronous>, transform_indices = @transform_1, window_bounds = array<i64: 128, 512>}, {pipeline_mode = #tpu.pipeline_mode<synchronous>, transform_indices = @transform_2, window_bounds = array<i64: 1, 512>}, {pipeline_mode = #tpu.pipeline_mode<synchronous>, transform_indices = @transform_3, window_bounds = array<i64: 512, 128>}, {pipeline_mode = #tpu.pipeline_mode<synchronous>, transform_indices = @transform_4, window_bounds = array<i64: 1, 128>}, {transform_indices = @transform_5, window_bounds = array<i64: 256, 128>}]} {
    %c0 = arith.constant 0 : index
    %c0_0 = arith.constant 0 : index
    %0 = vector.load %arg1[%c0, %c0_0] : memref<256x128xbf16, #tpu.memory_space<vmem>>, vector<256x128xbf16>
    %c0_1 = arith.constant 0 : index
    %c0_2 = arith.constant 0 : index
    %1 = vector.load %arg2[%c0_1, %c0_2] : memref<128x512xbf16, #tpu.memory_space<vmem>>, vector<128x512xbf16>
    %cst = arith.constant dense<0.000000e+00> : vector<256x512xf32>
    %2 = tpu.matmul %0, %1, %cst {dimension_numbers = #tpu.dot_dimension_numbers<[1], [0], [0], [1], [0, 0, 1, 1], [], []>} : vector<256x128xbf16>, vector<128x512xbf16>, vector<256x512xf32> -> vector<256x512xf32>
    %c0_3 = arith.constant 0 : index
    %c0_4 = arith.constant 0 : index
    %3 = vector.load %arg3[%c0_3, %c0_4] : memref<1x512xf32, #tpu.memory_space<vmem>>, vector<1x512xf32>
    %4 = vector.broadcast %3 : vector<1x512xf32> to vector<256x512xf32>
    %5 = arith.addf %2, %4 : vector<256x512xf32>
    %6 = arith.mulf %5, %5 : vector<256x512xf32>
    %cst_5 = arith.constant 0.0356774069 : f32
    %7 = vector.broadcast %cst_5 : f32 to vector<256x512xf32>
    %8 = arith.mulf %7, %6 : vector<256x512xf32>
    %cst_6 = arith.constant 0.797884583 : f32
    %9 = vector.broadcast %cst_6 : f32 to vector<256x512xf32>
    %10 = arith.addf %9, %8 : vector<256x512xf32>
    %11 = arith.mulf %5, %10 : vector<256x512xf32>
    %cst_7 = arith.constant 5.000000e-01 : f32
    %12 = vector.broadcast %cst_7 : f32 to vector<256x512xf32>
    %13 = arith.mulf %12, %5 : vector<256x512xf32>
    %14 = math.tanh %11 : vector<256x512xf32>
    %cst_8 = arith.constant 1.000000e+00 : f32
    %15 = vector.broadcast %cst_8 : f32 to vector<256x512xf32>
    %16 = arith.addf %15, %14 : vector<256x512xf32>
    %17 = arith.mulf %13, %16 : vector<256x512xf32>
    %18 = arith.truncf %17 : vector<256x512xf32> to vector<256x512xbf16>
    %c0_9 = arith.constant 0 : index
    %c0_10 = arith.constant 0 : index
    %19 = vector.load %arg4[%c0_9, %c0_10] : memref<512x128xbf16, #tpu.memory_space<vmem>>, vector<512x128xbf16>
    %cst_11 = arith.constant dense<0.000000e+00> : vector<256x128xf32>
    %20 = tpu.matmul %18, %19, %cst_11 {dimension_numbers = #tpu.dot_dimension_numbers<[1], [0], [0], [1], [0, 0, 1, 1], [], []>} : vector<256x512xbf16>, vector<512x128xbf16>, vector<256x128xf32> -> vector<256x128xf32>
    %c0_12 = arith.constant 0 : index
    %c0_13 = arith.constant 0 : index
    %21 = vector.load %arg5[%c0_12, %c0_13] : memref<1x128xf32, #tpu.memory_space<vmem>>, vector<1x128xf32>
    %22 = vector.broadcast %21 : vector<1x128xf32> to vector<256x128xf32>
    %23 = arith.addf %20, %22 : vector<256x128xf32>
    %24 = arith.truncf %23 : vector<256x128xf32> to vector<256x128xbf16>
    %c0_14 = arith.constant 0 : index
    %c0_15 = arith.constant 0 : index
    %25 = vector.load %arg6[%c0_14, %c0_15] : memref<256x128xbf16, #tpu.memory_space<vmem>>, vector<256x128xbf16>
    tpu.vector_store %arg6[%c0_14, %c0_15], %24 {strides = array<i32>} : memref<256x128xbf16, #tpu.memory_space<vmem>>, vector<256x128xbf16>,
    return
  }
  func.func @transform_0(%arg0: i32) -> (i32, i32) {
    %c0_i32 = arith.constant 0 : i32
    %c0_i32_0 = arith.constant 0 : i32
    return %arg0, %c0_i32 : i32, i32
  }
  func.func @transform_1(%arg0: i32) -> (i32, i32) {
    %c0_i32 = arith.constant 0 : i32
    %c0_i32_0 = arith.constant 0 : i32
    %c0_i32_1 = arith.constant 0 : i32
    return %c0_i32, %c0_i32_0 : i32, i32
  }
  func.func @transform_2(%arg0: i32) -> (i32, i32) {
    %c0_i32 = arith.constant 0 : i32
    %c0_i32_0 = arith.constant 0 : i32
    %c0_i32_1 = arith.constant 0 : i32
    return %c0_i32, %c0_i32_0 : i32, i32
  }
  func.func @transform_3(%arg0: i32) -> (i32, i32) {
    %c0_i32 = arith.constant 0 : i32
    %c0_i32_0 = arith.constant 0 : i32
    %c0_i32_1 = arith.constant 0 : i32
    return %c0_i32, %c0_i32_0 : i32, i32
  }
  func.func @transform_4(%arg0: i32) -> (i32, i32) {
    %c0_i32 = arith.constant 0 : i32
    %c0_i32_0 = arith.constant 0 : i32
    %c0_i32_1 = arith.constant 0 : i32
    return %c0_i32, %c0_i32_0 : i32, i32
  }
  func.func @transform_5(%arg0: i32) -> (i32, i32) {
    %c0_i32 = arith.constant 0 : i32
    %c0_i32_0 = arith.constant 0 : i32
    return %arg0, %c0_i32 : i32, i32
  }
}

</mosaic_0001>

<llo_original>
// kernel: tpu_custom_call.1
$region0: #{tpu_custom_call.1}
  #allocation0 [shape = 'u32[]', space=smem, size = 0x4, offset = 0x4, fixed_abs, tag = 'smem constant byte address 0x4 - core index']
  #allocation1 [shape = 'u32[72,128]{1,0:T(1,128)}', space=vmem, size = 0x9000, scoped, tag = 'internal scratch']
  %s0 = inlined_call_operand.hbm [shape: bf16[256,128], index: 0, kind: input, shape index: {}]
  %s1 = inlined_call_operand.hbm [shape: bf16[128,512], index: 1, kind: input, shape index: {}]
  %s2 = inlined_call_operand.hbm [shape: f32[1,512], index: 2, kind: input, shape index: {}]
  %s3 = inlined_call_operand.hbm [shape: bf16[512,128], index: 3, kind: input, shape index: {}]
  %s4 = inlined_call_operand.vmem [shape: f32[1,128], index: 4, kind: input, shape index: {}]
  %s5 = inlined_call_operand.hbm [shape: bf16[256,128], index: 5, kind: output, shape index: {}]
  %s6 = sld [smem:[#allocation0]]
  $region46: #{tpu_custom_call.1} parent=0
    _
  %s8 = ssub.s32 1, %s6
  %s9 = scalar_select 0, %s8, %s6
  $region1: #{tpu_custom_call.1} parent=0
    #allocation2 [shape = 'u8[65536]{0}', space=vmem, size = 0x10000, scoped, tag = 'input window, operand 0, single buffered']
    #allocation3 [shape = 's32[1]{0}', space=sflag, size = 0x4, scoped, tag = 'scoped memory for tpu_custom_call.1']
    #allocation4 [shape = 's32[1]{0}', space=sflag, size = 0x4, scoped, tag = 'scoped memory for tpu_custom_call.1']
    #allocation5 [shape = 'u8[131072]{0}', space=vmem, size = 0x20000, scoped, tag = 'input window, operand 1, single buffered']
    #allocation6 [shape = 's32[1]{0}', space=sflag, size = 0x4, scoped, tag = 'scoped memory for tpu_custom_call.1']
    #allocation7 [shape = 'u8[2048]{0}', space=vmem, size = 0x800, scoped, tag = 'input window, operand 2, single buffered']
    #allocation8 [shape = 'u8[131072]{0}', space=vmem, size = 0x20000, scoped, tag = 'input window, operand 3, single buffered']
    #allocation9 [shape = 's32[1]{0}', space=sflag, size = 0x4, scoped, tag = 'scoped memory for tpu_custom_call.1']
    #allocation10 [shape = 'u8[65536]{0}', space=vmem, size = 0x10000, scoped, tag = 'output window, operand 0, single buffered']
    %10 = vsyncpa [#allocation3], 0
    %11 = vsyncpa [#allocation6], 0
    %12 = vsyncpa [#allocation9], 0
    %13 = vsyncpa [#allocation4], 0
    // Predicated region
    $region2: #{tpu_custom_call.1} parent=1 // pred_check
      _
    $region3: #{tpu_custom_call.1} parent=1 // pred_check_branch
      %15 = sbr.rel (0) target = $region5
    $region4: #{tpu_custom_call.1} parent=1 // pred_region
      %17 = vsyncadd [#allocation3], 0
      %s18 = sshll.u32 %s0, 4
      %s19 = int_to_ptr.hbm [resolvable:$true] %s18
      %s20 = sshll.u32 [#allocation2], 4
      %s21 = int_to_ptr.vmem [resolvable:$true] %s20
      %26 = dma.hbm_to_vmem [thread:$0]  %s19, 2048, %s21, [#allocation3], 64, 64, 4
    $region5: #{tpu_custom_call.1} parent=1 // pred_fallthru
      _
    // Predicated region
    $region6: #{tpu_custom_call.1} parent=1 // pred_check
      _
    $region7: #{tpu_custom_call.1} parent=1 // pred_check_branch
      %28 = sbr.rel (0) target = $region9
    $region8: #{tpu_custom_call.1} parent=1 // pred_region
      %30 = vsyncadd [#allocation6], 0
      %s31 = sshll.u32 %s1, 4
      %s32 = int_to_ptr.hbm [resolvable:$true] %s31
      %s33 = sshll.u32 [#allocation5], 4
      %s34 = int_to_ptr.vmem [resolvable:$true] %s33
      %39 = dma.hbm_to_vmem [thread:$0]  %s32, 4096, %s34, [#allocation6], 256, 256, 16
    $region9: #{tpu_custom_call.1} parent=1 // pred_fallthru
      _
    // Predicated region
    $region10: #{tpu_custom_call.1} parent=1 // pred_check
      _
    $region11: #{tpu_custom_call.1} parent=1 // pred_check_branch
      %41 = sbr.rel (0) target = $region13
    $region12: #{tpu_custom_call.1} parent=1 // pred_region
      %43 = vsyncadd [#allocation6], 0
      %s45 = sshll.u32 %s2, 4
      %s46 = int_to_ptr.hbm [resolvable:$true] %s45
      %s47 = sshll.u32 [#allocation7], 4
      %s48 = int_to_ptr.vmem [resolvable:$true] %s47
      %50 = dma.hbm_to_vmem [thread:$0]  %s46, 64, %s48, [#allocation6]
    $region13: #{tpu_custom_call.1} parent=1 // pred_fallthru
      _
    // Predicated region
    $region14: #{tpu_custom_call.1} parent=1 // pred_check
      _
    $region15: #{tpu_custom_call.1} parent=1 // pred_check_branch
      %52 = sbr.rel (0) target = $region17
    $region16: #{tpu_custom_call.1} parent=1 // pred_region
      %54 = vsyncadd [#allocation9], 0
      %s55 = sshll.u32 %s3, 4
      %s56 = int_to_ptr.hbm [resolvable:$true] %s55
      %s57 = sshll.u32 [#allocation8], 4
      %s58 = int_to_ptr.vmem [resolvable:$true] %s57
      %63 = dma.hbm_to_vmem [thread:$0]  %s56, 4096, %s58, [#allocation9], 64, 64, 4
    $region17: #{tpu_custom_call.1} parent=1 // pred_fallthru
      _
    // Predicated region
    $region18: #{tpu_custom_call.1} parent=1 // pred_check
      _
    $region19: #{tpu_custom_call.1} parent=1 // pred_check_branch
      %65 = sbr.rel (0) target = $region21
    $region20: #{tpu_custom_call.1} parent=1 // pred_region
      _
    $region21: #{tpu_custom_call.1} parent=1 // pred_fallthru
      _
    // Predicated region
    $region22: #{tpu_custom_call.1} parent=1 // pred_check
      _
    $region23: #{tpu_custom_call.1} parent=1 // pred_check_branch
      %67 = sbr.rel (0) target = $region25
    $region24: #{tpu_custom_call.1} parent=1 // pred_region
      %69 = dma.done [#allocation3], 2048
    $region25: #{tpu_custom_call.1} parent=1 // pred_fallthru
      _
    // Predicated region
    $region26: #{tpu_custom_call.1} parent=1 // pred_check
      _
    $region27: #{tpu_custom_call.1} parent=1 // pred_check_branch
      %71 = sbr.rel (0) target = $region29
    $region28: #{tpu_custom_call.1} parent=1 // pred_region
      %73 = dma.done [#allocation6], 4096
    $region29: #{tpu_custom_call.1} parent=1 // pred_fallthru
      _
    // Predicated region
    $region30: #{tpu_custom_call.1} parent=1 // pred_check
      _
    $region31: #{tpu_custom_call.1} parent=1 // pred_check_branch
      %75 = sbr.rel (0) target = $region33
    $region32: #{tpu_custom_call.1} parent=1 // pred_region
      %77 = dma.done [#allocation6], 64
    $region33: #{tpu_custom_call.1} parent=1 // pred_fallthru
      _
    // Predicated region
    $region34: #{tpu_custom_call.1} parent=1 // pred_check
      _
    $region35: #{tpu_custom_call.1} parent=1 // pred_check_branch
      %79 = sbr.rel (0) target = $region37
    $region36: #{tpu_custom_call.1} parent=1 // pred_region
      %81 = dma.done [#allocation9], 4096
    $region37: #{tpu_custom_call.1} parent=1 // pred_fallthru
      _
    %v82 = vld [vmem:[#allocation2] sm:$0xf]
    %v83 = vld [vmem:[#allocation2 + $0x4] sm:$0xf]
    %v84 = vld [vmem:[#allocation2 + $0x8] sm:$0xf]
    %v85 = vld [vmem:[#allocation2 + $0xc] sm:$0xf]
    %v86 = vld [vmem:[#allocation2 + $0x10] sm:$0xf]
    %v87 = vld [vmem:[#allocation2 + $0x14] sm:$0xf]
    %v88 = vld [vmem:[#allocation2 + $0x18] sm:$0xf]
    %v89 = vld [vmem:[#allocation2 + $0x1c] sm:$0xf]
    %v90 = vld [vmem:[#allocation2 + $0x20] sm:$0xf]
    %v91 = vld [vmem:[#allocation2 + $0x24] sm:$0xf]
    %v92 = vld [vmem:[#allocation2 + $0x28] sm:$0xf]
    %v93 = vld [vmem:[#allocation2 + $0x2c] sm:$0xf]
    %v94 = vld [vmem:[#allocation2 + $0x30] sm:$0xf]
    %v95 = vld [vmem:[#allocation2 + $0x34] sm:$0xf]
    %v96 = vld [vmem:[#allocation2 + $0x38] sm:$0xf]
    %v97 = vld [vmem:[#allocation2 + $0x3c] sm:$0xf]
    %v98 = vld [vmem:[#allocation2 + $0x40] sm:$0xf]
    %v99 = vld [vmem:[#allocation2 + $0x44] sm:$0xf]
    %v100 = vld [vmem:[#allocation2 + $0x48] sm:$0xf]
    %v101 = vld [vmem:[#allocation2 + $0x4c] sm:$0xf]
    %v102 = vld [vmem:[#allocation2 + $0x50] sm:$0xf]
    %v103 = vld [vmem:[#allocation2 + $0x54] sm:$0xf]
    %v104 = vld [vmem:[#allocation2 + $0x58] sm:$0xf]
    %v105 = vld [vmem:[#allocation2 + $0x5c] sm:$0xf]
    %v106 = vld [vmem:[#allocation2 + $0x60] sm:$0xf]
    %v107 = vld [vmem:[#allocation2 + $0x64] sm:$0xf]
    %v108 = vld [vmem:[#allocation2 + $0x68] sm:$0xf]
    %v109 = vld [vmem:[#allocation2 + $0x6c] sm:$0xf]
    %v110 = vld [vmem:[#allocation2 + $0x70] sm:$0xf]
    %v111 = vld [vmem:[#allocation2 + $0x74] sm:$0xf]
    %v112 = vld [vmem:[#allocation2 + $0x78] sm:$0xf]
    %v113 = vld [vmem:[#allocation2 + $0x7c] sm:$0xf]
    %v114 = vld [vmem:[#allocation5] sm:$0xff]
    %v115 = vld [vmem:[#allocation5 + $0x8] sm:$0xff]
    %v116 = vld [vmem:[#allocation5 + $0x10] sm:$0xff]
    %v117 = vld [vmem:[#allocation5 + $0x18] sm:$0xff]
    %v118 = vld [vmem:[#allocation5 + $0x20] sm:$0xff]
    %v119 = vld [vmem:[#allocation5 + $0x28] sm:$0xff]
    %v120 = vld [vmem:[#allocation5 + $0x30] sm:$0xff]
    %v121 = vld [vmem:[#allocation5 + $0x38] sm:$0xff]
    %v122 = vld [vmem:[#allocation5 + $0x40] sm:$0xff]
    %v123 = vld [vmem:[#allocation5 + $0x48] sm:$0xff]
    %v124 = vld [vmem:[#allocation5 + $0x50] sm:$0xff]
    %v125 = vld [vmem:[#allocation5 + $0x58] sm:$0xff]
    %v126 = vld [vmem:[#allocation5 + $0x60] sm:$0xff]
    %v127 = vld [vmem:[#allocation5 + $0x68] sm:$0xff]
    %v128 = vld [vmem:[#allocation5 + $0x70] sm:$0xff]
    %v129 = vld [vmem:[#allocation5 + $0x78] sm:$0xff]
    %v130 = vld [vmem:[#allocation5 + $0x80] sm:$0xff]
    %v131 = vld [vmem:[#allocation5 + $0x88] sm:$0xff]
    %v132 = vld [vmem:[#allocation5 + $0x90] sm:$0xff]
    %v133 = vld [vmem:[#allocation5 + $0x98] sm:$0xff]
    %v134 = vld [vmem:[#allocation5 + $0xa0] sm:$0xff]
    %v135 = vld [vmem:[#allocation5 + $0xa8] sm:$0xff]
    %v136 = vld [vmem:[#allocation5 + $0xb0] sm:$0xff]
    %v137 = vld [vmem:[#allocation5 + $0xb8] sm:$0xff]
    %v138 = vld [vmem:[#allocation5 + $0xc0] sm:$0xff]
    %v139 = vld [vmem:[#allocation5 + $0xc8] sm:$0xff]
    %v140 = vld [vmem:[#allocation5 + $0xd0] sm:$0xff]
    %v141 = vld [vmem:[#allocation5 + $0xd8] sm:$0xff]
    %v142 = vld [vmem:[#allocation5 + $0xe0] sm:$0xff]
    %v143 = vld [vmem:[#allocation5 + $0xe8] sm:$0xff]
    %v144 = vld [vmem:[#allocation5 + $0xf0] sm:$0xff]
    %v145 = vld [vmem:[#allocation5 + $0xf8] sm:$0xff]
    %v146 = vld [vmem:[#allocation7] sm:$0xf]
    %v148 = vperm.slane %v146, 0
    %v149 = vperm.slane %v146, 1
    %v150 = vperm.slane %v146, 2
    %v151 = vperm.slane %v146, 3
    %v188 = vunpack.c.l.b16 %v82
    %v189 = vunpack.c.l.b16 %v83
    %v190 = vunpack.c.l.b16 %v84
    %v191 = vunpack.c.l.b16 %v85
    %v192 = vunpack.c.l.b16 %v86
    %v193 = vunpack.c.l.b16 %v87
    %v194 = vunpack.c.l.b16 %v88
    %v195 = vunpack.c.l.b16 %v89
    %v196 = vunpack.c.l.b16 %v90
    %v197 = vunpack.c.l.b16 %v91
    %v198 = vunpack.c.l.b16 %v92
    %v199 = vunpack.c.l.b16 %v93
    %v200 = vunpack.c.l.b16 %v94
    %v201 = vunpack.c.l.b16 %v95
    %v202 = vunpack.c.l.b16 %v96
    %v203 = vunpack.c.l.b16 %v97
    %v204 = vunpack.c.l.b16 %v98
    %v205 = vunpack.c.l.b16 %v99
    %v206 = vunpack.c.l.b16 %v100
    %v207 = vunpack.c.l.b16 %v101
    %v208 = vunpack.c.l.b16 %v102
    %v209 = vunpack.c.l.b16 %v103
    %v210 = vunpack.c.l.b16 %v104
    %v211 = vunpack.c.l.b16 %v105
    %v212 = vunpack.c.l.b16 %v106
    %v213 = vunpack.c.l.b16 %v107
    %v214 = vunpack.c.l.b16 %v108
    %v215 = vunpack.c.l.b16 %v109
    %v216 = vunpack.c.l.b16 %v110
    %v217 = vunpack.c.l.b16 %v111
    %v218 = vunpack.c.l.b16 %v112
    %v219 = vunpack.c.l.b16 %v113
    %v220 = vpack.c.b16 %v189, %v188
    %v221 = vpack.c.b16 %v191, %v190
    %v222 = vpack.c.b16 %v193, %v192
    %v223 = vpack.c.b16 %v195, %v194
    %v224 = vpack.c.b16 %v197, %v196
    %v225 = vpack.c.b16 %v199, %v198
    %v226 = vpack.c.b16 %v201, %v200
    %v227 = vpack.c.b16 %v203, %v202
    %v228 = vpack.c.b16 %v205, %v204
    %v229 = vpack.c.b16 %v207, %v206
    %v230 = vpack.c.b16 %v209, %v208
    %v231 = vpack.c.b16 %v211, %v210
    %v232 = vpack.c.b16 %v213, %v212
    %v233 = vpack.c.b16 %v215, %v214
    %v234 = vpack.c.b16 %v217, %v216
    %v235 = vpack.c.b16 %v219, %v218
    %v284 = vunpack.c.l.b16 %v114
    %v285 = vunpack.c.h.b16 %v114
    %v286 = vunpack.c.l.b16 %v115
    %v287 = vunpack.c.h.b16 %v115
    %v288 = vunpack.c.l.b16 %v116
    %v289 = vunpack.c.h.b16 %v116
    %v290 = vunpack.c.l.b16 %v117
    %v291 = vunpack.c.h.b16 %v117
    %v292 = vunpack.c.l.b16 %v118
    %v293 = vunpack.c.h.b16 %v118
    %v294 = vunpack.c.l.b16 %v119
    %v295 = vunpack.c.h.b16 %v119
    %v296 = vunpack.c.l.b16 %v120
    %v297 = vunpack.c.h.b16 %v120
    %v298 = vunpack.c.l.b16 %v121
    %v299 = vunpack.c.h.b16 %v121
    %v300 = vunpack.c.l.b16 %v122
    %v301 = vunpack.c.h.b16 %v122
    %v302 = vunpack.c.l.b16 %v123
    %v303 = vunpack.c.h.b16 %v123
    %v304 = vunpack.c.l.b16 %v124
    %v305 = vunpack.c.h.b16 %v124
    %v306 = vunpack.c.l.b16 %v125
    %v307 = vunpack.c.h.b16 %v125
    %v308 = vunpack.c.l.b16 %v126
    %v309 = vunpack.c.h.b16 %v126
    %v310 = vunpack.c.l.b16 %v127
    %v311 = vunpack.c.h.b16 %v127
    %v312 = vunpack.c.l.b16 %v128
    %v313 = vunpack.c.h.b16 %v128
    %v314 = vunpack.c.l.b16 %v129
    %v315 = vunpack.c.h.b16 %v129
    %v316 = vunpack.c.l.b16 %v130
    %v317 = vunpack.c.h.b16 %v130
    %v318 = vunpack.c.l.b16 %v131
    %v319 = vunpack.c.h.b16 %v131
    %v320 = vunpack.c.l.b16 %v132
    %v321 = vunpack.c.h.b16 %v132
    %v322 = vunpack.c.l.b16 %v133
    %v323 = vunpack.c.h.b16 %v133
    %v324 = vunpack.c.l.b16 %v134
    %v325 = vunpack.c.h.b16 %v134
    %v326 = vunpack.c.l.b16 %v135
    %v327 = vunpack.c.h.b16 %v135
    %v328 = vunpack.c.l.b16 %v136
    %v329 = vunpack.c.h.b16 %v136
    %v330 = vunpack.c.l.b16 %v137
    %v331 = vunpack.c.h.b16 %v137
    %v332 = vunpack.c.l.b16 %v138
    %v333 = vunpack.c.h.b16 %v138
    %v334 = vunpack.c.l.b16 %v139
    %v335 = vunpack.c.h.b16 %v139
    %v336 = vunpack.c.l.b16 %v140
    %v337 = vunpack.c.h.b16 %v140
    %v338 = vunpack.c.l.b16 %v141
    %v339 = vunpack.c.h.b16 %v141
    %v340 = vunpack.c.l.b16 %v142
    %v341 = vunpack.c.h.b16 %v142
    %v342 = vunpack.c.l.b16 %v143
    %v343 = vunpack.c.h.b16 %v143
    %v344 = vunpack.c.l.b16 %v144
    %v345 = vunpack.c.h.b16 %v144
    %v346 = vunpack.c.l.b16 %v145
    %v347 = vunpack.c.h.b16 %v145
    %v348 = vpack.c.b16 %v288, %v284
    %v349 = vpack.c.b16 %v289, %v285
    %v350 = vpack.c.b16 %v290, %v286
    %v351 = vpack.c.b16 %v291, %v287
    %v352 = vpack.c.b16 %v296, %v292
    %v353 = vpack.c.b16 %v297, %v293
    %v354 = vpack.c.b16 %v298, %v294
    %v355 = vpack.c.b16 %v299, %v295
    %v356 = vpack.c.b16 %v304, %v300
    %v357 = vpack.c.b16 %v305, %v301
    %v358 = vpack.c.b16 %v306, %v302
    %v359 = vpack.c.b16 %v307, %v303
    %v360 = vpack.c.b16 %v312, %v308
    %v361 = vpack.c.b16 %v313, %v309
    %v362 = vpack.c.b16 %v314, %v310
    %v363 = vpack.c.b16 %v315, %v311
    %v364 = vpack.c.b16 %v320, %v316
    %v365 = vpack.c.b16 %v321, %v317
    %v366 = vpack.c.b16 %v322, %v318
    %v367 = vpack.c.b16 %v323, %v319
    %v368 = vpack.c.b16 %v328, %v324
    %v369 = vpack.c.b16 %v329, %v325
    %v370 = vpack.c.b16 %v330, %v326
    %v371 = vpack.c.b16 %v331, %v327
    %v372 = vpack.c.b16 %v336, %v332
    %v373 = vpack.c.b16 %v337, %v333
    %v374 = vpack.c.b16 %v338, %v334
    %v375 = vpack.c.b16 %v339, %v335
    %v376 = vpack.c.b16 %v344, %v340
    %v377 = vpack.c.b16 %v345, %v341
    %v378 = vpack.c.b16 %v346, %v342
    %v379 = vpack.c.b16 %v347, %v343
    %412 = vmatpush.bf16.msra.mxu0 %v376
    %413 = vmatpush.bf16.msra.mxu0 %v372
    %414 = vmatpush.bf16.msra.mxu0 %v368
    %415 = vmatpush.bf16.msra.mxu0 %v364
    %416 = vmatpush.bf16.msra.mxu0 %v360
    %417 = vmatpush.bf16.msra.mxu0 %v356
    %418 = vmatpush.bf16.msra.mxu0 %v352
    %419 = vmatpush.bf16.msra.mxu0 %v348
    %420 = vmatmul.bf16.gmra.mxu0 %v220
    %v421 = vpop.f32.mrf.mxu0
    %v422 = vadd.f32 %v148, %v421
    %v423 = vpop.f32.mrf.mxu0
    %v424 = vadd.f32 %v148, %v423
    %425 = vmatmul.bf16.gmra.mxu0 %v221
    %v426 = vpop.f32.mrf.mxu0
    %v427 = vadd.f32 %v148, %v426
    %v428 = vpop.f32.mrf.mxu0
    %v429 = vadd.f32 %v148, %v428
    %430 = vmatmul.bf16.gmra.mxu0 %v222
    %v431 = vpop.f32.mrf.mxu0
    %v432 = vadd.f32 %v148, %v431
    %v433 = vpop.f32.mrf.mxu0
    %v434 = vadd.f32 %v148, %v433
    %435 = vmatmul.bf16.gmra.mxu0 %v223
    %v436 = vpop.f32.mrf.mxu0
    %v437 = vadd.f32 %v148, %v436
    %v438 = vpop.f32.mrf.mxu0
    %v439 = vadd.f32 %v148, %v438
    %440 = vmatmul.bf16.gmra.mxu0 %v224
    %v441 = vpop.f32.mrf.mxu0
    %v442 = vadd.f32 %v148, %v441
    %v443 = vpop.f32.mrf.mxu0
    %v444 = vadd.f32 %v148, %v443
    %445 = vmatmul.bf16.gmra.mxu0 %v225
    %v446 = vpop.f32.mrf.mxu0
    %v447 = vadd.f32 %v148, %v446
    %v448 = vpop.f32.mrf.mxu0
    %v449 = vadd.f32 %v148, %v448
    %450 = vmatmul.bf16.gmra.mxu0 %v226
    %v451 = vpop.f32.mrf.mxu0
    %v452 = vadd.f32 %v148, %v451
    %v453 = vpop.f32.mrf.mxu0
    %v454 = vadd.f32 %v148, %v453
    %455 = vmatmul.bf16.gmra.mxu0 %v227
    %v456 = vpop.f32.mrf.mxu0
    %v457 = vadd.f32 %v148, %v456
    %v458 = vpop.f32.mrf.mxu0
    %v459 = vadd.f32 %v148, %v458
    %460 = vmatmul.bf16.gmra.mxu0 %v228
    %v461 = vpop.f32.mrf.mxu0
    %v462 = vadd.f32 %v148, %v461
    %v463 = vpop.f32.mrf.mxu0
    %v464 = vadd.f32 %v148, %v463
    %465 = vmatmul.bf16.gmra.mxu0 %v229
    %v466 = vpop.f32.mrf.mxu0
    %v467 = vadd.f32 %v148, %v466
    %v468 = vpop.f32.mrf.mxu0
    %v469 = vadd.f32 %v148, %v468
    %470 = vmatmul.bf16.gmra.mxu0 %v230
    %v471 = vpop.f32.mrf.mxu0
    %v472 = vadd.f32 %v148, %v471
    %v473 = vpop.f32.mrf.mxu0
    %v474 = vadd.f32 %v148, %v473
    %475 = vmatmul.bf16.gmra.mxu0 %v231
    %v476 = vpop.f32.mrf.mxu0
    %v477 = vadd.f32 %v148, %v476
    %v478 = vpop.f32.mrf.mxu0
    %v479 = vadd.f32 %v148, %v478
    %480 = vmatmul.bf16.gmra.mxu0 %v232
    %v481 = vpop.f32.mrf.mxu0
    %v482 = vadd.f32 %v148, %v481
    %v483 = vpop.f32.mrf.mxu0
    %v484 = vadd.f32 %v148, %v483
    %485 = vmatmul.bf16.gmra.mxu0 %v233
    %v486 = vpop.f32.mrf.mxu0
    %v487 = vadd.f32 %v148, %v486
    %v488 = vpop.f32.mrf.mxu0
    %v489 = vadd.f32 %v148, %v488
    %490 = vmatmul.bf16.gmra.mxu0 %v234
    %v491 = vpop.f32.mrf.mxu0
    %v492 = vadd.f32 %v148, %v491
    %v493 = vpop.f32.mrf.mxu0
    %v494 = vadd.f32 %v148, %v493
    %495 = vmatmul.bf16.gmra.mxu0 %v235
    %v496 = vpop.f32.mrf.mxu0
    %v497 = vadd.f32 %v148, %v496
    %v498 = vpop.f32.mrf.mxu0
    %v499 = vadd.f32 %v148, %v498
    %500 = vdwg.mxu0
    %501 = vmatpush.bf16.msra.mxu0 %v377
    %502 = vmatpush.bf16.msra.mxu0 %v373
    %503 = vmatpush.bf16.msra.mxu0 %v369
    %504 = vmatpush.bf16.msra.mxu0 %v365
    %505 = vmatpush.bf16.msra.mxu0 %v361
    %506 = vmatpush.bf16.msra.mxu0 %v357
    %507 = vmatpush.bf16.msra.mxu0 %v353
    %508 = vmatpush.bf16.msra.mxu0 %v349
    %509 = vmatmul.bf16.gmra.mxu0 %v220
    %v510 = vpop.f32.mrf.mxu0
    %v511 = vadd.f32 %v149, %v510
    %v512 = vpop.f32.mrf.mxu0
    %v513 = vadd.f32 %v149, %v512
    %514 = vmatmul.bf16.gmra.mxu0 %v221
    %v515 = vpop.f32.mrf.mxu0
    %v516 = vadd.f32 %v149, %v515
    %v517 = vpop.f32.mrf.mxu0
    %v518 = vadd.f32 %v149, %v517
    %519 = vmatmul.bf16.gmra.mxu0 %v222
    %v520 = vpop.f32.mrf.mxu0
    %v521 = vadd.f32 %v149, %v520
    %v522 = vpop.f32.mrf.mxu0
    %v523 = vadd.f32 %v149, %v522
    %524 = vmatmul.bf16.gmra.mxu0 %v223
    %v525 = vpop.f32.mrf.mxu0
    %v526 = vadd.f32 %v149, %v525
    %v527 = vpop.f32.mrf.mxu0
    %v528 = vadd.f32 %v149, %v527
    %529 = vmatmul.bf16.gmra.mxu0 %v224
    %v530 = vpop.f32.mrf.mxu0
    %v531 = vadd.f32 %v149, %v530
    %v532 = vpop.f32.mrf.mxu0
    %v533 = vadd.f32 %v149, %v532
    %534 = vmatmul.bf16.gmra.mxu0 %v225
    %v535 = vpop.f32.mrf.mxu0
    %v536 = vadd.f32 %v149, %v535
    %v537 = vpop.f32.mrf.mxu0
    %v538 = vadd.f32 %v149, %v537
    %539 = vmatmul.bf16.gmra.mxu0 %v226
    %v540 = vpop.f32.mrf.mxu0
    %v541 = vadd.f32 %v149, %v540
    %v542 = vpop.f32.mrf.mxu0
    %v543 = vadd.f32 %v149, %v542
    %544 = vmatmul.bf16.gmra.mxu0 %v227
    %v545 = vpop.f32.mrf.mxu0
    %v546 = vadd.f32 %v149, %v545
    %v547 = vpop.f32.mrf.mxu0
    %v548 = vadd.f32 %v149, %v547
    %549 = vmatmul.bf16.gmra.mxu0 %v228
    %v550 = vpop.f32.mrf.mxu0
    %v551 = vadd.f32 %v149, %v550
    %v552 = vpop.f32.mrf.mxu0
    %v553 = vadd.f32 %v149, %v552
    %554 = vmatmul.bf16.gmra.mxu0 %v229
    %v555 = vpop.f32.mrf.mxu0
    %v556 = vadd.f32 %v149, %v555
    %v557 = vpop.f32.mrf.mxu0
    %v558 = vadd.f32 %v149, %v557
    %559 = vmatmul.bf16.gmra.mxu0 %v230
    %v560 = vpop.f32.mrf.mxu0
    %v561 = vadd.f32 %v149, %v560
    %v562 = vpop.f32.mrf.mxu0
    %v563 = vadd.f32 %v149, %v562
    %564 = vmatmul.bf16.gmra.mxu0 %v231
    %v565 = vpop.f32.mrf.mxu0
    %v566 = vadd.f32 %v149, %v565
    %v567 = vpop.f32.mrf.mxu0
    %v568 = vadd.f32 %v149, %v567
    %569 = vmatmul.bf16.gmra.mxu0 %v232
    %v570 = vpop.f32.mrf.mxu0
    %v571 = vadd.f32 %v149, %v570
    %v572 = vpop.f32.mrf.mxu0
    %v573 = vadd.f32 %v149, %v572
    %574 = vmatmul.bf16.gmra.mxu0 %v233
    %v575 = vpop.f32.mrf.mxu0
    %v576 = vadd.f32 %v149, %v575
    %v577 = vpop.f32.mrf.mxu0
    %v578 = vadd.f32 %v149, %v577
    %579 = vmatmul.bf16.gmra.mxu0 %v234
    %v580 = vpop.f32.mrf.mxu0
    %v581 = vadd.f32 %v149, %v580
    %v582 = vpop.f32.mrf.mxu0
    %v583 = vadd.f32 %v149, %v582
    %584 = vmatmul.bf16.gmra.mxu0 %v235
    %v585 = vpop.f32.mrf.mxu0
    %v586 = vadd.f32 %v149, %v585
    %v587 = vpop.f32.mrf.mxu0
    %v588 = vadd.f32 %v149, %v587
    %589 = vdwg.mxu0
    %590 = vmatpush.bf16.msra.mxu0 %v378
    %591 = vmatpush.bf16.msra.mxu0 %v374
    %592 = vmatpush.bf16.msra.mxu0 %v370
    %593 = vmatpush.bf16.msra.mxu0 %v366
    %594 = vmatpush.bf16.msra.mxu0 %v362
    %595 = vmatpush.bf16.msra.mxu0 %v358
    %596 = vmatpush.bf16.msra.mxu0 %v354
    %597 = vmatpush.bf16.msra.mxu0 %v350
    %598 = vmatmul.bf16.gmra.mxu0 %v220
    %v599 = vpop.f32.mrf.mxu0
    %v600 = vadd.f32 %v150, %v599
    %v601 = vpop.f32.mrf.mxu0
    %v602 = vadd.f32 %v150, %v601
    %603 = vmatmul.bf16.gmra.mxu0 %v221
    %v604 = vpop.f32.mrf.mxu0
    %v605 = vadd.f32 %v150, %v604
    %v606 = vpop.f32.mrf.mxu0
    %v607 = vadd.f32 %v150, %v606
    %608 = vmatmul.bf16.gmra.mxu0 %v222
    %v609 = vpop.f32.mrf.mxu0
    %v610 = vadd.f32 %v150, %v609
    %v611 = vpop.f32.mrf.mxu0
    %v612 = vadd.f32 %v150, %v611
    %613 = vmatmul.bf16.gmra.mxu0 %v223
    %v614 = vpop.f32.mrf.mxu0
    %v615 = vadd.f32 %v150, %v614
    %v616 = vpop.f32.mrf.mxu0
    %v617 = vadd.f32 %v150, %v616
    %618 = vmatmul.bf16.gmra.mxu0 %v224
    %v619 = vpop.f32.mrf.mxu0
    %v620 = vadd.f32 %v150, %v619
    %v621 = vpop.f32.mrf.mxu0
    %v622 = vadd.f32 %v150, %v621
    %623 = vmatmul.bf16.gmra.mxu0 %v225
    %v624 = vpop.f32.mrf.mxu0
    %v625 = vadd.f32 %v150, %v624
    %v626 = vpop.f32.mrf.mxu0
    %v627 = vadd.f32 %v150, %v626
    %628 = vmatmul.bf16.gmra.mxu0 %v226
    %v629 = vpop.f32.mrf.mxu0
    %v630 = vadd.f32 %v150, %v629
    %v631 = vpop.f32.mrf.mxu0
    %v632 = vadd.f32 %v150, %v631
    %633 = vmatmul.bf16.gmra.mxu0 %v227
    %v634 = vpop.f32.mrf.mxu0
    %v635 = vadd.f32 %v150, %v634
    %v636 = vpop.f32.mrf.mxu0
    %v637 = vadd.f32 %v150, %v636
    %638 = vmatmul.bf16.gmra.mxu0 %v228
    %v639 = vpop.f32.mrf.mxu0
    %v640 = vadd.f32 %v150, %v639
    %v641 = vpop.f32.mrf.mxu0
    %v642 = vadd.f32 %v150, %v641
    %643 = vmatmul.bf16.gmra.mxu0 %v229
    %v644 = vpop.f32.mrf.mxu0
    %v645 = vadd.f32 %v150, %v644
    %v646 = vpop.f32.mrf.mxu0
    %v647 = vadd.f32 %v150, %v646
    %648 = vmatmul.bf16.gmra.mxu0 %v230
    %v649 = vpop.f32.mrf.mxu0
    %v650 = vadd.f32 %v150, %v649
    %v651 = vpop.f32.mrf.mxu0
    %v652 = vadd.f32 %v150, %v651
    %653 = vmatmul.bf16.gmra.mxu0 %v231
    %v654 = vpop.f32.mrf.mxu0
    %v655 = vadd.f32 %v150, %v654
    %v656 = vpop.f32.mrf.mxu0
    %v657 = vadd.f32 %v150, %v656
    %658 = vmatmul.bf16.gmra.mxu0 %v232
    %v659 = vpop.f32.mrf.mxu0
    %v660 = vadd.f32 %v150, %v659
    %v661 = vpop.f32.mrf.mxu0
    %v662 = vadd.f32 %v150, %v661
    %663 = vmatmul.bf16.gmra.mxu0 %v233
    %v664 = vpop.f32.mrf.mxu0
    %v665 = vadd.f32 %v150, %v664
    %v666 = vpop.f32.mrf.mxu0
    %v667 = vadd.f32 %v150, %v666
    %668 = vmatmul.bf16.gmra.mxu0 %v234
    %v669 = vpop.f32.mrf.mxu0
    %v670 = vadd.f32 %v150, %v669
    %v671 = vpop.f32.mrf.mxu0
    %v672 = vadd.f32 %v150, %v671
    %673 = vmatmul.bf16.gmra.mxu0 %v235
    %v674 = vpop.f32.mrf.mxu0
    %v675 = vadd.f32 %v150, %v674
    %v676 = vpop.f32.mrf.mxu0
    %v677 = vadd.f32 %v150, %v676
    %678 = vdwg.mxu0
    %679 = vmatpush.bf16.msra.mxu0 %v379
    %680 = vmatpush.bf16.msra.mxu0 %v375
    %681 = vmatpush.bf16.msra.mxu0 %v371
    %682 = vmatpush.bf16.msra.mxu0 %v367
    %683 = vmatpush.bf16.msra.mxu0 %v363
    %684 = vmatpush.bf16.msra.mxu0 %v359
    %685 = vmatpush.bf16.msra.mxu0 %v355
    %686 = vmatpush.bf16.msra.mxu0 %v351
    %687 = vmatmul.bf16.gmra.mxu0 %v220
    %v688 = vpop.f32.mrf.mxu0
    %v689 = vadd.f32 %v151, %v688
    %v690 = vpop.f32.mrf.mxu0
    %v691 = vadd.f32 %v151, %v690
    %692 = vmatmul.bf16.gmra.mxu0 %v221
    %v693 = vpop.f32.mrf.mxu0
    %v694 = vadd.f32 %v151, %v693
    %v695 = vpop.f32.mrf.mxu0
    %v696 = vadd.f32 %v151, %v695
    %697 = vmatmul.bf16.gmra.mxu0 %v222
    %v698 = vpop.f32.mrf.mxu0
    %v699 = vadd.f32 %v151, %v698
    %v700 = vpop.f32.mrf.mxu0
    %v701 = vadd.f32 %v151, %v700
    %702 = vmatmul.bf16.gmra.mxu0 %v223
    %v703 = vpop.f32.mrf.mxu0
    %v704 = vadd.f32 %v151, %v703
    %v705 = vpop.f32.mrf.mxu0
    %v706 = vadd.f32 %v151, %v705
    %707 = vmatmul.bf16.gmra.mxu0 %v224
    %v708 = vpop.f32.mrf.mxu0
    %v709 = vadd.f32 %v151, %v708
    %v710 = vpop.f32.mrf.mxu0
    %v711 = vadd.f32 %v151, %v710
    %712 = vmatmul.bf16.gmra.mxu0 %v225
    %v713 = vpop.f32.mrf.mxu0
    %v714 = vadd.f32 %v151, %v713
    %v715 = vpop.f32.mrf.mxu0
    %v716 = vadd.f32 %v151, %v715
    %717 = vmatmul.bf16.gmra.mxu0 %v226
    %v718 = vpop.f32.mrf.mxu0
    %v719 = vadd.f32 %v151, %v718
    %v720 = vpop.f32.mrf.mxu0
    %v721 = vadd.f32 %v151, %v720
    %722 = vmatmul.bf16.gmra.mxu0 %v227
    %v723 = vpop.f32.mrf.mxu0
    %v724 = vadd.f32 %v151, %v723
    %v725 = vpop.f32.mrf.mxu0
    %v726 = vadd.f32 %v151, %v725
    %727 = vmatmul.bf16.gmra.mxu0 %v228
    %v728 = vpop.f32.mrf.mxu0
    %v729 = vadd.f32 %v151, %v728
    %v730 = vpop.f32.mrf.mxu0
    %v731 = vadd.f32 %v151, %v730
    %732 = vmatmul.bf16.gmra.mxu0 %v229
    %v733 = vpop.f32.mrf.mxu0
    %v734 = vadd.f32 %v151, %v733
    %v735 = vpop.f32.mrf.mxu0
    %v736 = vadd.f32 %v151, %v735
    %737 = vmatmul.bf16.gmra.mxu0 %v230
    %v738 = vpop.f32.mrf.mxu0
    %v739 = vadd.f32 %v151, %v738
    %v740 = vpop.f32.mrf.mxu0
    %v741 = vadd.f32 %v151, %v740
    %742 = vmatmul.bf16.gmra.mxu0 %v231
    %v743 = vpop.f32.mrf.mxu0
    %v744 = vadd.f32 %v151, %v743
    %v745 = vpop.f32.mrf.mxu0
    %v746 = vadd.f32 %v151, %v745
    %747 = vmatmul.bf16.gmra.mxu0 %v232
    %v748 = vpop.f32.mrf.mxu0
    %v749 = vadd.f32 %v151, %v748
    %v750 = vpop.f32.mrf.mxu0
    %v751 = vadd.f32 %v151, %v750
    %752 = vmatmul.bf16.gmra.mxu0 %v233
    %v753 = vpop.f32.mrf.mxu0
    %v754 = vadd.f32 %v151, %v753
    %v755 = vpop.f32.mrf.mxu0
    %v756 = vadd.f32 %v151, %v755
    %757 = vmatmul.bf16.gmra.mxu0 %v234
    %v758 = vpop.f32.mrf.mxu0
    %v759 = vadd.f32 %v151, %v758
    %v760 = vpop.f32.mrf.mxu0
    %v761 = vadd.f32 %v151, %v760
    %762 = vmatmul.bf16.gmra.mxu0 %v235
    %v763 = vpop.f32.mrf.mxu0
    %v764 = vadd.f32 %v151, %v763
    %v765 = vpop.f32.mrf.mxu0
    %v766 = vadd.f32 %v151, %v765
    %767 = vdwg.mxu0
    %v768 = vmul.f32 %v422, %v422
    %v769 = vmul.f32 %v511, %v511
    %v770 = vmul.f32 %v600, %v600
    %v771 = vmul.f32 %v689, %v689
    %v772 = vmul.f32 %v424, %v424
    %v773 = vmul.f32 %v513, %v513
    %v774 = vmul.f32 %v602, %v602
    %v775 = vmul.f32 %v691, %v691
    %v776 = vmul.f32 %v427, %v427
    %v777 = vmul.f32 %v516, %v516
    %v778 = vmul.f32 %v605, %v605
    %v779 = vmul.f32 %v694, %v694
    %v780 = vmul.f32 %v429, %v429
    %v781 = vmul.f32 %v518, %v518
    %v782 = vmul.f32 %v607, %v607
    %v783 = vmul.f32 %v696, %v696
    %v784 = vmul.f32 %v432, %v432
    %v785 = vmul.f32 %v521, %v521
    %v786 = vmul.f32 %v610, %v610
    %v787 = vmul.f32 %v699, %v699
    %v788 = vmul.f32 %v434, %v434
    %v789 = vmul.f32 %v523, %v523
    %v790 = vmul.f32 %v612, %v612
    %v791 = vmul.f32 %v701, %v701
    %v792 = vmul.f32 %v437, %v437
    %v793 = vmul.f32 %v526, %v526
    %v794 = vmul.f32 %v615, %v615
    %v795 = vmul.f32 %v704, %v704
    %v796 = vmul.f32 %v439, %v439
    %v797 = vmul.f32 %v528, %v528
    %v798 = vmul.f32 %v617, %v617
    %v799 = vmul.f32 %v706, %v706
    %v800 = vmul.f32 %v442, %v442
    %v801 = vmul.f32 %v531, %v531
    %v802 = vmul.f32 %v620, %v620
    %v803 = vmul.f32 %v709, %v709
    %v804 = vmul.f32 %v444, %v444
    %v805 = vmul.f32 %v533, %v533
    %v806 = vmul.f32 %v622, %v622
    %v807 = vmul.f32 %v711, %v711
    %v808 = vmul.f32 %v447, %v447
    %v809 = vmul.f32 %v536, %v536
    %v810 = vmul.f32 %v625, %v625
    %v811 = vmul.f32 %v714, %v714
    %v812 = vmul.f32 %v449, %v449
    %v813 = vmul.f32 %v538, %v538
    %v814 = vmul.f32 %v627, %v627
    %v815 = vmul.f32 %v716, %v716
    %v816 = vmul.f32 %v452, %v452
    %v817 = vmul.f32 %v541, %v541
    %v818 = vmul.f32 %v630, %v630
    %v819 = vmul.f32 %v719, %v719
    %v820 = vmul.f32 %v454, %v454
    %v821 = vmul.f32 %v543, %v543
    %v822 = vmul.f32 %v632, %v632
    %v823 = vmul.f32 %v721, %v721
    %v824 = vmul.f32 %v457, %v457
    %v825 = vmul.f32 %v546, %v546
    %v826 = vmul.f32 %v635, %v635
    %v827 = vmul.f32 %v724, %v724
    %v828 = vmul.f32 %v459, %v459
    %v829 = vmul.f32 %v548, %v548
    %v830 = vmul.f32 %v637, %v637
    %v831 = vmul.f32 %v726, %v726
    %v832 = vmul.f32 %v462, %v462
    %v833 = vmul.f32 %v551, %v551
    %v834 = vmul.f32 %v640, %v640
    %v835 = vmul.f32 %v729, %v729
    %v836 = vmul.f32 %v464, %v464
    %v837 = vmul.f32 %v553, %v553
    %v838 = vmul.f32 %v642, %v642
    %v839 = vmul.f32 %v731, %v731
    %v840 = vmul.f32 %v467, %v467
    %v841 = vmul.f32 %v556, %v556
    %v842 = vmul.f32 %v645, %v645
    %v843 = vmul.f32 %v734, %v734
    %v844 = vmul.f32 %v469, %v469
    %v845 = vmul.f32 %v558, %v558
    %v846 = vmul.f32 %v647, %v647
    %v847 = vmul.f32 %v736, %v736
    %v848 = vmul.f32 %v472, %v472
    %v849 = vmul.f32 %v561, %v561
    %v850 = vmul.f32 %v650, %v650
    %v851 = vmul.f32 %v739, %v739
    %v852 = vmul.f32 %v474, %v474
    %v853 = vmul.f32 %v563, %v563
    %v854 = vmul.f32 %v652, %v652
    %v855 = vmul.f32 %v741, %v741
    %v856 = vmul.f32 %v477, %v477
    %v857 = vmul.f32 %v566, %v566
    %v858 = vmul.f32 %v655, %v655
    %v859 = vmul.f32 %v744, %v744
    %v860 = vmul.f32 %v479, %v479
    %v861 = vmul.f32 %v568, %v568
    %v862 = vmul.f32 %v657, %v657
    %v863 = vmul.f32 %v746, %v746
    %v864 = vmul.f32 %v482, %v482
    %v865 = vmul.f32 %v571, %v571
    %v866 = vmul.f32 %v660, %v660
    %v867 = vmul.f32 %v749, %v749
    %v868 = vmul.f32 %v484, %v484
    %v869 = vmul.f32 %v573, %v573
    %v870 = vmul.f32 %v662, %v662
    %v871 = vmul.f32 %v751, %v751
    %v872 = vmul.f32 %v487, %v487
    %v873 = vmul.f32 %v576, %v576
    %v874 = vmul.f32 %v665, %v665
    %v875 = vmul.f32 %v754, %v754
    %v876 = vmul.f32 %v489, %v489
    %v877 = vmul.f32 %v578, %v578
    %v878 = vmul.f32 %v667, %v667
    %v879 = vmul.f32 %v756, %v756
    %v880 = vmul.f32 %v492, %v492
    %v881 = vmul.f32 %v581, %v581
    %v882 = vmul.f32 %v670, %v670
    %v883 = vmul.f32 %v759, %v759
    %v884 = vmul.f32 %v494, %v494
    %v885 = vmul.f32 %v583, %v583
    %v886 = vmul.f32 %v672, %v672
    %v887 = vmul.f32 %v761, %v761
    %v888 = vmul.f32 %v497, %v497
    %v889 = vmul.f32 %v586, %v586
    %v890 = vmul.f32 %v675, %v675
    %v891 = vmul.f32 %v764, %v764
    %v892 = vmul.f32 %v499, %v499
    %v893 = vmul.f32 %v588, %v588
    %v894 = vmul.f32 %v677, %v677
    %v895 = vmul.f32 %v766, %v766
    %v896 = vmul.f32 %v768, 0.035677407
    %v897 = vmul.f32 %v769, 0.035677407
    %v898 = vmul.f32 %v770, 0.035677407
    %v899 = vmul.f32 %v771, 0.035677407
    %v900 = vmul.f32 %v772, 0.035677407
    %v901 = vmul.f32 %v773, 0.035677407
    %v902 = vmul.f32 %v774, 0.035677407
    %v903 = vmul.f32 %v775, 0.035677407
    %v904 = vmul.f32 %v776, 0.035677407
    %v905 = vmul.f32 %v777, 0.035677407
    %v906 = vmul.f32 %v778, 0.035677407
    %v907 = vmul.f32 %v779, 0.035677407
    %v908 = vmul.f32 %v780, 0.035677407
    %v909 = vmul.f32 %v781, 0.035677407
    %v910 = vmul.f32 %v782, 0.035677407
    %v911 = vmul.f32 %v783, 0.035677407
    %v912 = vmul.f32 %v784, 0.035677407
    %v913 = vmul.f32 %v785, 0.035677407
    %v914 = vmul.f32 %v786, 0.035677407
    %v915 = vmul.f32 %v787, 0.035677407
    %v916 = vmul.f32 %v788, 0.035677407
    %v917 = vmul.f32 %v789, 0.035677407
    %v918 = vmul.f32 %v790, 0.035677407
    %v919 = vmul.f32 %v791, 0.035677407
    %v920 = vmul.f32 %v792, 0.035677407
    %v921 = vmul.f32 %v793, 0.035677407
    %v922 = vmul.f32 %v794, 0.035677407
    %v923 = vmul.f32 %v795, 0.035677407
    %v924 = vmul.f32 %v796, 0.035677407
    %v925 = vmul.f32 %v797, 0.035677407
    %v926 = vmul.f32 %v798, 0.035677407
    %v927 = vmul.f32 %v799, 0.035677407
    %v928 = vmul.f32 %v800, 0.035677407
    %v929 = vmul.f32 %v801, 0.035677407
    %v930 = vmul.f32 %v802, 0.035677407
    %v931 = vmul.f32 %v803, 0.035677407
    %v932 = vmul.f32 %v804, 0.035677407
    %v933 = vmul.f32 %v805, 0.035677407
    %v934 = vmul.f32 %v806, 0.035677407
    %v935 = vmul.f32 %v807, 0.035677407
    %v936 = vmul.f32 %v808, 0.035677407
    %v937 = vmul.f32 %v809, 0.035677407
    %v938 = vmul.f32 %v810, 0.035677407
    %v939 = vmul.f32 %v811, 0.035677407
    %v940 = vmul.f32 %v812, 0.035677407
    %v941 = vmul.f32 %v813, 0.035677407
    %v942 = vmul.f32 %v814, 0.035677407
    %v943 = vmul.f32 %v815, 0.035677407
    %v944 = vmul.f32 %v816, 0.035677407
    %v945 = vmul.f32 %v817, 0.035677407
    %v946 = vmul.f32 %v818, 0.035677407
    %v947 = vmul.f32 %v819, 0.035677407
    %v948 = vmul.f32 %v820, 0.035677407
    %v949 = vmul.f32 %v821, 0.035677407
    %v950 = vmul.f32 %v822, 0.035677407
    %v951 = vmul.f32 %v823, 0.035677407
    %v952 = vmul.f32 %v824, 0.035677407
    %v953 = vmul.f32 %v825, 0.035677407
    %v954 = vmul.f32 %v826, 0.035677407
    %v955 = vmul.f32 %v827, 0.035677407
    %v956 = vmul.f32 %v828, 0.035677407
    %v957 = vmul.f32 %v829, 0.035677407
    %v958 = vmul.f32 %v830, 0.035677407
    %v959 = vmul.f32 %v831, 0.035677407
    %v960 = vmul.f32 %v832, 0.035677407
    %v961 = vmul.f32 %v833, 0.035677407
    %v962 = vmul.f32 %v834, 0.035677407
    %v963 = vmul.f32 %v835, 0.035677407
    %v964 = vmul.f32 %v836, 0.035677407
    %v965 = vmul.f32 %v837, 0.035677407
    %v966 = vmul.f32 %v838, 0.035677407
    %v967 = vmul.f32 %v839, 0.035677407
    %v968 = vmul.f32 %v840, 0.035677407
    %v969 = vmul.f32 %v841, 0.035677407
    %v970 = vmul.f32 %v842, 0.035677407
    %v971 = vmul.f32 %v843, 0.035677407
    %v972 = vmul.f32 %v844, 0.035677407
    %v973 = vmul.f32 %v845, 0.035677407
    %v974 = vmul.f32 %v846, 0.035677407
    %v975 = vmul.f32 %v847, 0.035677407
    %v976 = vmul.f32 %v848, 0.035677407
    %v977 = vmul.f32 %v849, 0.035677407
    %v978 = vmul.f32 %v850, 0.035677407
    %v979 = vmul.f32 %v851, 0.035677407
    %v980 = vmul.f32 %v852, 0.035677407
    %v981 = vmul.f32 %v853, 0.035677407
    %v982 = vmul.f32 %v854, 0.035677407
    %v983 = vmul.f32 %v855, 0.035677407
    %v984 = vmul.f32 %v856, 0.035677407
    %v985 = vmul.f32 %v857, 0.035677407
    %v986 = vmul.f32 %v858, 0.035677407
    %v987 = vmul.f32 %v859, 0.035677407
    %v988 = vmul.f32 %v860, 0.035677407
    %v989 = vmul.f32 %v861, 0.035677407
    %v990 = vmul.f32 %v862, 0.035677407
    %v991 = vmul.f32 %v863, 0.035677407
    %v992 = vmul.f32 %v864, 0.035677407
    %v993 = vmul.f32 %v865, 0.035677407
    %v994 = vmul.f32 %v866, 0.035677407
    %v995 = vmul.f32 %v867, 0.035677407
    %v996 = vmul.f32 %v868, 0.035677407
    %v997 = vmul.f32 %v869, 0.035677407
    %v998 = vmul.f32 %v870, 0.035677407
    %v999 = vmul.f32 %v871, 0.035677407
    %v1000 = vmul.f32 %v872, 0.035677407
    %v1001 = vmul.f32 %v873, 0.035677407
    %v1002 = vmul.f32 %v874, 0.035677407
    %v1003 = vmul.f32 %v875, 0.035677407
    %v1004 = vmul.f32 %v876, 0.035677407
    %v1005 = vmul.f32 %v877, 0.035677407
    %v1006 = vmul.f32 %v878, 0.035677407
    %v1007 = vmul.f32 %v879, 0.035677407
    %v1008 = vmul.f32 %v880, 0.035677407
    %v1009 = vmul.f32 %v881, 0.035677407
    %v1010 = vmul.f32 %v882, 0.035677407
    %v1011 = vmul.f32 %v883, 0.035677407
    %v1012 = vmul.f32 %v884, 0.035677407
    %v1013 = vmul.f32 %v885, 0.035677407
    %v1014 = vmul.f32 %v886, 0.035677407
    %v1015 = vmul.f32 %v887, 0.035677407
    %v1016 = vmul.f32 %v888, 0.035677407
    %v1017 = vmul.f32 %v889, 0.035677407
    %v1018 = vmul.f32 %v890, 0.035677407
    %v1019 = vmul.f32 %v891, 0.035677407
    %v1020 = vmul.f32 %v892, 0.035677407
    %v1021 = vmul.f32 %v893, 0.035677407
    %v1022 = vmul.f32 %v894, 0.035677407
    %v1023 = vmul.f32 %v895, 0.035677407
    %v1024 = vadd.f32 %v896, 0.7978846
    %v1025 = vadd.f32 %v897, 0.7978846
    %v1026 = vadd.f32 %v898, 0.7978846
    %v1027 = vadd.f32 %v899, 0.7978846
    %v1028 = vadd.f32 %v900, 0.7978846
    %v1029 = vadd.f32 %v901, 0.7978846
    %v1030 = vadd.f32 %v902, 0.7978846
    %v1031 = vadd.f32 %v903, 0.7978846
    %v1032 = vadd.f32 %v904, 0.7978846
    %v1033 = vadd.f32 %v905, 0.7978846
    %v1034 = vadd.f32 %v906, 0.7978846
    %v1035 = vadd.f32 %v907, 0.7978846
    %v1036 = vadd.f32 %v908, 0.7978846
    %v1037 = vadd.f32 %v909, 0.7978846
    %v1038 = vadd.f32 %v910, 0.7978846
    %v1039 = vadd.f32 %v911, 0.7978846
    %v1040 = vadd.f32 %v912, 0.7978846
    %v1041 = vadd.f32 %v913, 0.7978846
    %v1042 = vadd.f32 %v914, 0.7978846
    %v1043 = vadd.f32 %v915, 0.7978846
    %v1044 = vadd.f32 %v916, 0.7978846
    %v1045 = vadd.f32 %v917, 0.7978846
    %v1046 = vadd.f32 %v918, 0.7978846
    %v1047 = vadd.f32 %v919, 0.7978846
    %v1048 = vadd.f32 %v920, 0.7978846
    %v1049 = vadd.f32 %v921, 0.7978846
    %v1050 = vadd.f32 %v922, 0.7978846
    %v1051 = vadd.f32 %v923, 0.7978846
    %v1052 = vadd.f32 %v924, 0.7978846
    %v1053 = vadd.f32 %v925, 0.7978846
    %v1054 = vadd.f32 %v926, 0.7978846
    %v1055 = vadd.f32 %v927, 0.7978846
    %v1056 = vadd.f32 %v928, 0.7978846
    %v1057 = vadd.f32 %v929, 0.7978846
    %v1058 = vadd.f32 %v930, 0.7978846
    %v1059 = vadd.f32 %v931, 0.7978846
    %v1060 = vadd.f32 %v932, 0.7978846
    %v1061 = vadd.f32 %v933, 0.7978846
    %v1062 = vadd.f32 %v934, 0.7978846
    %v1063 = vadd.f32 %v935, 0.7978846
    %v1064 = vadd.f32 %v936, 0.7978846
    %v1065 = vadd.f32 %v937, 0.7978846
    %v1066 = vadd.f32 %v938, 0.7978846
    %v1067 = vadd.f32 %v939, 0.7978846
    %v1068 = vadd.f32 %v940, 0.7978846
    %v1069 = vadd.f32 %v941, 0.7978846
    %v1070 = vadd.f32 %v942, 0.7978846
    %v1071 = vadd.f32 %v943, 0.7978846
    %v1072 = vadd.f32 %v944, 0.7978846
    %v1073 = vadd.f32 %v945, 0.7978846
    %v1074 = vadd.f32 %v946, 0.7978846
    %v1075 = vadd.f32 %v947, 0.7978846
    %v1076 = vadd.f32 %v948, 0.7978846
    %v1077 = vadd.f32 %v949, 0.7978846
    %v1078 = vadd.f32 %v950, 0.7978846
    %v1079 = vadd.f32 %v951, 0.7978846
    %v1080 = vadd.f32 %v952, 0.7978846
    %v1081 = vadd.f32 %v953, 0.7978846
    %v1082 = vadd.f32 %v954, 0.7978846
    %v1083 = vadd.f32 %v955, 0.7978846
    %v1084 = vadd.f32 %v956, 0.7978846
    %v1085 = vadd.f32 %v957, 0.7978846
    %v1086 = vadd.f32 %v958, 0.7978846
    %v1087 = vadd.f32 %v959, 0.7978846
    %v1088 = vadd.f32 %v960, 0.7978846
    %v1089 = vadd.f32 %v961, 0.7978846
    %v1090 = vadd.f32 %v962, 0.7978846
    %v1091 = vadd.f32 %v963, 0.7978846
    %v1092 = vadd.f32 %v964, 0.7978846
    %v1093 = vadd.f32 %v965, 0.7978846
    %v1094 = vadd.f32 %v966, 0.7978846
    %v1095 = vadd.f32 %v967, 0.7978846
    %v1096 = vadd.f32 %v968, 0.7978846
    %v1097 = vadd.f32 %v969, 0.7978846
    %v1098 = vadd.f32 %v970, 0.7978846
    %v1099 = vadd.f32 %v971, 0.7978846
    %v1100 = vadd.f32 %v972, 0.7978846
    %v1101 = vadd.f32 %v973, 0.7978846
    %v1102 = vadd.f32 %v974, 0.7978846
    %v1103 = vadd.f32 %v975, 0.7978846
    %v1104 = vadd.f32 %v976, 0.7978846
    %v1105 = vadd.f32 %v977, 0.7978846
    %v1106 = vadd.f32 %v978, 0.7978846
    %v1107 = vadd.f32 %v979, 0.7978846
    %v1108 = vadd.f32 %v980, 0.7978846
    %v1109 = vadd.f32 %v981, 0.7978846
    %v1110 = vadd.f32 %v982, 0.7978846
    %v1111 = vadd.f32 %v983, 0.7978846
    %v1112 = vadd.f32 %v984, 0.7978846
    %v1113 = vadd.f32 %v985, 0.7978846
    %v1114 = vadd.f32 %v986, 0.7978846
    %v1115 = vadd.f32 %v987, 0.7978846
    %v1116 = vadd.f32 %v988, 0.7978846
    %v1117 = vadd.f32 %v989, 0.7978846
    %v1118 = vadd.f32 %v990, 0.7978846
    %v1119 = vadd.f32 %v991, 0.7978846
    %v1120 = vadd.f32 %v992, 0.7978846
    %v1121 = vadd.f32 %v993, 0.7978846
    %v1122 = vadd.f32 %v994, 0.7978846
    %v1123 = vadd.f32 %v995, 0.7978846
    %v1124 = vadd.f32 %v996, 0.7978846
    %v1125 = vadd.f32 %v997, 0.7978846
    %v1126 = vadd.f32 %v998, 0.7978846
    %v1127 = vadd.f32 %v999, 0.7978846
    %v1128 = vadd.f32 %v1000, 0.7978846
    %v1129 = vadd.f32 %v1001, 0.7978846
    %v1130 = vadd.f32 %v1002, 0.7978846
    %v1131 = vadd.f32 %v1003, 0.7978846
    %v1132 = vadd.f32 %v1004, 0.7978846
    %v1133 = vadd.f32 %v1005, 0.7978846
    %v1134 = vadd.f32 %v1006, 0.7978846
    %v1135 = vadd.f32 %v1007, 0.7978846
    %v1136 = vadd.f32 %v1008, 0.7978846
    %v1137 = vadd.f32 %v1009, 0.7978846
    %v1138 = vadd.f32 %v1010, 0.7978846
    %v1139 = vadd.f32 %v1011, 0.7978846
    %v1140 = vadd.f32 %v1012, 0.7978846
    %v1141 = vadd.f32 %v1013, 0.7978846
    %v1142 = vadd.f32 %v1014, 0.7978846
    %v1143 = vadd.f32 %v1015, 0.7978846
    %v1144 = vadd.f32 %v1016, 0.7978846
    %v1145 = vadd.f32 %v1017, 0.7978846
    %v1146 = vadd.f32 %v1018, 0.7978846
    %v1147 = vadd.f32 %v1019, 0.7978846
    %v1148 = vadd.f32 %v1020, 0.7978846
    %v1149 = vadd.f32 %v1021, 0.7978846
    %v1150 = vadd.f32 %v1022, 0.7978846
    %v1151 = vadd.f32 %v1023, 0.7978846
    %v1152 = vmul.f32 %v422, %v1024
    %v1153 = vmul.f32 %v511, %v1025
    %v1154 = vmul.f32 %v600, %v1026
    %v1155 = vmul.f32 %v689, %v1027
    %v1156 = vmul.f32 %v424, %v1028
    %v1157 = vmul.f32 %v513, %v1029
    %v1158 = vmul.f32 %v602, %v1030
    %v1159 = vmul.f32 %v691, %v1031
    %v1160 = vmul.f32 %v427, %v1032
    %v1161 = vmul.f32 %v516, %v1033
    %v1162 = vmul.f32 %v605, %v1034
    %v1163 = vmul.f32 %v694, %v1035
    %v1164 = vmul.f32 %v429, %v1036
    %v1165 = vmul.f32 %v518, %v1037
    %v1166 = vmul.f32 %v607, %v1038
    %v1167 = vmul.f32 %v696, %v1039
    %v1168 = vmul.f32 %v432, %v1040
    %v1169 = vmul.f32 %v521, %v1041
    %v1170 = vmul.f32 %v610, %v1042
    %v1171 = vmul.f32 %v699, %v1043
    %v1172 = vmul.f32 %v434, %v1044
    %v1173 = vmul.f32 %v523, %v1045
    %v1174 = vmul.f32 %v612, %v1046
    %v1175 = vmul.f32 %v701, %v1047
    %v1176 = vmul.f32 %v437, %v1048
    %v1177 = vmul.f32 %v526, %v1049
    %v1178 = vmul.f32 %v615, %v1050
    %v1179 = vmul.f32 %v704, %v1051
    %v1180 = vmul.f32 %v439, %v1052
    %v1181 = vmul.f32 %v528, %v1053
    %v1182 = vmul.f32 %v617, %v1054
    %v1183 = vmul.f32 %v706, %v1055
    %v1184 = vmul.f32 %v442, %v1056
    %v1185 = vmul.f32 %v531, %v1057
    %v1186 = vmul.f32 %v620, %v1058
    %v1187 = vmul.f32 %v709, %v1059
    %v1188 = vmul.f32 %v444, %v1060
    %v1189 = vmul.f32 %v533, %v1061
    %v1190 = vmul.f32 %v622, %v1062
    %v1191 = vmul.f32 %v711, %v1063
    %v1192 = vmul.f32 %v447, %v1064
    %v1193 = vmul.f32 %v536, %v1065
    %v1194 = vmul.f32 %v625, %v1066
    %v1195 = vmul.f32 %v714, %v1067
    %v1196 = vmul.f32 %v449, %v1068
    %v1197 = vmul.f32 %v538, %v1069
    %v1198 = vmul.f32 %v627, %v1070
    %v1199 = vmul.f32 %v716, %v1071
    %v1200 = vmul.f32 %v452, %v1072
    %v1201 = vmul.f32 %v541, %v1073
    %v1202 = vmul.f32 %v630, %v1074
    %v1203 = vmul.f32 %v719, %v1075
    %v1204 = vmul.f32 %v454, %v1076
    %v1205 = vmul.f32 %v543, %v1077
    %v1206 = vmul.f32 %v632, %v1078
    %v1207 = vmul.f32 %v721, %v1079
    %v1208 = vmul.f32 %v457, %v1080
    %v1209 = vmul.f32 %v546, %v1081
    %v1210 = vmul.f32 %v635, %v1082
    %v1211 = vmul.f32 %v724, %v1083
    %v1212 = vmul.f32 %v459, %v1084
    %v1213 = vmul.f32 %v548, %v1085
    %v1214 = vmul.f32 %v637, %v1086
    %v1215 = vmul.f32 %v726, %v1087
    %v1216 = vmul.f32 %v462, %v1088
    %v1217 = vmul.f32 %v551, %v1089
    %v1218 = vmul.f32 %v640, %v1090
    %v1219 = vmul.f32 %v729, %v1091
    %v1220 = vmul.f32 %v464, %v1092
    %v1221 = vmul.f32 %v553, %v1093
    %v1222 = vmul.f32 %v642, %v1094
    %v1223 = vmul.f32 %v731, %v1095
    %v1224 = vmul.f32 %v467, %v1096
    %v1225 = vmul.f32 %v556, %v1097
    %v1226 = vmul.f32 %v645, %v1098
    %v1227 = vmul.f32 %v734, %v1099
    %v1228 = vmul.f32 %v469, %v1100
    %v1229 = vmul.f32 %v558, %v1101
    %v1230 = vmul.f32 %v647, %v1102
    %v1231 = vmul.f32 %v736, %v1103
    %v1232 = vmul.f32 %v472, %v1104
    %v1233 = vmul.f32 %v561, %v1105
    %v1234 = vmul.f32 %v650, %v1106
    %v1235 = vmul.f32 %v739, %v1107
    %v1236 = vmul.f32 %v474, %v1108
    %v1237 = vmul.f32 %v563, %v1109
    %v1238 = vmul.f32 %v652, %v1110
    %v1239 = vmul.f32 %v741, %v1111
    %v1240 = vmul.f32 %v477, %v1112
    %v1241 = vmul.f32 %v566, %v1113
    %v1242 = vmul.f32 %v655, %v1114
    %v1243 = vmul.f32 %v744, %v1115
    %v1244 = vmul.f32 %v479, %v1116
    %v1245 = vmul.f32 %v568, %v1117
    %v1246 = vmul.f32 %v657, %v1118
    %v1247 = vmul.f32 %v746, %v1119
    %v1248 = vmul.f32 %v482, %v1120
    %v1249 = vmul.f32 %v571, %v1121
    %v1250 = vmul.f32 %v660, %v1122
    %v1251 = vmul.f32 %v749, %v1123
    %v1252 = vmul.f32 %v484, %v1124
    %v1253 = vmul.f32 %v573, %v1125
    %v1254 = vmul.f32 %v662, %v1126
    %v1255 = vmul.f32 %v751, %v1127
    %v1256 = vmul.f32 %v487, %v1128
    %v1257 = vmul.f32 %v576, %v1129
    %v1258 = vmul.f32 %v665, %v1130
    %v1259 = vmul.f32 %v754, %v1131
    %v1260 = vmul.f32 %v489, %v1132
    %v1261 = vmul.f32 %v578, %v1133
    %v1262 = vmul.f32 %v667, %v1134
    %v1263 = vmul.f32 %v756, %v1135
    %v1264 = vmul.f32 %v492, %v1136
    %v1265 = vmul.f32 %v581, %v1137
    %v1266 = vmul.f32 %v670, %v1138
    %v1267 = vmul.f32 %v759, %v1139
    %v1268 = vmul.f32 %v494, %v1140
    %v1269 = vmul.f32 %v583, %v1141
    %v1270 = vmul.f32 %v672, %v1142
    %v1271 = vmul.f32 %v761, %v1143
    %v1272 = vmul.f32 %v497, %v1144
    %v1273 = vmul.f32 %v586, %v1145
    %v1274 = vmul.f32 %v675, %v1146
    %v1275 = vmul.f32 %v764, %v1147
    %v1276 = vmul.f32 %v499, %v1148
    %v1277 = vmul.f32 %v588, %v1149
    %v1278 = vmul.f32 %v677, %v1150
    %v1279 = vmul.f32 %v766, %v1151
    %v1280 = vmul.f32 %v422, 0.5
    %v1281 = vmul.f32 %v511, 0.5
    %v1282 = vmul.f32 %v600, 0.5
    %v1283 = vmul.f32 %v689, 0.5
    %v1284 = vmul.f32 %v424, 0.5
    %v1285 = vmul.f32 %v513, 0.5
    %v1286 = vmul.f32 %v602, 0.5
    %v1287 = vmul.f32 %v691, 0.5
    %v1288 = vmul.f32 %v427, 0.5
    %v1289 = vmul.f32 %v516, 0.5
    %v1290 = vmul.f32 %v605, 0.5
    %v1291 = vmul.f32 %v694, 0.5
    %v1292 = vmul.f32 %v429, 0.5
    %v1293 = vmul.f32 %v518, 0.5
    %v1294 = vmul.f32 %v607, 0.5
    %v1295 = vmul.f32 %v696, 0.5
    %v1296 = vmul.f32 %v432, 0.5
    %v1297 = vmul.f32 %v521, 0.5
    %v1298 = vmul.f32 %v610, 0.5
    %v1299 = vmul.f32 %v699, 0.5
    %v1300 = vmul.f32 %v434, 0.5
    %v1301 = vmul.f32 %v523, 0.5
    %v1302 = vmul.f32 %v612, 0.5
    %v1303 = vmul.f32 %v701, 0.5
    %v1304 = vmul.f32 %v437, 0.5
    %v1305 = vmul.f32 %v526, 0.5
    %v1306 = vmul.f32 %v615, 0.5
    %v1307 = vmul.f32 %v704, 0.5
    %v1308 = vmul.f32 %v439, 0.5
    %v1309 = vmul.f32 %v528, 0.5
    %v1310 = vmul.f32 %v617, 0.5
    %v1311 = vmul.f32 %v706, 0.5
    %v1312 = vmul.f32 %v442, 0.5
    %v1313 = vmul.f32 %v531, 0.5
    %v1314 = vmul.f32 %v620, 0.5
    %v1315 = vmul.f32 %v709, 0.5
    %v1316 = vmul.f32 %v444, 0.5
    %v1317 = vmul.f32 %v533, 0.5
    %v1318 = vmul.f32 %v622, 0.5
    %v1319 = vmul.f32 %v711, 0.5
    %v1320 = vmul.f32 %v447, 0.5
    %v1321 = vmul.f32 %v536, 0.5
    %v1322 = vmul.f32 %v625, 0.5
    %v1323 = vmul.f32 %v714, 0.5
    %v1324 = vmul.f32 %v449, 0.5
    %v1325 = vmul.f32 %v538, 0.5
    %v1326 = vmul.f32 %v627, 0.5
    %v1327 = vmul.f32 %v716, 0.5
    %v1328 = vmul.f32 %v452, 0.5
    %v1329 = vmul.f32 %v541, 0.5
    %v1330 = vmul.f32 %v630, 0.5
    %v1331 = vmul.f32 %v719, 0.5
    %v1332 = vmul.f32 %v454, 0.5
    %v1333 = vmul.f32 %v543, 0.5
    %v1334 = vmul.f32 %v632, 0.5
    %v1335 = vmul.f32 %v721, 0.5
    %v1336 = vmul.f32 %v457, 0.5
    %v1337 = vmul.f32 %v546, 0.5
    %v1338 = vmul.f32 %v635, 0.5
    %v1339 = vmul.f32 %v724, 0.5
    %v1340 = vmul.f32 %v459, 0.5
    %v1341 = vmul.f32 %v548, 0.5
    %v1342 = vmul.f32 %v637, 0.5
    %v1343 = vmul.f32 %v726, 0.5
    %v1344 = vmul.f32 %v462, 0.5
    %v1345 = vmul.f32 %v551, 0.5
    %v1346 = vmul.f32 %v640, 0.5
    %v1347 = vmul.f32 %v729, 0.5
    %v1348 = vmul.f32 %v464, 0.5
    %v1349 = vmul.f32 %v553, 0.5
    %v1350 = vmul.f32 %v642, 0.5
    %v1351 = vmul.f32 %v731, 0.5
    %v1352 = vmul.f32 %v467, 0.5
    %v1353 = vmul.f32 %v556, 0.5
    %v1354 = vmul.f32 %v645, 0.5
    %v1355 = vmul.f32 %v734, 0.5
    %v1356 = vmul.f32 %v469, 0.5
    %v1357 = vmul.f32 %v558, 0.5
    %v1358 = vmul.f32 %v647, 0.5
    %v1359 = vmul.f32 %v736, 0.5
    %v1360 = vmul.f32 %v472, 0.5
    %v1361 = vmul.f32 %v561, 0.5
    %v1362 = vmul.f32 %v650, 0.5
    %v1363 = vmul.f32 %v739, 0.5
    %v1364 = vmul.f32 %v474, 0.5
    %v1365 = vmul.f32 %v563, 0.5
    %v1366 = vmul.f32 %v652, 0.5
    %v1367 = vmul.f32 %v741, 0.5
    %v1368 = vmul.f32 %v477, 0.5
    %v1369 = vmul.f32 %v566, 0.5
    %v1370 = vmul.f32 %v655, 0.5
    %v1371 = vmul.f32 %v744, 0.5
    %v1372 = vmul.f32 %v479, 0.5
    %v1373 = vmul.f32 %v568, 0.5
    %v1374 = vmul.f32 %v657, 0.5
    %v1375 = vmul.f32 %v746, 0.5
    %v1376 = vmul.f32 %v482, 0.5
    %v1377 = vmul.f32 %v571, 0.5
    %v1378 = vmul.f32 %v660, 0.5
    %v1379 = vmul.f32 %v749, 0.5
    %v1380 = vmul.f32 %v484, 0.5
    %v1381 = vmul.f32 %v573, 0.5
    %v1382 = vmul.f32 %v662, 0.5
    %v1383 = vmul.f32 %v751, 0.5
    %v1384 = vmul.f32 %v487, 0.5
    %v1385 = vmul.f32 %v576, 0.5
    %v1386 = vmul.f32 %v665, 0.5
    %v1387 = vmul.f32 %v754, 0.5
    %v1388 = vmul.f32 %v489, 0.5
    %v1389 = vmul.f32 %v578, 0.5
    %v1390 = vmul.f32 %v667, 0.5
    %v1391 = vmul.f32 %v756, 0.5
    %v1392 = vmul.f32 %v492, 0.5
    %v1393 = vmul.f32 %v581, 0.5
    %v1394 = vmul.f32 %v670, 0.5
    %v1395 = vmul.f32 %v759, 0.5
    %v1396 = vmul.f32 %v494, 0.5
    %v1397 = vmul.f32 %v583, 0.5
    %v1398 = vmul.f32 %v672, 0.5
    %v1399 = vmul.f32 %v761, 0.5
    %v1400 = vmul.f32 %v497, 0.5
    %v1401 = vmul.f32 %v586, 0.5
    %v1402 = vmul.f32 %v675, 0.5
    %v1403 = vmul.f32 %v764, 0.5
    %v1404 = vmul.f32 %v499, 0.5
    %v1405 = vmul.f32 %v588, 0.5
    %v1406 = vmul.f32 %v677, 0.5
    %v1407 = vmul.f32 %v766, 0.5
    %v1408 = vtanh.pop %v1152
    %v1409 = vtanh.pop %v1153
    %v1410 = vtanh.pop %v1154
    %v1411 = vtanh.pop %v1155
    %v1412 = vtanh.pop %v1156
    %v1413 = vtanh.pop %v1157
    %v1414 = vtanh.pop %v1158
    %v1415 = vtanh.pop %v1159
    %v1416 = vtanh.pop %v1160
    %v1417 = vtanh.pop %v1161
    %v1418 = vtanh.pop %v1162
    %v1419 = vtanh.pop %v1163
    %v1420 = vtanh.pop %v1164
    %v1421 = vtanh.pop %v1165
    %v1422 = vtanh.pop %v1166
    %v1423 = vtanh.pop %v1167
    %v1424 = vtanh.pop %v1168
    %v1425 = vtanh.pop %v1169
    %v1426 = vtanh.pop %v1170
    %v1427 = vtanh.pop %v1171
    %v1428 = vtanh.pop %v1172
    %v1429 = vtanh.pop %v1173
    %v1430 = vtanh.pop %v1174
    %v1431 = vtanh.pop %v1175
    %v1432 = vtanh.pop %v1176
    %v1433 = vtanh.pop %v1177
    %v1434 = vtanh.pop %v1178
    %v1435 = vtanh.pop %v1179
    %v1436 = vtanh.pop %v1180
    %v1437 = vtanh.pop %v1181
    %v1438 = vtanh.pop %v1182
    %v1439 = vtanh.pop %v1183
    %v1440 = vtanh.pop %v1184
    %v1441 = vtanh.pop %v1185
    %v1442 = vtanh.pop %v1186
    %v1443 = vtanh.pop %v1187
    %v1444 = vtanh.pop %v1188
    %v1445 = vtanh.pop %v1189
    %v1446 = vtanh.pop %v1190
    %v1447 = vtanh.pop %v1191
    %v1448 = vtanh.pop %v1192
    %v1449 = vtanh.pop %v1193
    %v1450 = vtanh.pop %v1194
    %v1451 = vtanh.pop %v1195
    %v1452 = vtanh.pop %v1196
    %v1453 = vtanh.pop %v1197
    %v1454 = vtanh.pop %v1198
    %v1455 = vtanh.pop %v1199
    %v1456 = vtanh.pop %v1200
    %v1457 = vtanh.pop %v1201
    %v1458 = vtanh.pop %v1202
    %v1459 = vtanh.pop %v1203
    %v1460 = vtanh.pop %v1204
    %v1461 = vtanh.pop %v1205
    %v1462 = vtanh.pop %v1206
    %v1463 = vtanh.pop %v1207
    %v1464 = vtanh.pop %v1208
    %v1465 = vtanh.pop %v1209
    %v1466 = vtanh.pop %v1210
    %v1467 = vtanh.pop %v1211
    %v1468 = vtanh.pop %v1212
    %v1469 = vtanh.pop %v1213
    %v1470 = vtanh.pop %v1214
    %v1471 = vtanh.pop %v1215
    %v1472 = vtanh.pop %v1216
    %v1473 = vtanh.pop %v1217
    %v1474 = vtanh.pop %v1218
    %v1475 = vtanh.pop %v1219
    %v1476 = vtanh.pop %v1220
    %v1477 = vtanh.pop %v1221
    %v1478 = vtanh.pop %v1222
    %v1479 = vtanh.pop %v1223
    %v1480 = vtanh.pop %v1224
    %v1481 = vtanh.pop %v1225
    %v1482 = vtanh.pop %v1226
    %v1483 = vtanh.pop %v1227
    %v1484 = vtanh.pop %v1228
    %v1485 = vtanh.pop %v1229
    %v1486 = vtanh.pop %v1230
    %v1487 = vtanh.pop %v1231
    %v1488 = vtanh.pop %v1232
    %v1489 = vtanh.pop %v1233
    %v1490 = vtanh.pop %v1234
    %v1491 = vtanh.pop %v1235
    %v1492 = vtanh.pop %v1236
    %v1493 = vtanh.pop %v1237
    %v1494 = vtanh.pop %v1238
    %v1495 = vtanh.pop %v1239
    %v1496 = vtanh.pop %v1240
    %v1497 = vtanh.pop %v1241
    %v1498 = vtanh.pop %v1242
    %v1499 = vtanh.pop %v1243
    %v1500 = vtanh.pop %v1244
    %v1501 = vtanh.pop %v1245
    %v1502 = vtanh.pop %v1246
    %v1503 = vtanh.pop %v1247
    %v1504 = vtanh.pop %v1248
    %v1505 = vtanh.pop %v1249
    %v1506 = vtanh.pop %v1250
    %v1507 = vtanh.pop %v1251
    %v1508 = vtanh.pop %v1252
    %v1509 = vtanh.pop %v1253
    %v1510 = vtanh.pop %v1254
    %v1511 = vtanh.pop %v1255
    %v1512 = vtanh.pop %v1256
    %v1513 = vtanh.pop %v1257
    %v1514 = vtanh.pop %v1258
    %v1515 = vtanh.pop %v1259
    %v1516 = vtanh.pop %v1260
    %v1517 = vtanh.pop %v1261
    %v1518 = vtanh.pop %v1262
    %v1519 = vtanh.pop %v1263
    %v1520 = vtanh.pop %v1264
    %v1521 = vtanh.pop %v1265
    %v1522 = vtanh.pop %v1266
    %v1523 = vtanh.pop %v1267
    %v1524 = vtanh.pop %v1268
    %v1525 = vtanh.pop %v1269
    %v1526 = vtanh.pop %v1270
    %v1527 = vtanh.pop %v1271
    %v1528 = vtanh.pop %v1272
    %v1529 = vtanh.pop %v1273
    %v1530 = vtanh.pop %v1274
    %v1531 = vtanh.pop %v1275
    %v1532 = vtanh.pop %v1276
    %v1533 = vtanh.pop %v1277
    %v1534 = vtanh.pop %v1278
    %v1535 = vtanh.pop %v1279
    %v1536 = vadd.f32 %v1408, 1.0
    %v1537 = vadd.f32 %v1409, 1.0
    %v1538 = vadd.f32 %v1410, 1.0
    %v1539 = vadd.f32 %v1411, 1.0
    %v1540 = vadd.f32 %v1412, 1.0
    %v1541 = vadd.f32 %v1413, 1.0
    %v1542 = vadd.f32 %v1414, 1.0
    %v1543 = vadd.f32 %v1415, 1.0
    %v1544 = vadd.f32 %v1416, 1.0
    %v1545 = vadd.f32 %v1417, 1.0
    %v1546 = vadd.f32 %v1418, 1.0
    %v1547 = vadd.f32 %v1419, 1.0
    %v1548 = vadd.f32 %v1420, 1.0
    %v1549 = vadd.f32 %v1421, 1.0
    %v1550 = vadd.f32 %v1422, 1.0
    %v1551 = vadd.f32 %v1423, 1.0
    %v1552 = vadd.f32 %v1424, 1.0
    %v1553 = vadd.f32 %v1425, 1.0
    %v1554 = vadd.f32 %v1426, 1.0
    %v1555 = vadd.f32 %v1427, 1.0
    %v1556 = vadd.f32 %v1428, 1.0
    %v1557 = vadd.f32 %v1429, 1.0
    %v1558 = vadd.f32 %v1430, 1.0
    %v1559 = vadd.f32 %v1431, 1.0
    %v1560 = vadd.f32 %v1432, 1.0
    %v1561 = vadd.f32 %v1433, 1.0
    %v1562 = vadd.f32 %v1434, 1.0
    %v1563 = vadd.f32 %v1435, 1.0
    %v1564 = vadd.f32 %v1436, 1.0
    %v1565 = vadd.f32 %v1437, 1.0
    %v1566 = vadd.f32 %v1438, 1.0
    %v1567 = vadd.f32 %v1439, 1.0
    %v1568 = vadd.f32 %v1440, 1.0
    %v1569 = vadd.f32 %v1441, 1.0
    %v1570 = vadd.f32 %v1442, 1.0
    %v1571 = vadd.f32 %v1443, 1.0
    %v1572 = vadd.f32 %v1444, 1.0
    %v1573 = vadd.f32 %v1445, 1.0
    %v1574 = vadd.f32 %v1446, 1.0
    %v1575 = vadd.f32 %v1447, 1.0
    %v1576 = vadd.f32 %v1448, 1.0
    %v1577 = vadd.f32 %v1449, 1.0
    %v1578 = vadd.f32 %v1450, 1.0
    %v1579 = vadd.f32 %v1451, 1.0
    %v1580 = vadd.f32 %v1452, 1.0
    %v1581 = vadd.f32 %v1453, 1.0
    %v1582 = vadd.f32 %v1454, 1.0
    %v1583 = vadd.f32 %v1455, 1.0
    %v1584 = vadd.f32 %v1456, 1.0
    %v1585 = vadd.f32 %v1457, 1.0
    %v1586 = vadd.f32 %v1458, 1.0
    %v1587 = vadd.f32 %v1459, 1.0
    %v1588 = vadd.f32 %v1460, 1.0
    %v1589 = vadd.f32 %v1461, 1.0
    %v1590 = vadd.f32 %v1462, 1.0
    %v1591 = vadd.f32 %v1463, 1.0
    %v1592 = vadd.f32 %v1464, 1.0
    %v1593 = vadd.f32 %v1465, 1.0
    %v1594 = vadd.f32 %v1466, 1.0
    %v1595 = vadd.f32 %v1467, 1.0
    %v1596 = vadd.f32 %v1468, 1.0
    %v1597 = vadd.f32 %v1469, 1.0
    %v1598 = vadd.f32 %v1470, 1.0
    %v1599 = vadd.f32 %v1471, 1.0
    %v1600 = vadd.f32 %v1472, 1.0
    %v1601 = vadd.f32 %v1473, 1.0
    %v1602 = vadd.f32 %v1474, 1.0
    %v1603 = vadd.f32 %v1475, 1.0
    %v1604 = vadd.f32 %v1476, 1.0
    %v1605 = vadd.f32 %v1477, 1.0
    %v1606 = vadd.f32 %v1478, 1.0
    %v1607 = vadd.f32 %v1479, 1.0
    %v1608 = vadd.f32 %v1480, 1.0
    %v1609 = vadd.f32 %v1481, 1.0
    %v1610 = vadd.f32 %v1482, 1.0
    %v1611 = vadd.f32 %v1483, 1.0
    %v1612 = vadd.f32 %v1484, 1.0
    %v1613 = vadd.f32 %v1485, 1.0
    %v1614 = vadd.f32 %v1486, 1.0
    %v1615 = vadd.f32 %v1487, 1.0
    %v1616 = vadd.f32 %v1488, 1.0
    %v1617 = vadd.f32 %v1489, 1.0
    %v1618 = vadd.f32 %v1490, 1.0
    %v1619 = vadd.f32 %v1491, 1.0
    %v1620 = vadd.f32 %v1492, 1.0
    %v1621 = vadd.f32 %v1493, 1.0
    %v1622 = vadd.f32 %v1494, 1.0
    %v1623 = vadd.f32 %v1495, 1.0
    %v1624 = vadd.f32 %v1496, 1.0
    %v1625 = vadd.f32 %v1497, 1.0
    %v1626 = vadd.f32 %v1498, 1.0
    %v1627 = vadd.f32 %v1499, 1.0
    %v1628 = vadd.f32 %v1500, 1.0
    %v1629 = vadd.f32 %v1501, 1.0
    %v1630 = vadd.f32 %v1502, 1.0
    %v1631 = vadd.f32 %v1503, 1.0
    %v1632 = vadd.f32 %v1504, 1.0
    %v1633 = vadd.f32 %v1505, 1.0
    %v1634 = vadd.f32 %v1506, 1.0
    %v1635 = vadd.f32 %v1507, 1.0
    %v1636 = vadd.f32 %v1508, 1.0
    %v1637 = vadd.f32 %v1509, 1.0
    %v1638 = vadd.f32 %v1510, 1.0
    %v1639 = vadd.f32 %v1511, 1.0
    %v1640 = vadd.f32 %v1512, 1.0
    %v1641 = vadd.f32 %v1513, 1.0
    %v1642 = vadd.f32 %v1514, 1.0
    %v1643 = vadd.f32 %v1515, 1.0
    %v1644 = vadd.f32 %v1516, 1.0
    %v1645 = vadd.f32 %v1517, 1.0
    %v1646 = vadd.f32 %v1518, 1.0
    %v1647 = vadd.f32 %v1519, 1.0
    %v1648 = vadd.f32 %v1520, 1.0
    %v1649 = vadd.f32 %v1521, 1.0
    %v1650 = vadd.f32 %v1522, 1.0
    %v1651 = vadd.f32 %v1523, 1.0
    %v1652 = vadd.f32 %v1524, 1.0
    %v1653 = vadd.f32 %v1525, 1.0
    %v1654 = vadd.f32 %v1526, 1.0
    %v1655 = vadd.f32 %v1527, 1.0
    %v1656 = vadd.f32 %v1528, 1.0
    %v1657 = vadd.f32 %v1529, 1.0
    %v1658 = vadd.f32 %v1530, 1.0
    %v1659 = vadd.f32 %v1531, 1.0
    %v1660 = vadd.f32 %v1532, 1.0
    %v1661 = vadd.f32 %v1533, 1.0
    %v1662 = vadd.f32 %v1534, 1.0
    %v1663 = vadd.f32 %v1535, 1.0
    %v1664 = vmul.f32 %v1280, %v1536
    %v1665 = vmul.f32 %v1281, %v1537
    %v1666 = vmul.f32 %v1282, %v1538
    %v1667 = vmul.f32 %v1283, %v1539
    %v1668 = vmul.f32 %v1284, %v1540
    %v1669 = vmul.f32 %v1285, %v1541
    %v1670 = vmul.f32 %v1286, %v1542
    %v1671 = vmul.f32 %v1287, %v1543
    %v1672 = vmul.f32 %v1288, %v1544
    %v1673 = vmul.f32 %v1289, %v1545
    %v1674 = vmul.f32 %v1290, %v1546
    %v1675 = vmul.f32 %v1291, %v1547
    %v1676 = vmul.f32 %v1292, %v1548
    %v1677 = vmul.f32 %v1293, %v1549
    %v1678 = vmul.f32 %v1294, %v1550
    %v1679 = vmul.f32 %v1295, %v1551
    %v1680 = vmul.f32 %v1296, %v1552
    %v1681 = vmul.f32 %v1297, %v1553
    %v1682 = vmul.f32 %v1298, %v1554
    %v1683 = vmul.f32 %v1299, %v1555
    %v1684 = vmul.f32 %v1300, %v1556
    %v1685 = vmul.f32 %v1301, %v1557
    %v1686 = vmul.f32 %v1302, %v1558
    %v1687 = vmul.f32 %v1303, %v1559
    %v1688 = vmul.f32 %v1304, %v1560
    %v1689 = vmul.f32 %v1305, %v1561
    %v1690 = vmul.f32 %v1306, %v1562
    %v1691 = vmul.f32 %v1307, %v1563
    %v1692 = vmul.f32 %v1308, %v1564
    %v1693 = vmul.f32 %v1309, %v1565
    %v1694 = vmul.f32 %v1310, %v1566
    %v1695 = vmul.f32 %v1311, %v1567
    %v1696 = vmul.f32 %v1312, %v1568
    %v1697 = vmul.f32 %v1313, %v1569
    %v1698 = vmul.f32 %v1314, %v1570
    %v1699 = vmul.f32 %v1315, %v1571
    %v1700 = vmul.f32 %v1316, %v1572
    %v1701 = vmul.f32 %v1317, %v1573
    %v1702 = vmul.f32 %v1318, %v1574
    %v1703 = vmul.f32 %v1319, %v1575
    %v1704 = vmul.f32 %v1320, %v1576
    %v1705 = vmul.f32 %v1321, %v1577
    %v1706 = vmul.f32 %v1322, %v1578
    %v1707 = vmul.f32 %v1323, %v1579
    %v1708 = vmul.f32 %v1324, %v1580
    %v1709 = vmul.f32 %v1325, %v1581
    %v1710 = vmul.f32 %v1326, %v1582
    %v1711 = vmul.f32 %v1327, %v1583
    %v1712 = vmul.f32 %v1328, %v1584
    %v1713 = vmul.f32 %v1329, %v1585
    %v1714 = vmul.f32 %v1330, %v1586
    %v1715 = vmul.f32 %v1331, %v1587
    %v1716 = vmul.f32 %v1332, %v1588
    %v1717 = vmul.f32 %v1333, %v1589
    %v1718 = vmul.f32 %v1334, %v1590
    %v1719 = vmul.f32 %v1335, %v1591
    %v1720 = vmul.f32 %v1336, %v1592
    %v1721 = vmul.f32 %v1337, %v1593
    %v1722 = vmul.f32 %v1338, %v1594
    %v1723 = vmul.f32 %v1339, %v1595
    %v1724 = vmul.f32 %v1340, %v1596
    %v1725 = vmul.f32 %v1341, %v1597
    %v1726 = vmul.f32 %v1342, %v1598
    %v1727 = vmul.f32 %v1343, %v1599
    %v1728 = vmul.f32 %v1344, %v1600
    %v1729 = vmul.f32 %v1345, %v1601
    %v1730 = vmul.f32 %v1346, %v1602
    %v1731 = vmul.f32 %v1347, %v1603
    %v1732 = vmul.f32 %v1348, %v1604
    %v1733 = vmul.f32 %v1349, %v1605
    %v1734 = vmul.f32 %v1350, %v1606
    %v1735 = vmul.f32 %v1351, %v1607
    %v1736 = vmul.f32 %v1352, %v1608
    %v1737 = vmul.f32 %v1353, %v1609
    %v1738 = vmul.f32 %v1354, %v1610
    %v1739 = vmul.f32 %v1355, %v1611
    %v1740 = vmul.f32 %v1356, %v1612
    %v1741 = vmul.f32 %v1357, %v1613
    %v1742 = vmul.f32 %v1358, %v1614
    %v1743 = vmul.f32 %v1359, %v1615
    %v1744 = vmul.f32 %v1360, %v1616
    %v1745 = vmul.f32 %v1361, %v1617
    %v1746 = vmul.f32 %v1362, %v1618
    %v1747 = vmul.f32 %v1363, %v1619
    %v1748 = vmul.f32 %v1364, %v1620
    %v1749 = vmul.f32 %v1365, %v1621
    %v1750 = vmul.f32 %v1366, %v1622
    %v1751 = vmul.f32 %v1367, %v1623
    %v1752 = vmul.f32 %v1368, %v1624
    %v1753 = vmul.f32 %v1369, %v1625
    %v1754 = vmul.f32 %v1370, %v1626
    %v1755 = vmul.f32 %v1371, %v1627
    %v1756 = vmul.f32 %v1372, %v1628
    %v1757 = vmul.f32 %v1373, %v1629
    %v1758 = vmul.f32 %v1374, %v1630
    %v1759 = vmul.f32 %v1375, %v1631
    %v1760 = vmul.f32 %v1376, %v1632
    %v1761 = vmul.f32 %v1377, %v1633
    %v1762 = vmul.f32 %v1378, %v1634
    %v1763 = vmul.f32 %v1379, %v1635
    %v1764 = vmul.f32 %v1380, %v1636
    %v1765 = vmul.f32 %v1381, %v1637
    %v1766 = vmul.f32 %v1382, %v1638
    %v1767 = vmul.f32 %v1383, %v1639
    %v1768 = vmul.f32 %v1384, %v1640
    %v1769 = vmul.f32 %v1385, %v1641
    %v1770 = vmul.f32 %v1386, %v1642
    %v1771 = vmul.f32 %v1387, %v1643
    %v1772 = vmul.f32 %v1388, %v1644
    %v1773 = vmul.f32 %v1389, %v1645
    %v1774 = vmul.f32 %v1390, %v1646
    %v1775 = vmul.f32 %v1391, %v1647
    %v1776 = vmul.f32 %v1392, %v1648
    %v1777 = vmul.f32 %v1393, %v1649
    %v1778 = vmul.f32 %v1394, %v1650
    %v1779 = vmul.f32 %v1395, %v1651
    %v1780 = vmul.f32 %v1396, %v1652
    %v1781 = vmul.f32 %v1397, %v1653
    %v1782 = vmul.f32 %v1398, %v1654
    %v1783 = vmul.f32 %v1399, %v1655
    %v1784 = vmul.f32 %v1400, %v1656
    %v1785 = vmul.f32 %v1401, %v1657
    %v1786 = vmul.f32 %v1402, %v1658
    %v1787 = vmul.f32 %v1403, %v1659
    %v1788 = vmul.f32 %v1404, %v1660
    %v1789 = vmul.f32 %v1405, %v1661
    %v1790 = vmul.f32 %v1406, %v1662
    %v1791 = vmul.f32 %v1407, %v1663
    %v1792 = vpack.c.bf16 %v1668, %v1664
    %v1793 = vpack.c.bf16 %v1669, %v1665
    %v1794 = vpack.c.bf16 %v1670, %v1666
    %v1795 = vpack.c.bf16 %v1671, %v1667
    %v1796 = vpack.c.bf16 %v1676, %v1672
    %v1797 = vpack.c.bf16 %v1677, %v1673
    %v1798 = vpack.c.bf16 %v1678, %v1674
    %v1799 = vpack.c.bf16 %v1679, %v1675
    %v1800 = vpack.c.bf16 %v1684, %v1680
    %v1801 = vpack.c.bf16 %v1685, %v1681
    %v1802 = vpack.c.bf16 %v1686, %v1682
    %v1803 = vpack.c.bf16 %v1687, %v1683
    %v1804 = vpack.c.bf16 %v1692, %v1688
    %v1805 = vpack.c.bf16 %v1693, %v1689
    %v1806 = vpack.c.bf16 %v1694, %v1690
    %v1807 = vpack.c.bf16 %v1695, %v1691
    %v1808 = vpack.c.bf16 %v1700, %v1696
    %v1809 = vpack.c.bf16 %v1701, %v1697
    %v1810 = vpack.c.bf16 %v1702, %v1698
    %v1811 = vpack.c.bf16 %v1703, %v1699
    %v1812 = vpack.c.bf16 %v1708, %v1704
    %v1813 = vpack.c.bf16 %v1709, %v1705
    %v1814 = vpack.c.bf16 %v1710, %v1706
    %v1815 = vpack.c.bf16 %v1711, %v1707
    %v1816 = vpack.c.bf16 %v1716, %v1712
    %v1817 = vpack.c.bf16 %v1717, %v1713
    %v1818 = vpack.c.bf16 %v1718, %v1714
    %v1819 = vpack.c.bf16 %v1719, %v1715
    %v1820 = vpack.c.bf16 %v1724, %v1720
    %v1821 = vpack.c.bf16 %v1725, %v1721
    %v1822 = vpack.c.bf16 %v1726, %v1722
    %v1823 = vpack.c.bf16 %v1727, %v1723
    %v1824 = vpack.c.bf16 %v1732, %v1728
    %v1825 = vpack.c.bf16 %v1733, %v1729
    %v1826 = vpack.c.bf16 %v1734, %v1730
    %v1827 = vpack.c.bf16 %v1735, %v1731
    %v1828 = vpack.c.bf16 %v1740, %v1736
    %v1829 = vpack.c.bf16 %v1741, %v1737
    %v1830 = vpack.c.bf16 %v1742, %v1738
    %v1831 = vpack.c.bf16 %v1743, %v1739
    %v1832 = vpack.c.bf16 %v1748, %v1744
    %v1833 = vpack.c.bf16 %v1749, %v1745
    %v1834 = vpack.c.bf16 %v1750, %v1746
    %v1835 = vpack.c.bf16 %v1751, %v1747
    %v1836 = vpack.c.bf16 %v1756, %v1752
    %v1837 = vpack.c.bf16 %v1757, %v1753
    %v1838 = vpack.c.bf16 %v1758, %v1754
    %v1839 = vpack.c.bf16 %v1759, %v1755
    %v1840 = vpack.c.bf16 %v1764, %v1760
    %v1841 = vpack.c.bf16 %v1765, %v1761
    %v1842 = vpack.c.bf16 %v1766, %v1762
    %v1843 = vpack.c.bf16 %v1767, %v1763
    %v1844 = vpack.c.bf16 %v1772, %v1768
    %v1845 = vpack.c.bf16 %v1773, %v1769
    %v1846 = vpack.c.bf16 %v1774, %v1770
    %v1847 = vpack.c.bf16 %v1775, %v1771
    %v1848 = vpack.c.bf16 %v1780, %v1776
    %v1849 = vpack.c.bf16 %v1781, %v1777
    %v1850 = vpack.c.bf16 %v1782, %v1778
    %v1851 = vpack.c.bf16 %v1783, %v1779
    %v1852 = vpack.c.bf16 %v1788, %v1784
    %v1853 = vpack.c.bf16 %v1789, %v1785
    %v1854 = vpack.c.bf16 %v1790, %v1786
    %v1855 = vpack.c.bf16 %v1791, %v1787
    %v1856 = vld [vmem:[#allocation8] sm:$0xf]
    %v1857 = vld [vmem:[#allocation8 + $0x4] sm:$0xf]
    %v1858 = vld [vmem:[#allocation8 + $0x8] sm:$0xf]
    %v1859 = vld [vmem:[#allocation8 + $0xc] sm:$0xf]
    %v1860 = vld [vmem:[#allocation8 + $0x10] sm:$0xf]
    %v1861 = vld [vmem:[#allocation8 + $0x14] sm:$0xf]
    %v1862 = vld [vmem:[#allocation8 + $0x18] sm:$0xf]
    %v1863 = vld [vmem:[#allocation8 + $0x1c] sm:$0xf]
    %v1864 = vld [vmem:[#allocation8 + $0x20] sm:$0xf]
    %v1865 = vld [vmem:[#allocation8 + $0x24] sm:$0xf]
    %v1866 = vld [vmem:[#allocation8 + $0x28] sm:$0xf]
    %v1867 = vld [vmem:[#allocation8 + $0x2c] sm:$0xf]
    %v1868 = vld [vmem:[#allocation8 + $0x30] sm:$0xf]
    %v1869 = vld [vmem:[#allocation8 + $0x34] sm:$0xf]
    %v1870 = vld [vmem:[#allocation8 + $0x38] sm:$0xf]
    %v1871 = vld [vmem:[#allocation8 + $0x3c] sm:$0xf]
    %v1872 = vld [vmem:[#allocation8 + $0x40] sm:$0xf]
    %v1873 = vld [vmem:[#allocation8 + $0x44] sm:$0xf]
    %v1874 = vld [vmem:[#allocation8 + $0x48] sm:$0xf]
    %v1875 = vld [vmem:[#allocation8 + $0x4c] sm:$0xf]
    %v1876 = vld [vmem:[#allocation8 + $0x50] sm:$0xf]
    %v1877 = vld [vmem:[#allocation8 + $0x54] sm:$0xf]
    %v1878 = vld [vmem:[#allocation8 + $0x58] sm:$0xf]
    %v1879 = vld [vmem:[#allocation8 + $0x5c] sm:$0xf]
    %v1880 = vld [vmem:[#allocation8 + $0x60] sm:$0xf]
    %v1881 = vld [vmem:[#allocation8 + $0x64] sm:$0xf]
    %v1882 = vld [vmem:[#allocation8 + $0x68] sm:$0xf]
    %v1883 = vld [vmem:[#allocation8 + $0x6c] sm:$0xf]
    %v1884 = vld [vmem:[#allocation8 + $0x70] sm:$0xf]
    %v1885 = vld [vmem:[#allocation8 + $0x74] sm:$0xf]
    %v1886 = vld [vmem:[#allocation8 + $0x78] sm:$0xf]
    %v1887 = vld [vmem:[#allocation8 + $0x7c] sm:$0xf]
    %v1888 = vld [vmem:[#allocation8 + $0x80] sm:$0xf]
    %v1889 = vld [vmem:[#allocation8 + $0x84] sm:$0xf]
    %v1890 = vld [vmem:[#allocation8 + $0x88] sm:$0xf]
    %v1891 = vld [vmem:[#allocation8 + $0x8c] sm:$0xf]
    %v1892 = vld [vmem:[#allocation8 + $0x90] sm:$0xf]
    %v1893 = vld [vmem:[#allocation8 + $0x94] sm:$0xf]
    %v1894 = vld [vmem:[#allocation8 + $0x98] sm:$0xf]
    %v1895 = vld [vmem:[#allocation8 + $0x9c] sm:$0xf]
    %v1896 = vld [vmem:[#allocation8 + $0xa0] sm:$0xf]
    %v1897 = vld [vmem:[#allocation8 + $0xa4] sm:$0xf]
    %v1898 = vld [vmem:[#allocation8 + $0xa8] sm:$0xf]
    %v1899 = vld [vmem:[#allocation8 + $0xac] sm:$0xf]
    %v1900 = vld [vmem:[#allocation8 + $0xb0] sm:$0xf]
    %v1901 = vld [vmem:[#allocation8 + $0xb4] sm:$0xf]
    %v1902 = vld [vmem:[#allocation8 + $0xb8] sm:$0xf]
    %v1903 = vld [vmem:[#allocation8 + $0xbc] sm:$0xf]
    %v1904 = vld [vmem:[#allocation8 + $0xc0] sm:$0xf]
    %v1905 = vld [vmem:[#allocation8 + $0xc4] sm:$0xf]
    %v1906 = vld [vmem:[#allocation8 + $0xc8] sm:$0xf]
    %v1907 = vld [vmem:[#allocation8 + $0xcc] sm:$0xf]
    %v1908 = vld [vmem:[#allocation8 + $0xd0] sm:$0xf]
    %v1909 = vld [vmem:[#allocation8 + $0xd4] sm:$0xf]
    %v1910 = vld [vmem:[#allocation8 + $0xd8] sm:$0xf]
    %v1911 = vld [vmem:[#allocation8 + $0xdc] sm:$0xf]
    %v1912 = vld [vmem:[#allocation8 + $0xe0] sm:$0xf]
    %v1913 = vld [vmem:[#allocation8 + $0xe4] sm:$0xf]
    %v1914 = vld [vmem:[#allocation8 + $0xe8] sm:$0xf]
    %v1915 = vld [vmem:[#allocation8 + $0xec] sm:$0xf]
    %v1916 = vld [vmem:[#allocation8 + $0xf0] sm:$0xf]
    %v1917 = vld [vmem:[#allocation8 + $0xf4] sm:$0xf]
    %v1918 = vld [vmem:[#allocation8 + $0xf8] sm:$0xf]
    %v1919 = vld [vmem:[#allocation8 + $0xfc] sm:$0xf]
    %v1920 = vld [vmem:[%s4] sm:$0x1]
    %v1922 = vperm.slane %v1920, 0
    %v1988 = vunpack.c.l.b16 %v1856
    %v1989 = vunpack.c.l.b16 %v1857
    %v1990 = vunpack.c.l.b16 %v1858
    %v1991 = vunpack.c.l.b16 %v1859
    %v1992 = vunpack.c.l.b16 %v1860
    %v1993 = vunpack.c.l.b16 %v1861
    %v1994 = vunpack.c.l.b16 %v1862
    %v1995 = vunpack.c.l.b16 %v1863
    %v1996 = vunpack.c.l.b16 %v1864
    %v1997 = vunpack.c.l.b16 %v1865
    %v1998 = vunpack.c.l.b16 %v1866
    %v1999 = vunpack.c.l.b16 %v1867
    %v2000 = vunpack.c.l.b16 %v1868
    %v2001 = vunpack.c.l.b16 %v1869
    %v2002 = vunpack.c.l.b16 %v1870
    %v2003 = vunpack.c.l.b16 %v1871
    %v2004 = vunpack.c.l.b16 %v1872
    %v2005 = vunpack.c.l.b16 %v1873
    %v2006 = vunpack.c.l.b16 %v1874
    %v2007 = vunpack.c.l.b16 %v1875
    %v2008 = vunpack.c.l.b16 %v1876
    %v2009 = vunpack.c.l.b16 %v1877
    %v2010 = vunpack.c.l.b16 %v1878
    %v2011 = vunpack.c.l.b16 %v1879
    %v2012 = vunpack.c.l.b16 %v1880
    %v2013 = vunpack.c.l.b16 %v1881
    %v2014 = vunpack.c.l.b16 %v1882
    %v2015 = vunpack.c.l.b16 %v1883
    %v2016 = vunpack.c.l.b16 %v1884
    %v2017 = vunpack.c.l.b16 %v1885
    %v2018 = vunpack.c.l.b16 %v1886
    %v2019 = vunpack.c.l.b16 %v1887
    %v2020 = vunpack.c.l.b16 %v1888
    %v2021 = vunpack.c.l.b16 %v1889
    %v2022 = vunpack.c.l.b16 %v1890
    %v2023 = vunpack.c.l.b16 %v1891
    %v2024 = vunpack.c.l.b16 %v1892
    %v2025 = vunpack.c.l.b16 %v1893
    %v2026 = vunpack.c.l.b16 %v1894
    %v2027 = vunpack.c.l.b16 %v1895
    %v2028 = vunpack.c.l.b16 %v1896
    %v2029 = vunpack.c.l.b16 %v1897
    %v2030 = vunpack.c.l.b16 %v1898
    %v2031 = vunpack.c.l.b16 %v1899
    %v2032 = vunpack.c.l.b16 %v1900
    %v2033 = vunpack.c.l.b16 %v1901
    %v2034 = vunpack.c.l.b16 %v1902
    %v2035 = vunpack.c.l.b16 %v1903
    %v2036 = vunpack.c.l.b16 %v1904
    %v2037 = vunpack.c.l.b16 %v1905
    %v2038 = vunpack.c.l.b16 %v1906
    %v2039 = vunpack.c.l.b16 %v1907
    %v2040 = vunpack.c.l.b16 %v1908
    %v2041 = vunpack.c.l.b16 %v1909
    %v2042 = vunpack.c.l.b16 %v1910
    %v2043 = vunpack.c.l.b16 %v1911
    %v2044 = vunpack.c.l.b16 %v1912
    %v2045 = vunpack.c.l.b16 %v1913
    %v2046 = vunpack.c.l.b16 %v1914
    %v2047 = vunpack.c.l.b16 %v1915
    %v2048 = vunpack.c.l.b16 %v1916
    %v2049 = vunpack.c.l.b16 %v1917
    %v2050 = vunpack.c.l.b16 %v1918
    %v2051 = vunpack.c.l.b16 %v1919
    %v2052 = vpack.c.b16 %v1989, %v1988
    %v2053 = vpack.c.b16 %v1991, %v1990
    %v2054 = vpack.c.b16 %v1993, %v1992
    %v2055 = vpack.c.b16 %v1995, %v1994
    %v2056 = vpack.c.b16 %v1997, %v1996
    %v2057 = vpack.c.b16 %v1999, %v1998
    %v2058 = vpack.c.b16 %v2001, %v2000
    %v2059 = vpack.c.b16 %v2003, %v2002
    %v2060 = vpack.c.b16 %v2005, %v2004
    %v2061 = vpack.c.b16 %v2007, %v2006
    %v2062 = vpack.c.b16 %v2009, %v2008
    %v2063 = vpack.c.b16 %v2011, %v2010
    %v2064 = vpack.c.b16 %v2013, %v2012
    %v2065 = vpack.c.b16 %v2015, %v2014
    %v2066 = vpack.c.b16 %v2017, %v2016
    %v2067 = vpack.c.b16 %v2019, %v2018
    %v2068 = vpack.c.b16 %v2021, %v2020
    %v2069 = vpack.c.b16 %v2023, %v2022
    %v2070 = vpack.c.b16 %v2025, %v2024
    %v2071 = vpack.c.b16 %v2027, %v2026
    %v2072 = vpack.c.b16 %v2029, %v2028
    %v2073 = vpack.c.b16 %v2031, %v2030
    %v2074 = vpack.c.b16 %v2033, %v2032
    %v2075 = vpack.c.b16 %v2035, %v2034
    %v2076 = vpack.c.b16 %v2037, %v2036
    %v2077 = vpack.c.b16 %v2039, %v2038
    %v2078 = vpack.c.b16 %v2041, %v2040
    %v2079 = vpack.c.b16 %v2043, %v2042
    %v2080 = vpack.c.b16 %v2045, %v2044
    %v2081 = vpack.c.b16 %v2047, %v2046
    %v2082 = vpack.c.b16 %v2049, %v2048
    %v2083 = vpack.c.b16 %v2051, %v2050
    %2116 = vmatpush.bf16.msra.mxu0 %v2059
    %2117 = vmatpush.bf16.msra.mxu0 %v2058
    %2118 = vmatpush.bf16.msra.mxu0 %v2057
    %2119 = vmatpush.bf16.msra.mxu0 %v2056
    %2120 = vmatpush.bf16.msra.mxu0 %v2055
    %2121 = vmatpush.bf16.msra.mxu0 %v2054
    %2122 = vmatpush.bf16.msra.mxu0 %v2053
    %2123 = vmatpush.bf16.msra.mxu0 %v2052
    %2124 = vmatmul.bf16.gmra.mxu0 %v1792
    %v2125 = vpop.f32.mrf.mxu0
    %v2126 = vadd.f32 %v1922, %v2125
    %v2127 = vpop.f32.mrf.mxu0
    %v2128 = vadd.f32 %v1922, %v2127
    %2129 = vmatmul.bf16.gmra.mxu0 %v1796
    %v2130 = vpop.f32.mrf.mxu0
    %v2131 = vadd.f32 %v1922, %v2130
    %v2132 = vpop.f32.mrf.mxu0
    %v2133 = vadd.f32 %v1922, %v2132
    %2134 = vmatmul.bf16.gmra.mxu0 %v1800
    %v2135 = vpop.f32.mrf.mxu0
    %v2136 = vadd.f32 %v1922, %v2135
    %v2137 = vpop.f32.mrf.mxu0
    %v2138 = vadd.f32 %v1922, %v2137
    %2139 = vmatmul.bf16.gmra.mxu0 %v1804
    %v2140 = vpop.f32.mrf.mxu0
    %v2141 = vadd.f32 %v1922, %v2140
    %v2142 = vpop.f32.mrf.mxu0
    %v2143 = vadd.f32 %v1922, %v2142
    %2144 = vmatmul.bf16.gmra.mxu0 %v1808
    %v2145 = vpop.f32.mrf.mxu0
    %v2146 = vadd.f32 %v1922, %v2145
    %v2147 = vpop.f32.mrf.mxu0
    %v2148 = vadd.f32 %v1922, %v2147
    %2149 = vmatmul.bf16.gmra.mxu0 %v1812
    %v2150 = vpop.f32.mrf.mxu0
    %v2151 = vadd.f32 %v1922, %v2150
    %v2152 = vpop.f32.mrf.mxu0
    %v2153 = vadd.f32 %v1922, %v2152
    %2154 = vmatmul.bf16.gmra.mxu0 %v1816
    %v2155 = vpop.f32.mrf.mxu0
    %v2156 = vadd.f32 %v1922, %v2155
    %v2157 = vpop.f32.mrf.mxu0
    %v2158 = vadd.f32 %v1922, %v2157
    %2159 = vmatmul.bf16.gmra.mxu0 %v1820
    %v2160 = vpop.f32.mrf.mxu0
    %v2161 = vadd.f32 %v1922, %v2160
    %v2162 = vpop.f32.mrf.mxu0
    %v2163 = vadd.f32 %v1922, %v2162
    %2164 = vmatmul.bf16.gmra.mxu0 %v1824
    %v2165 = vpop.f32.mrf.mxu0
    %v2166 = vadd.f32 %v1922, %v2165
    %v2167 = vpop.f32.mrf.mxu0
    %v2168 = vadd.f32 %v1922, %v2167
    %2169 = vmatmul.bf16.gmra.mxu0 %v1828
    %v2170 = vpop.f32.mrf.mxu0
    %v2171 = vadd.f32 %v1922, %v2170
    %v2172 = vpop.f32.mrf.mxu0
    %v2173 = vadd.f32 %v1922, %v2172
    %2174 = vmatmul.bf16.gmra.mxu0 %v1832
    %v2175 = vpop.f32.mrf.mxu0
    %v2176 = vadd.f32 %v1922, %v2175
    %v2177 = vpop.f32.mrf.mxu0
    %v2178 = vadd.f32 %v1922, %v2177
    %2179 = vmatmul.bf16.gmra.mxu0 %v1836
    %v2180 = vpop.f32.mrf.mxu0
    %v2181 = vadd.f32 %v1922, %v2180
    %v2182 = vpop.f32.mrf.mxu0
    %v2183 = vadd.f32 %v1922, %v2182
    %2184 = vmatmul.bf16.gmra.mxu0 %v1840
    %v2185 = vpop.f32.mrf.mxu0
    %v2186 = vadd.f32 %v1922, %v2185
    %v2187 = vpop.f32.mrf.mxu0
    %v2188 = vadd.f32 %v1922, %v2187
    %2189 = vmatmul.bf16.gmra.mxu0 %v1844
    %v2190 = vpop.f32.mrf.mxu0
    %v2191 = vadd.f32 %v1922, %v2190
    %v2192 = vpop.f32.mrf.mxu0
    %v2193 = vadd.f32 %v1922, %v2192
    %2194 = vmatmul.bf16.gmra.mxu0 %v1848
    %v2195 = vpop.f32.mrf.mxu0
    %v2196 = vadd.f32 %v1922, %v2195
    %v2197 = vpop.f32.mrf.mxu0
    %v2198 = vadd.f32 %v1922, %v2197
    %2199 = vmatmul.bf16.gmra.mxu0 %v1852
    %v2200 = vpop.f32.mrf.mxu0
    %v2201 = vadd.f32 %v1922, %v2200
    %v2202 = vpop.f32.mrf.mxu0
    %v2203 = vadd.f32 %v1922, %v2202
    %2204 = vdwg.mxu0
    %2205 = vmatpush.bf16.msra.mxu0 %v2067
    %2206 = vmatpush.bf16.msra.mxu0 %v2066
    %2207 = vmatpush.bf16.msra.mxu0 %v2065
    %2208 = vmatpush.bf16.msra.mxu0 %v2064
    %2209 = vmatpush.bf16.msra.mxu0 %v2063
    %2210 = vmatpush.bf16.msra.mxu0 %v2062
    %2211 = vmatpush.bf16.msra.mxu0 %v2061
    %2212 = vmatpush.bf16.msra.mxu0 %v2060
    %2213 = vmatmul.bf16.gmra.mxu0 %v1793
    %v2214 = vpop.f32.mrf.mxu0
    %v2215 = vadd.f32 %v2126, %v2214
    %v2216 = vpop.f32.mrf.mxu0
    %v2217 = vadd.f32 %v2128, %v2216
    %2218 = vmatmul.bf16.gmra.mxu0 %v1797
    %v2219 = vpop.f32.mrf.mxu0
    %v2220 = vadd.f32 %v2131, %v2219
    %v2221 = vpop.f32.mrf.mxu0
    %v2222 = vadd.f32 %v2133, %v2221
    %2223 = vmatmul.bf16.gmra.mxu0 %v1801
    %v2224 = vpop.f32.mrf.mxu0
    %v2225 = vadd.f32 %v2136, %v2224
    %v2226 = vpop.f32.mrf.mxu0
    %v2227 = vadd.f32 %v2138, %v2226
    %2228 = vmatmul.bf16.gmra.mxu0 %v1805
    %v2229 = vpop.f32.mrf.mxu0
    %v2230 = vadd.f32 %v2141, %v2229
    %v2231 = vpop.f32.mrf.mxu0
    %v2232 = vadd.f32 %v2143, %v2231
    %2233 = vmatmul.bf16.gmra.mxu0 %v1809
    %v2234 = vpop.f32.mrf.mxu0
    %v2235 = vadd.f32 %v2146, %v2234
    %v2236 = vpop.f32.mrf.mxu0
    %v2237 = vadd.f32 %v2148, %v2236
    %2238 = vmatmul.bf16.gmra.mxu0 %v1813
    %v2239 = vpop.f32.mrf.mxu0
    %v2240 = vadd.f32 %v2151, %v2239
    %v2241 = vpop.f32.mrf.mxu0
    %v2242 = vadd.f32 %v2153, %v2241
    %2243 = vmatmul.bf16.gmra.mxu0 %v1817
    %v2244 = vpop.f32.mrf.mxu0
    %v2245 = vadd.f32 %v2156, %v2244
    %v2246 = vpop.f32.mrf.mxu0
    %v2247 = vadd.f32 %v2158, %v2246
    %2248 = vmatmul.bf16.gmra.mxu0 %v1821
    %v2249 = vpop.f32.mrf.mxu0
    %v2250 = vadd.f32 %v2161, %v2249
    %v2251 = vpop.f32.mrf.mxu0
    %v2252 = vadd.f32 %v2163, %v2251
    %2253 = vmatmul.bf16.gmra.mxu0 %v1825
    %v2254 = vpop.f32.mrf.mxu0
    %v2255 = vadd.f32 %v2166, %v2254
    %v2256 = vpop.f32.mrf.mxu0
    %v2257 = vadd.f32 %v2168, %v2256
    %2258 = vmatmul.bf16.gmra.mxu0 %v1829
    %v2259 = vpop.f32.mrf.mxu0
    %v2260 = vadd.f32 %v2171, %v2259
    %v2261 = vpop.f32.mrf.mxu0
    %v2262 = vadd.f32 %v2173, %v2261
    %2263 = vmatmul.bf16.gmra.mxu0 %v1833
    %v2264 = vpop.f32.mrf.mxu0
    %v2265 = vadd.f32 %v2176, %v2264
    %v2266 = vpop.f32.mrf.mxu0
    %v2267 = vadd.f32 %v2178, %v2266
    %2268 = vmatmul.bf16.gmra.mxu0 %v1837
    %v2269 = vpop.f32.mrf.mxu0
    %v2270 = vadd.f32 %v2181, %v2269
    %v2271 = vpop.f32.mrf.mxu0
    %v2272 = vadd.f32 %v2183, %v2271
    %2273 = vmatmul.bf16.gmra.mxu0 %v1841
    %v2274 = vpop.f32.mrf.mxu0
    %v2275 = vadd.f32 %v2186, %v2274
    %v2276 = vpop.f32.mrf.mxu0
    %v2277 = vadd.f32 %v2188, %v2276
    %2278 = vmatmul.bf16.gmra.mxu0 %v1845
    %v2279 = vpop.f32.mrf.mxu0
    %v2280 = vadd.f32 %v2191, %v2279
    %v2281 = vpop.f32.mrf.mxu0
    %v2282 = vadd.f32 %v2193, %v2281
    %2283 = vmatmul.bf16.gmra.mxu0 %v1849
    %v2284 = vpop.f32.mrf.mxu0
    %v2285 = vadd.f32 %v2196, %v2284
    %v2286 = vpop.f32.mrf.mxu0
    %v2287 = vadd.f32 %v2198, %v2286
    %2288 = vmatmul.bf16.gmra.mxu0 %v1853
    %v2289 = vpop.f32.mrf.mxu0
    %v2290 = vadd.f32 %v2201, %v2289
    %v2291 = vpop.f32.mrf.mxu0
    %v2292 = vadd.f32 %v2203, %v2291
    %2293 = vdwg.mxu0
    %2294 = vmatpush.bf16.msra.mxu0 %v2075
    %2295 = vmatpush.bf16.msra.mxu0 %v2074
    %2296 = vmatpush.bf16.msra.mxu0 %v2073
    %2297 = vmatpush.bf16.msra.mxu0 %v2072
    %2298 = vmatpush.bf16.msra.mxu0 %v2071
    %2299 = vmatpush.bf16.msra.mxu0 %v2070
    %2300 = vmatpush.bf16.msra.mxu0 %v2069
    %2301 = vmatpush.bf16.msra.mxu0 %v2068
    %2302 = vmatmul.bf16.gmra.mxu0 %v1794
    %v2303 = vpop.f32.mrf.mxu0
    %v2304 = vadd.f32 %v2215, %v2303
    %v2305 = vpop.f32.mrf.mxu0
    %v2306 = vadd.f32 %v2217, %v2305
    %2307 = vmatmul.bf16.gmra.mxu0 %v1798
    %v2308 = vpop.f32.mrf.mxu0
    %v2309 = vadd.f32 %v2220, %v2308
    %v2310 = vpop.f32.mrf.mxu0
    %v2311 = vadd.f32 %v2222, %v2310
    %2312 = vmatmul.bf16.gmra.mxu0 %v1802
    %v2313 = vpop.f32.mrf.mxu0
    %v2314 = vadd.f32 %v2225, %v2313
    %v2315 = vpop.f32.mrf.mxu0
    %v2316 = vadd.f32 %v2227, %v2315
    %2317 = vmatmul.bf16.gmra.mxu0 %v1806
    %v2318 = vpop.f32.mrf.mxu0
    %v2319 = vadd.f32 %v2230, %v2318
    %v2320 = vpop.f32.mrf.mxu0
    %v2321 = vadd.f32 %v2232, %v2320
    %2322 = vmatmul.bf16.gmra.mxu0 %v1810
    %v2323 = vpop.f32.mrf.mxu0
    %v2324 = vadd.f32 %v2235, %v2323
    %v2325 = vpop.f32.mrf.mxu0
    %v2326 = vadd.f32 %v2237, %v2325
    %2327 = vmatmul.bf16.gmra.mxu0 %v1814
    %v2328 = vpop.f32.mrf.mxu0
    %v2329 = vadd.f32 %v2240, %v2328
    %v2330 = vpop.f32.mrf.mxu0
    %v2331 = vadd.f32 %v2242, %v2330
    %2332 = vmatmul.bf16.gmra.mxu0 %v1818
    %v2333 = vpop.f32.mrf.mxu0
    %v2334 = vadd.f32 %v2245, %v2333
    %v2335 = vpop.f32.mrf.mxu0
    %v2336 = vadd.f32 %v2247, %v2335
    %2337 = vmatmul.bf16.gmra.mxu0 %v1822
    %v2338 = vpop.f32.mrf.mxu0
    %v2339 = vadd.f32 %v2250, %v2338
    %v2340 = vpop.f32.mrf.mxu0
    %v2341 = vadd.f32 %v2252, %v2340
    %2342 = vmatmul.bf16.gmra.mxu0 %v1826
    %v2343 = vpop.f32.mrf.mxu0
    %v2344 = vadd.f32 %v2255, %v2343
    %v2345 = vpop.f32.mrf.mxu0
    %v2346 = vadd.f32 %v2257, %v2345
    %2347 = vmatmul.bf16.gmra.mxu0 %v1830
    %v2348 = vpop.f32.mrf.mxu0
    %v2349 = vadd.f32 %v2260, %v2348
    %v2350 = vpop.f32.mrf.mxu0
    %v2351 = vadd.f32 %v2262, %v2350
    %2352 = vmatmul.bf16.gmra.mxu0 %v1834
    %v2353 = vpop.f32.mrf.mxu0
    %v2354 = vadd.f32 %v2265, %v2353
    %v2355 = vpop.f32.mrf.mxu0
    %v2356 = vadd.f32 %v2267, %v2355
    %2357 = vmatmul.bf16.gmra.mxu0 %v1838
    %v2358 = vpop.f32.mrf.mxu0
    %v2359 = vadd.f32 %v2270, %v2358
    %v2360 = vpop.f32.mrf.mxu0
    %v2361 = vadd.f32 %v2272, %v2360
    %2362 = vmatmul.bf16.gmra.mxu0 %v1842
    %v2363 = vpop.f32.mrf.mxu0
    %v2364 = vadd.f32 %v2275, %v2363
    %v2365 = vpop.f32.mrf.mxu0
    %v2366 = vadd.f32 %v2277, %v2365
    %2367 = vmatmul.bf16.gmra.mxu0 %v1846
    %v2368 = vpop.f32.mrf.mxu0
    %v2369 = vadd.f32 %v2280, %v2368
    %v2370 = vpop.f32.mrf.mxu0
    %v2371 = vadd.f32 %v2282, %v2370
    %2372 = vmatmul.bf16.gmra.mxu0 %v1850
    %v2373 = vpop.f32.mrf.mxu0
    %v2374 = vadd.f32 %v2285, %v2373
    %v2375 = vpop.f32.mrf.mxu0
    %v2376 = vadd.f32 %v2287, %v2375
    %2377 = vmatmul.bf16.gmra.mxu0 %v1854
    %v2378 = vpop.f32.mrf.mxu0
    %v2379 = vadd.f32 %v2290, %v2378
    %v2380 = vpop.f32.mrf.mxu0
    %v2381 = vadd.f32 %v2292, %v2380
    %2382 = vdwg.mxu0
    %2383 = vmatpush.bf16.msra.mxu0 %v2083
    %2384 = vmatpush.bf16.msra.mxu0 %v2082
    %2385 = vmatpush.bf16.msra.mxu0 %v2081
    %2386 = vmatpush.bf16.msra.mxu0 %v2080
    %2387 = vmatpush.bf16.msra.mxu0 %v2079
    %2388 = vmatpush.bf16.msra.mxu0 %v2078
    %2389 = vmatpush.bf16.msra.mxu0 %v2077
    %2390 = vmatpush.bf16.msra.mxu0 %v2076
    %2391 = vmatmul.bf16.gmra.mxu0 %v1795
    %v2392 = vpop.f32.mrf.mxu0
    %v2393 = vadd.f32 %v2304, %v2392
    %v2394 = vpop.f32.mrf.mxu0
    %v2395 = vadd.f32 %v2306, %v2394
    %2396 = vmatmul.bf16.gmra.mxu0 %v1799
    %v2397 = vpop.f32.mrf.mxu0
    %v2398 = vadd.f32 %v2309, %v2397
    %v2399 = vpop.f32.mrf.mxu0
    %v2400 = vadd.f32 %v2311, %v2399
    %2401 = vmatmul.bf16.gmra.mxu0 %v1803
    %v2402 = vpop.f32.mrf.mxu0
    %v2403 = vadd.f32 %v2314, %v2402
    %v2404 = vpop.f32.mrf.mxu0
    %v2405 = vadd.f32 %v2316, %v2404
    %2406 = vmatmul.bf16.gmra.mxu0 %v1807
    %v2407 = vpop.f32.mrf.mxu0
    %v2408 = vadd.f32 %v2319, %v2407
    %v2409 = vpop.f32.mrf.mxu0
    %v2410 = vadd.f32 %v2321, %v2409
    %2411 = vmatmul.bf16.gmra.mxu0 %v1811
    %v2412 = vpop.f32.mrf.mxu0
    %v2413 = vadd.f32 %v2324, %v2412
    %v2414 = vpop.f32.mrf.mxu0
    %v2415 = vadd.f32 %v2326, %v2414
    %2416 = vmatmul.bf16.gmra.mxu0 %v1815
    %v2417 = vpop.f32.mrf.mxu0
    %v2418 = vadd.f32 %v2329, %v2417
    %v2419 = vpop.f32.mrf.mxu0
    %v2420 = vadd.f32 %v2331, %v2419
    %2421 = vmatmul.bf16.gmra.mxu0 %v1819
    %v2422 = vpop.f32.mrf.mxu0
    %v2423 = vadd.f32 %v2334, %v2422
    %v2424 = vpop.f32.mrf.mxu0
    %v2425 = vadd.f32 %v2336, %v2424
    %2426 = vmatmul.bf16.gmra.mxu0 %v1823
    %v2427 = vpop.f32.mrf.mxu0
    %v2428 = vadd.f32 %v2339, %v2427
    %v2429 = vpop.f32.mrf.mxu0
    %v2430 = vadd.f32 %v2341, %v2429
    %2431 = vmatmul.bf16.gmra.mxu0 %v1827
    %v2432 = vpop.f32.mrf.mxu0
    %v2433 = vadd.f32 %v2344, %v2432
    %v2434 = vpop.f32.mrf.mxu0
    %v2435 = vadd.f32 %v2346, %v2434
    %2436 = vmatmul.bf16.gmra.mxu0 %v1831
    %v2437 = vpop.f32.mrf.mxu0
    %v2438 = vadd.f32 %v2349, %v2437
    %v2439 = vpop.f32.mrf.mxu0
    %v2440 = vadd.f32 %v2351, %v2439
    %2441 = vmatmul.bf16.gmra.mxu0 %v1835
    %v2442 = vpop.f32.mrf.mxu0
    %v2443 = vadd.f32 %v2354, %v2442
    %v2444 = vpop.f32.mrf.mxu0
    %v2445 = vadd.f32 %v2356, %v2444
    %2446 = vmatmul.bf16.gmra.mxu0 %v1839
    %v2447 = vpop.f32.mrf.mxu0
    %v2448 = vadd.f32 %v2359, %v2447
    %v2449 = vpop.f32.mrf.mxu0
    %v2450 = vadd.f32 %v2361, %v2449
    %2451 = vmatmul.bf16.gmra.mxu0 %v1843
    %v2452 = vpop.f32.mrf.mxu0
    %v2453 = vadd.f32 %v2364, %v2452
    %v2454 = vpop.f32.mrf.mxu0
    %v2455 = vadd.f32 %v2366, %v2454
    %2456 = vmatmul.bf16.gmra.mxu0 %v1847
    %v2457 = vpop.f32.mrf.mxu0
    %v2458 = vadd.f32 %v2369, %v2457
    %v2459 = vpop.f32.mrf.mxu0
    %v2460 = vadd.f32 %v2371, %v2459
    %2461 = vmatmul.bf16.gmra.mxu0 %v1851
    %v2462 = vpop.f32.mrf.mxu0
    %v2463 = vadd.f32 %v2374, %v2462
    %v2464 = vpop.f32.mrf.mxu0
    %v2465 = vadd.f32 %v2376, %v2464
    %2466 = vmatmul.bf16.gmra.mxu0 %v1855
    %v2467 = vpop.f32.mrf.mxu0
    %v2468 = vadd.f32 %v2379, %v2467
    %v2469 = vpop.f32.mrf.mxu0
    %v2470 = vadd.f32 %v2381, %v2469
    %2471 = vdwg.mxu0
    %v2472 = vpack.c.bf16 %v2393, %v2393
    %v2473 = vpack.c.bf16 %v2395, %v2395
    %v2474 = vpack.c.bf16 %v2398, %v2398
    %v2475 = vpack.c.bf16 %v2400, %v2400
    %v2476 = vpack.c.bf16 %v2403, %v2403
    %v2477 = vpack.c.bf16 %v2405, %v2405
    %v2478 = vpack.c.bf16 %v2408, %v2408
    %v2479 = vpack.c.bf16 %v2410, %v2410
    %v2480 = vpack.c.bf16 %v2413, %v2413
    %v2481 = vpack.c.bf16 %v2415, %v2415
    %v2482 = vpack.c.bf16 %v2418, %v2418
    %v2483 = vpack.c.bf16 %v2420, %v2420
    %v2484 = vpack.c.bf16 %v2423, %v2423
    %v2485 = vpack.c.bf16 %v2425, %v2425
    %v2486 = vpack.c.bf16 %v2428, %v2428
    %v2487 = vpack.c.bf16 %v2430, %v2430
    %v2488 = vpack.c.bf16 %v2433, %v2433
    %v2489 = vpack.c.bf16 %v2435, %v2435
    %v2490 = vpack.c.bf16 %v2438, %v2438
    %v2491 = vpack.c.bf16 %v2440, %v2440
    %v2492 = vpack.c.bf16 %v2443, %v2443
    %v2493 = vpack.c.bf16 %v2445, %v2445
    %v2494 = vpack.c.bf16 %v2448, %v2448
    %v2495 = vpack.c.bf16 %v2450, %v2450
    %v2496 = vpack.c.bf16 %v2453, %v2453
    %v2497 = vpack.c.bf16 %v2455, %v2455
    %v2498 = vpack.c.bf16 %v2458, %v2458
    %v2499 = vpack.c.bf16 %v2460, %v2460
    %v2500 = vpack.c.bf16 %v2463, %v2463
    %v2501 = vpack.c.bf16 %v2465, %v2465
    %v2502 = vpack.c.bf16 %v2468, %v2468
    %v2503 = vpack.c.bf16 %v2470, %v2470
    %2504 = vst [vmem:[#allocation10] sm:$0xf] %v2472
    %2505 = vst [vmem:[#allocation10 + $0x4] sm:$0xf] %v2473
    %2506 = vst [vmem:[#allocation10 + $0x8] sm:$0xf] %v2474
    %2507 = vst [vmem:[#allocation10 + $0xc] sm:$0xf] %v2475
    %2508 = vst [vmem:[#allocation10 + $0x10] sm:$0xf] %v2476
    %2509 = vst [vmem:[#allocation10 + $0x14] sm:$0xf] %v2477
    %2510 = vst [vmem:[#allocation10 + $0x18] sm:$0xf] %v2478
    %2511 = vst [vmem:[#allocation10 + $0x1c] sm:$0xf] %v2479
    %2512 = vst [vmem:[#allocation10 + $0x20] sm:$0xf] %v2480
    %2513 = vst [vmem:[#allocation10 + $0x24] sm:$0xf] %v2481
    %2514 = vst [vmem:[#allocation10 + $0x28] sm:$0xf] %v2482
    %2515 = vst [vmem:[#allocation10 + $0x2c] sm:$0xf] %v2483
    %2516 = vst [vmem:[#allocation10 + $0x30] sm:$0xf] %v2484
    %2517 = vst [vmem:[#allocation10 + $0x34] sm:$0xf] %v2485
    %2518 = vst [vmem:[#allocation10 + $0x38] sm:$0xf] %v2486
    %2519 = vst [vmem:[#allocation10 + $0x3c] sm:$0xf] %v2487
    %2520 = vst [vmem:[#allocation10 + $0x40] sm:$0xf] %v2488
    %2521 = vst [vmem:[#allocation10 + $0x44] sm:$0xf] %v2489
    %2522 = vst [vmem:[#allocation10 + $0x48] sm:$0xf] %v2490
    %2523 = vst [vmem:[#allocation10 + $0x4c] sm:$0xf] %v2491
    %2524 = vst [vmem:[#allocation10 + $0x50] sm:$0xf] %v2492
    %2525 = vst [vmem:[#allocation10 + $0x54] sm:$0xf] %v2493
    %2526 = vst [vmem:[#allocation10 + $0x58] sm:$0xf] %v2494
    %2527 = vst [vmem:[#allocation10 + $0x5c] sm:$0xf] %v2495
    %2528 = vst [vmem:[#allocation10 + $0x60] sm:$0xf] %v2496
    %2529 = vst [vmem:[#allocation10 + $0x64] sm:$0xf] %v2497
    %2530 = vst [vmem:[#allocation10 + $0x68] sm:$0xf] %v2498
    %2531 = vst [vmem:[#allocation10 + $0x6c] sm:$0xf] %v2499
    %2532 = vst [vmem:[#allocation10 + $0x70] sm:$0xf] %v2500
    %2533 = vst [vmem:[#allocation10 + $0x74] sm:$0xf] %v2501
    %2534 = vst [vmem:[#allocation10 + $0x78] sm:$0xf] %v2502
    %2535 = vst [vmem:[#allocation10 + $0x7c] sm:$0xf] %v2503
    // Predicated region
    $region38: #{tpu_custom_call.1} parent=1 // pred_check
      _
    $region39: #{tpu_custom_call.1} parent=1 // pred_check_branch
      %2537 = sbr.rel (0) target = $region41
    $region40: #{tpu_custom_call.1} parent=1 // pred_region
      %2539 = vsyncadd [#allocation4], 0
      %s2540 = sshll.u32 [#allocation10], 4
      %s2541 = int_to_ptr.vmem [resolvable:$true] %s2540
      %s2542 = sshll.u32 %s5, 4
      %s2543 = int_to_ptr.hbm [resolvable:$true] %s2542
      %2548 = dma.vmem_to_hbm [thread:$0]  %s2541, 2048, %s2543, [#allocation4], 64, 64, 4
    $region41: #{tpu_custom_call.1} parent=1 // pred_fallthru
      _
    // Predicated region
    $region42: #{tpu_custom_call.1} parent=1 // pred_check
      _
    $region43: #{tpu_custom_call.1} parent=1 // pred_check_branch
      %2550 = sbr.rel (0) target = $region45
    $region44: #{tpu_custom_call.1} parent=1 // pred_region
      %2552 = dma.done [#allocation4], 2048
    $region45: #{tpu_custom_call.1} parent=1 // pred_fallthru
      _
    %2553 = vsyncpa [#allocation3], 1
    %2554 = vsyncpa [#allocation6], 1
    %2555 = vsyncpa [#allocation9], 1
    %2556 = vsyncpa [#allocation4], 1

// kernel: tpu_custom_call.1
$region0: #{tpu_custom_call.1}
  #allocation0 [shape = 'u32[]', space=smem, size = 0x4, offset = 0x4, fixed_abs, tag = 'smem constant byte address 0x4 - core index']
  #allocation1 [shape = 'u32[72,128]{1,0:T(1,128)}', space=vmem, size = 0x9000, scoped, tag = 'internal scratch']
  %s0 = inlined_call_operand.hbm [shape: bf16[256,128], index: 0, kind: input, shape index: {}]
  %s1 = inlined_call_operand.hbm [shape: bf16[128,512], index: 1, kind: input, shape index: {}]
  %s2 = inlined_call_operand.hbm [shape: f32[1,512], index: 2, kind: input, shape index: {}]
  %s3 = inlined_call_operand.hbm [shape: bf16[512,128], index: 3, kind: input, shape index: {}]
  %s4 = inlined_call_operand.vmem [shape: f32[1,128], index: 4, kind: input, shape index: {}]
  %s5 = inlined_call_operand.hbm [shape: bf16[256,128], index: 5, kind: output, shape index: {}]
  %s6 = sld [smem:[#allocation0]]
  $region46: #{tpu_custom_call.1} parent=0
    _
  %s8 = ssub.s32 1, %s6
  %s9 = scalar_select 0, %s8, %s6
  $region1: #{tpu_custom_call.1} parent=0
    #allocation2 [shape = 'u8[65536]{0}', space=vmem, size = 0x10000, scoped, tag = 'input window, operand 0, single buffered']
    #allocation3 [shape = 's32[1]{0}', space=sflag, size = 0x4, scoped, tag = 'scoped memory for tpu_custom_call.1']
    #allocation4 [shape = 's32[1]{0}', space=sflag, size = 0x4, scoped, tag = 'scoped memory for tpu_custom_call.1']
    #allocation5 [shape = 'u8[131072]{0}', space=vmem, size = 0x20000, scoped, tag = 'input window, operand 1, single buffered']
    #allocation6 [shape = 's32[1]{0}', space=sflag, size = 0x4, scoped, tag = 'scoped memory for tpu_custom_call.1']
    #allocation7 [shape = 'u8[2048]{0}', space=vmem, size = 0x800, scoped, tag = 'input window, operand 2, single buffered']
    #allocation8 [shape = 'u8[131072]{0}', space=vmem, size = 0x20000, scoped, tag = 'input window, operand 3, single buffered']
    #allocation9 [shape = 's32[1]{0}', space=sflag, size = 0x4, scoped, tag = 'scoped memory for tpu_custom_call.1']
    #allocation10 [shape = 'u8[65536]{0}', space=vmem, size = 0x10000, scoped, tag = 'output window, operand 0, single buffered']
    %10 = vsyncpa [#allocation3], 0
    %11 = vsyncpa [#allocation6], 0
    %12 = vsyncpa [#allocation9], 0
    %13 = vsyncpa [#allocation4], 0
    // Predicated region
    $region2: #{tpu_custom_call.1} parent=1 // pred_check
      _
    $region3: #{tpu_custom_call.1} parent=1 // pred_check_branch
      %15 = sbr.rel (0) target = $region5
    $region4: #{tpu_custom_call.1} parent=1 // pred_region
      %17 = vsyncadd [#allocation3], 0
      %s18 = sshll.u32 %s0, 4
      %s19 = int_to_ptr.hbm [resolvable:$true] %s18
      %s20 = sshll.u32 [#allocation2], 4
      %s21 = int_to_ptr.vmem [resolvable:$true] %s20
      %26 = dma.hbm_to_vmem [thread:$0]  %s19, 2048, %s21, [#allocation3], 64, 64, 4
    $region5: #{tpu_custom_call.1} parent=1 // pred_fallthru
      _
    // Predicated region
    $region6: #{tpu_custom_call.1} parent=1 // pred_check
      _
    $region7: #{tpu_custom_call.1} parent=1 // pred_check_branch
      %28 = sbr.rel (0) target = $region9
    $region8: #{tpu_custom_call.1} parent=1 // pred_region
      %30 = vsyncadd [#allocation6], 0
      %s31 = sshll.u32 %s1, 4
      %s32 = int_to_ptr.hbm [resolvable:$true] %s31
      %s33 = sshll.u32 [#allocation5], 4
      %s34 = int_to_ptr.vmem [resolvable:$true] %s33
      %39 = dma.hbm_to_vmem [thread:$0]  %s32, 4096, %s34, [#allocation6], 256, 256, 16
    $region9: #{tpu_custom_call.1} parent=1 // pred_fallthru
      _
    // Predicated region
    $region10: #{tpu_custom_call.1} parent=1 // pred_check
      _
    $region11: #{tpu_custom_call.1} parent=1 // pred_check_branch
      %41 = sbr.rel (0) target = $region13
    $region12: #{tpu_custom_call.1} parent=1 // pred_region
      %43 = vsyncadd [#allocation6], 0
      %s45 = sshll.u32 %s2, 4
      %s46 = int_to_ptr.hbm [resolvable:$true] %s45
      %s47 = sshll.u32 [#allocation7], 4
      %s48 = int_to_ptr.vmem [resolvable:$true] %s47
      %50 = dma.hbm_to_vmem [thread:$0]  %s46, 64, %s48, [#allocation6]
    $region13: #{tpu_custom_call.1} parent=1 // pred_fallthru
      _
    // Predicated region
    $region14: #{tpu_custom_call.1} parent=1 // pred_check
      _
    $region15: #{tpu_custom_call.1} parent=1 // pred_check_branch
      %52 = sbr.rel (0) target = $region17
    $region16: #{tpu_custom_call.1} parent=1 // pred_region
      %54 = vsyncadd [#allocation9], 0
      %s55 = sshll.u32 %s3, 4
      %s56 = int_to_ptr.hbm [resolvable:$true] %s55
      %s57 = sshll.u32 [#allocation8], 4
      %s58 = int_to_ptr.vmem [resolvable:$true] %s57
      %63 = dma.hbm_to_vmem [thread:$0]  %s56, 4096, %s58, [#allocation9], 64, 64, 4
    $region17: #{tpu_custom_call.1} parent=1 // pred_fallthru
      _
    // Predicated region
    $region18: #{tpu_custom_call.1} parent=1 // pred_check
      _
    $region19: #{tpu_custom_call.1} parent=1 // pred_check_branch
      %65 = sbr.rel (0) target = $region21
    $region20: #{tpu_custom_call.1} parent=1 // pred_region
      _
    $region21: #{tpu_custom_call.1} parent=1 // pred_fallthru
      _
    // Predicated region
    $region22: #{tpu_custom_call.1} parent=1 // pred_check
      _
    $region23: #{tpu_custom_call.1} parent=1 // pred_check_branch
      %67 = sbr.rel (0) target = $region25
    $region24: #{tpu_custom_call.1} parent=1 // pred_region
      %69 = dma.done [#allocation3], 2048
    $region25: #{tpu_custom_call.1} parent=1 // pred_fallthru
      _
    // Predicated region
    $region26: #{tpu_custom_call.1} parent=1 // pred_check
      _
    $region27: #{tpu_custom_call.1} parent=1 // pred_check_branch
      %71 = sbr.rel (0) target = $region29
    $region28: #{tpu_custom_call.1} parent=1 // pred_region
      %73 = dma.done [#allocation6], 4096
    $region29: #{tpu_custom_call.1} parent=1 // pred_fallthru
      _
    // Predicated region
    $region30: #{tpu_custom_call.1} parent=1 // pred_check
      _
    $region31: #{tpu_custom_call.1} parent=1 // pred_check_branch
      %75 = sbr.rel (0) target = $region33
    $region32: #{tpu_custom_call.1} parent=1 // pred_region
      %77 = dma.done [#allocation6], 64
    $region33: #{tpu_custom_call.1} parent=1 // pred_fallthru
      _
    // Predicated region
    $region34: #{tpu_custom_call.1} parent=1 // pred_check
      _
    $region35: #{tpu_custom_call.1} parent=1 // pred_check_branch
      %79 = sbr.rel (0) target = $region37
    $region36: #{tpu_custom_call.1} parent=1 // pred_region
      %81 = dma.done [#allocation9], 4096
    $region37: #{tpu_custom_call.1} parent=1 // pred_fallthru
      _
    %v82 = vld [vmem:[#allocation2] sm:$0xf]
    %v83 = vld [vmem:[#allocation2 + $0x4] sm:$0xf]
    %v84 = vld [vmem:[#allocation2 + $0x8] sm:$0xf]
    %v85 = vld [vmem:[#allocation2 + $0xc] sm:$0xf]
    %v86 = vld [vmem:[#allocation2 + $0x10] sm:$0xf]
    %v87 = vld [vmem:[#allocation2 + $0x14] sm:$0xf]
    %v88 = vld [vmem:[#allocation2 + $0x18] sm:$0xf]
    %v89 = vld [vmem:[#allocation2 + $0x1c] sm:$0xf]
    %v90 = vld [vmem:[#allocation2 + $0x20] sm:$0xf]
    %v91 = vld [vmem:[#allocation2 + $0x24] sm:$0xf]
    %v92 = vld [vmem:[#allocation2 + $0x28] sm:$0xf]
    %v93 = vld [vmem:[#allocation2 + $0x2c] sm:$0xf]
    %v94 = vld [vmem:[#allocation2 + $0x30] sm:$0xf]
    %v95 = vld [vmem:[#allocation2 + $0x34] sm:$0xf]
    %v96 = vld [vmem:[#allocation2 + $0x38] sm:$0xf]
    %v97 = vld [vmem:[#allocation2 + $0x3c] sm:$0xf]
    %v98 = vld [vmem:[#allocation2 + $0x40] sm:$0xf]
    %v99 = vld [vmem:[#allocation2 + $0x44] sm:$0xf]
    %v100 = vld [vmem:[#allocation2 + $0x48] sm:$0xf]
    %v101 = vld [vmem:[#allocation2 + $0x4c] sm:$0xf]
    %v102 = vld [vmem:[#allocation2 + $0x50] sm:$0xf]
    %v103 = vld [vmem:[#allocation2 + $0x54] sm:$0xf]
    %v104 = vld [vmem:[#allocation2 + $0x58] sm:$0xf]
    %v105 = vld [vmem:[#allocation2 + $0x5c] sm:$0xf]
    %v106 = vld [vmem:[#allocation2 + $0x60] sm:$0xf]
    %v107 = vld [vmem:[#allocation2 + $0x64] sm:$0xf]
    %v108 = vld [vmem:[#allocation2 + $0x68] sm:$0xf]
    %v109 = vld [vmem:[#allocation2 + $0x6c] sm:$0xf]
    %v110 = vld [vmem:[#allocation2 + $0x70] sm:$0xf]
    %v111 = vld [vmem:[#allocation2 + $0x74] sm:$0xf]
    %v112 = vld [vmem:[#allocation2 + $0x78] sm:$0xf]
    %v113 = vld [vmem:[#allocation2 + $0x7c] sm:$0xf]
    %v114 = vld [vmem:[#allocation5] sm:$0xff]
    %v115 = vld [vmem:[#allocation5 + $0x8] sm:$0xff]
    %v116 = vld [vmem:[#allocation5 + $0x10] sm:$0xff]
    %v117 = vld [vmem:[#allocation5 + $0x18] sm:$0xff]
    %v118 = vld [vmem:[#allocation5 + $0x20] sm:$0xff]
    %v119 = vld [vmem:[#allocation5 + $0x28] sm:$0xff]
    %v120 = vld [vmem:[#allocation5 + $0x30] sm:$0xff]
    %v121 = vld [vmem:[#allocation5 + $0x38] sm:$0xff]
    %v122 = vld [vmem:[#allocation5 + $0x40] sm:$0xff]
    %v123 = vld [vmem:[#allocation5 + $0x48] sm:$0xff]
    %v124 = vld [vmem:[#allocation5 + $0x50] sm:$0xff]
    %v125 = vld [vmem:[#allocation5 + $0x58] sm:$0xff]
    %v126 = vld [vmem:[#allocation5 + $0x60] sm:$0xff]
    %v127 = vld [vmem:[#allocation5 + $0x68] sm:$0xff]
    %v128 = vld [vmem:[#allocation5 + $0x70] sm:$0xff]
    %v129 = vld [vmem:[#allocation5 + $0x78] sm:$0xff]
    %v130 = vld [vmem:[#allocation5 + $0x80] sm:$0xff]
    %v131 = vld [vmem:[#allocation5 + $0x88] sm:$0xff]
    %v132 = vld [vmem:[#allocation5 + $0x90] sm:$0xff]
    %v133 = vld [vmem:[#allocation5 + $0x98] sm:$0xff]
    %v134 = vld [vmem:[#allocation5 + $0xa0] sm:$0xff]
    %v135 = vld [vmem:[#allocation5 + $0xa8] sm:$0xff]
    %v136 = vld [vmem:[#allocation5 + $0xb0] sm:$0xff]
    %v137 = vld [vmem:[#allocation5 + $0xb8] sm:$0xff]
    %v138 = vld [vmem:[#allocation5 + $0xc0] sm:$0xff]
    %v139 = vld [vmem:[#allocation5 + $0xc8] sm:$0xff]
    %v140 = vld [vmem:[#allocation5 + $0xd0] sm:$0xff]
    %v141 = vld [vmem:[#allocation5 + $0xd8] sm:$0xff]
    %v142 = vld [vmem:[#allocation5 + $0xe0] sm:$0xff]
    %v143 = vld [vmem:[#allocation5 + $0xe8] sm:$0xff]
    %v144 = vld [vmem:[#allocation5 + $0xf0] sm:$0xff]
    %v145 = vld [vmem:[#allocation5 + $0xf8] sm:$0xff]
    %v146 = vld [vmem:[#allocation7] sm:$0xf]
    %v148 = vperm.slane %v146, 0
    %v149 = vperm.slane %v146, 1
    %v150 = vperm.slane %v146, 2
    %v151 = vperm.slane %v146, 3
    %v188 = vunpack.c.l.b16 %v82
    %v189 = vunpack.c.l.b16 %v83
    %v190 = vunpack.c.l.b16 %v84
    %v191 = vunpack.c.l.b16 %v85
    %v192 = vunpack.c.l.b16 %v86
    %v193 = vunpack.c.l.b16 %v87
    %v194 = vunpack.c.l.b16 %v88
    %v195 = vunpack.c.l.b16 %v89
    %v196 = vunpack.c.l.b16 %v90
    %v197 = vunpack.c.l.b16 %v91
    %v198 = vunpack.c.l.b16 %v92
    %v199 = vunpack.c.l.b16 %v93
    %v200 = vunpack.c.l.b16 %v94
    %v201 = vunpack.c.l.b16 %v95
    %v202 = vunpack.c.l.b16 %v96
    %v203 = vunpack.c.l.b16 %v97
    %v204 = vunpack.c.l.b16 %v98
    %v205 = vunpack.c.l.b16 %v99
    %v206 = vunpack.c.l.b16 %v100
    %v207 = vunpack.c.l.b16 %v101
    %v208 = vunpack.c.l.b16 %v102
    %v209 = vunpack.c.l.b16 %v103
    %v210 = vunpack.c.l.b16 %v104
    %v211 = vunpack.c.l.b16 %v105
    %v212 = vunpack.c.l.b16 %v106
    %v213 = vunpack.c.l.b16 %v107
    %v214 = vunpack.c.l.b16 %v108
    %v215 = vunpack.c.l.b16 %v109
    %v216 = vunpack.c.l.b16 %v110
    %v217 = vunpack.c.l.b16 %v111
    %v218 = vunpack.c.l.b16 %v112
    %v219 = vunpack.c.l.b16 %v113
    %v220 = vpack.c.b16 %v189, %v188
    %v221 = vpack.c.b16 %v191, %v190
    %v222 = vpack.c.b16 %v193, %v192
    %v223 = vpack.c.b16 %v195, %v194
    %v224 = vpack.c.b16 %v197, %v196
    %v225 = vpack.c.b16 %v199, %v198
    %v226 = vpack.c.b16 %v201, %v200
    %v227 = vpack.c.b16 %v203, %v202
    %v228 = vpack.c.b16 %v205, %v204
    %v229 = vpack.c.b16 %v207, %v206
    %v230 = vpack.c.b16 %v209, %v208
    %v231 = vpack.c.b16 %v211, %v210
    %v232 = vpack.c.b16 %v213, %v212
    %v233 = vpack.c.b16 %v215, %v214
    %v234 = vpack.c.b16 %v217, %v216
    %v235 = vpack.c.b16 %v219, %v218
    %v284 = vunpack.c.l.b16 %v114
    %v285 = vunpack.c.h.b16 %v114
    %v286 = vunpack.c.l.b16 %v115
    %v287 = vunpack.c.h.b16 %v115
    %v288 = vunpack.c.l.b16 %v116
    %v289 = vunpack.c.h.b16 %v116
    %v290 = vunpack.c.l.b16 %v117
    %v291 = vunpack.c.h.b16 %v117
    %v292 = vunpack.c.l.b16 %v118
    %v293 = vunpack.c.h.b16 %v118
    %v294 = vunpack.c.l.b16 %v119
    %v295 = vunpack.c.h.b16 %v119
    %v296 = vunpack.c.l.b16 %v120
    %v297 = vunpack.c.h.b16 %v120
    %v298 = vunpack.c.l.b16 %v121
    %v299 = vunpack.c.h.b16 %v121
    %v300 = vunpack.c.l.b16 %v122
    %v301 = vunpack.c.h.b16 %v122
    %v302 = vunpack.c.l.b16 %v123
    %v303 = vunpack.c.h.b16 %v123
    %v304 = vunpack.c.l.b16 %v124
    %v305 = vunpack.c.h.b16 %v124
    %v306 = vunpack.c.l.b16 %v125
    %v307 = vunpack.c.h.b16 %v125
    %v308 = vunpack.c.l.b16 %v126
    %v309 = vunpack.c.h.b16 %v126
    %v310 = vunpack.c.l.b16 %v127
    %v311 = vunpack.c.h.b16 %v127
    %v312 = vunpack.c.l.b16 %v128
    %v313 = vunpack.c.h.b16 %v128
    %v314 = vunpack.c.l.b16 %v129
    %v315 = vunpack.c.h.b16 %v129
    %v316 = vunpack.c.l.b16 %v130
    %v317 = vunpack.c.h.b16 %v130
    %v318 = vunpack.c.l.b16 %v131
    %v319 = vunpack.c.h.b16 %v131
    %v320 = vunpack.c.l.b16 %v132
    %v321 = vunpack.c.h.b16 %v132
    %v322 = vunpack.c.l.b16 %v133
    %v323 = vunpack.c.h.b16 %v133
    %v324 = vunpack.c.l.b16 %v134
    %v325 = vunpack.c.h.b16 %v134
    %v326 = vunpack.c.l.b16 %v135
    %v327 = vunpack.c.h.b16 %v135
    %v328 = vunpack.c.l.b16 %v136
    %v329 = vunpack.c.h.b16 %v136
    %v330 = vunpack.c.l.b16 %v137
    %v331 = vunpack.c.h.b16 %v137
    %v332 = vunpack.c.l.b16 %v138
    %v333 = vunpack.c.h.b16 %v138
    %v334 = vunpack.c.l.b16 %v139
    %v335 = vunpack.c.h.b16 %v139
    %v336 = vunpack.c.l.b16 %v140
    %v337 = vunpack.c.h.b16 %v140
    %v338 = vunpack.c.l.b16 %v141
    %v339 = vunpack.c.h.b16 %v141
    %v340 = vunpack.c.l.b16 %v142
    %v341 = vunpack.c.h.b16 %v142
    %v342 = vunpack.c.l.b16 %v143
    %v343 = vunpack.c.h.b16 %v143
    %v344 = vunpack.c.l.b16 %v144
    %v345 = vunpack.c.h.b16 %v144
    %v346 = vunpack.c.l.b16 %v145
    %v347 = vunpack.c.h.b16 %v145
    %v348 = vpack.c.b16 %v288, %v284
    %v349 = vpack.c.b16 %v289, %v285
    %v350 = vpack.c.b16 %v290, %v286
    %v351 = vpack.c.b16 %v291, %v287
    %v352 = vpack.c.b16 %v296, %v292
    %v353 = vpack.c.b16 %v297, %v293
    %v354 = vpack.c.b16 %v298, %v294
    %v355 = vpack.c.b16 %v299, %v295
    %v356 = vpack.c.b16 %v304, %v300
    %v357 = vpack.c.b16 %v305, %v301
    %v358 = vpack.c.b16 %v306, %v302
    %v359 = vpack.c.b16 %v307, %v303
    %v360 = vpack.c.b16 %v312, %v308
    %v361 = vpack.c.b16 %v313, %v309
    %v362 = vpack.c.b16 %v314, %v310
    %v363 = vpack.c.b16 %v315, %v311
    %v364 = vpack.c.b16 %v320, %v316
    %v365 = vpack.c.b16 %v321, %v317
    %v366 = vpack.c.b16 %v322, %v318
    %v367 = vpack.c.b16 %v323, %v319
    %v368 = vpack.c.b16 %v328, %v324
    %v369 = vpack.c.b16 %v329, %v325
    %v370 = vpack.c.b16 %v330, %v326
    %v371 = vpack.c.b16 %v331, %v327
    %v372 = vpack.c.b16 %v336, %v332
    %v373 = vpack.c.b16 %v337, %v333
    %v374 = vpack.c.b16 %v338, %v334
    %v375 = vpack.c.b16 %v339, %v335
    %v376 = vpack.c.b16 %v344, %v340
    %v377 = vpack.c.b16 %v345, %v341
    %v378 = vpack.c.b16 %v346, %v342
    %v379 = vpack.c.b16 %v347, %v343
    %412 = vmatpush.bf16.msra.mxu0 %v376
    %413 = vmatpush.bf16.msra.mxu0 %v372
    %414 = vmatpush.bf16.msra.mxu0 %v368
    %415 = vmatpush.bf16.msra.mxu0 %v364
    %416 = vmatpush.bf16.msra.mxu0 %v360
    %417 = vmatpush.bf16.msra.mxu0 %v356
    %418 = vmatpush.bf16.msra.mxu0 %v352
    %419 = vmatpush.bf16.msra.mxu0 %v348
    %420 = vmatmul.bf16.gmra.mxu0 %v220
    %v421 = vpop.f32.mrf.mxu0
    %v422 = vadd.f32 %v148, %v421
    %v423 = vpop.f32.mrf.mxu0
    %v424 = vadd.f32 %v148, %v423
    %425 = vmatmul.bf16.gmra.mxu0 %v221
    %v426 = vpop.f32.mrf.mxu0
    %v427 = vadd.f32 %v148, %v426
    %v428 = vpop.f32.mrf.mxu0
    %v429 = vadd.f32 %v148, %v428
    %430 = vmatmul.bf16.gmra.mxu0 %v222
    %v431 = vpop.f32.mrf.mxu0
    %v432 = vadd.f32 %v148, %v431
    %v433 = vpop.f32.mrf.mxu0
    %v434 = vadd.f32 %v148, %v433
    %435 = vmatmul.bf16.gmra.mxu0 %v223
    %v436 = vpop.f32.mrf.mxu0
    %v437 = vadd.f32 %v148, %v436
    %v438 = vpop.f32.mrf.mxu0
    %v439 = vadd.f32 %v148, %v438
    %440 = vmatmul.bf16.gmra.mxu0 %v224
    %v441 = vpop.f32.mrf.mxu0
    %v442 = vadd.f32 %v148, %v441
    %v443 = vpop.f32.mrf.mxu0
    %v444 = vadd.f32 %v148, %v443
    %445 = vmatmul.bf16.gmra.mxu0 %v225
    %v446 = vpop.f32.mrf.mxu0
    %v447 = vadd.f32 %v148, %v446
    %v448 = vpop.f32.mrf.mxu0
    %v449 = vadd.f32 %v148, %v448
    %450 = vmatmul.bf16.gmra.mxu0 %v226
    %v451 = vpop.f32.mrf.mxu0
    %v452 = vadd.f32 %v148, %v451
    %v453 = vpop.f32.mrf.mxu0
    %v454 = vadd.f32 %v148, %v453
    %455 = vmatmul.bf16.gmra.mxu0 %v227
    %v456 = vpop.f32.mrf.mxu0
    %v457 = vadd.f32 %v148, %v456
    %v458 = vpop.f32.mrf.mxu0
    %v459 = vadd.f32 %v148, %v458
    %460 = vmatmul.bf16.gmra.mxu0 %v228
    %v461 = vpop.f32.mrf.mxu0
    %v462 = vadd.f32 %v148, %v461
    %v463 = vpop.f32.mrf.mxu0
    %v464 = vadd.f32 %v148, %v463
    %465 = vmatmul.bf16.gmra.mxu0 %v229
    %v466 = vpop.f32.mrf.mxu0
    %v467 = vadd.f32 %v148, %v466
    %v468 = vpop.f32.mrf.mxu0
    %v469 = vadd.f32 %v148, %v468
    %470 = vmatmul.bf16.gmra.mxu0 %v230
    %v471 = vpop.f32.mrf.mxu0
    %v472 = vadd.f32 %v148, %v471
    %v473 = vpop.f32.mrf.mxu0
    %v474 = vadd.f32 %v148, %v473
    %475 = vmatmul.bf16.gmra.mxu0 %v231
    %v476 = vpop.f32.mrf.mxu0
    %v477 = vadd.f32 %v148, %v476
    %v478 = vpop.f32.mrf.mxu0
    %v479 = vadd.f32 %v148, %v478
    %480 = vmatmul.bf16.gmra.mxu0 %v232
    %v481 = vpop.f32.mrf.mxu0
    %v482 = vadd.f32 %v148, %v481
    %v483 = vpop.f32.mrf.mxu0
    %v484 = vadd.f32 %v148, %v483
    %485 = vmatmul.bf16.gmra.mxu0 %v233
    %v486 = vpop.f32.mrf.mxu0
    %v487 = vadd.f32 %v148, %v486
    %v488 = vpop.f32.mrf.mxu0
    %v489 = vadd.f32 %v148, %v488
    %490 = vmatmul.bf16.gmra.mxu0 %v234
    %v491 = vpop.f32.mrf.mxu0
    %v492 = vadd.f32 %v148, %v491
    %v493 = vpop.f32.mrf.mxu0
    %v494 = vadd.f32 %v148, %v493
    %495 = vmatmul.bf16.gmra.mxu0 %v235
    %v496 = vpop.f32.mrf.mxu0
    %v497 = vadd.f32 %v148, %v496
    %v498 = vpop.f32.mrf.mxu0
    %v499 = vadd.f32 %v148, %v498
    %500 = vdwg.mxu0
    %501 = vmatpush.bf16.msra.mxu0 %v377
    %502 = vmatpush.bf16.msra.mxu0 %v373
    %503 = vmatpush.bf16.msra.mxu0 %v369
    %504 = vmatpush.bf16.msra.mxu0 %v365
    %505 = vmatpush.bf16.msra.mxu0 %v361
    %506 = vmatpush.bf16.msra.mxu0 %v357
    %507 = vmatpush.bf16.msra.mxu0 %v353
    %508 = vmatpush.bf16.msra.mxu0 %v349
    %509 = vmatmul.bf16.gmra.mxu0 %v220
    %v510 = vpop.f32.mrf.mxu0
    %v511 = vadd.f32 %v149, %v510
    %v512 = vpop.f32.mrf.mxu0
    %v513 = vadd.f32 %v149, %v512
    %514 = vmatmul.bf16.gmra.mxu0 %v221
    %v515 = vpop.f32.mrf.mxu0
    %v516 = vadd.f32 %v149, %v515
    %v517 = vpop.f32.mrf.mxu0
    %v518 = vadd.f32 %v149, %v517
    %519 = vmatmul.bf16.gmra.mxu0 %v222
    %v520 = vpop.f32.mrf.mxu0
    %v521 = vadd.f32 %v149, %v520
    %v522 = vpop.f32.mrf.mxu0
    %v523 = vadd.f32 %v149, %v522
    %524 = vmatmul.bf16.gmra.mxu0 %v223
    %v525 = vpop.f32.mrf.mxu0
    %v526 = vadd.f32 %v149, %v525
    %v527 = vpop.f32.mrf.mxu0
    %v528 = vadd.f32 %v149, %v527
    %529 = vmatmul.bf16.gmra.mxu0 %v224
    %v530 = vpop.f32.mrf.mxu0
    %v531 = vadd.f32 %v149, %v530
    %v532 = vpop.f32.mrf.mxu0
    %v533 = vadd.f32 %v149, %v532
    %534 = vmatmul.bf16.gmra.mxu0 %v225
    %v535 = vpop.f32.mrf.mxu0
    %v536 = vadd.f32 %v149, %v535
    %v537 = vpop.f32.mrf.mxu0
    %v538 = vadd.f32 %v149, %v537
    %539 = vmatmul.bf16.gmra.mxu0 %v226
    %v540 = vpop.f32.mrf.mxu0
    %v541 = vadd.f32 %v149, %v540
    %v542 = vpop.f32.mrf.mxu0
    %v543 = vadd.f32 %v149, %v542
    %544 = vmatmul.bf16.gmra.mxu0 %v227
    %v545 = vpop.f32.mrf.mxu0
    %v546 = vadd.f32 %v149, %v545
    %v547 = vpop.f32.mrf.mxu0
    %v548 = vadd.f32 %v149, %v547
    %549 = vmatmul.bf16.gmra.mxu0 %v228
    %v550 = vpop.f32.mrf.mxu0
    %v551 = vadd.f32 %v149, %v550
    %v552 = vpop.f32.mrf.mxu0
    %v553 = vadd.f32 %v149, %v552
    %554 = vmatmul.bf16.gmra.mxu0 %v229
    %v555 = vpop.f32.mrf.mxu0
    %v556 = vadd.f32 %v149, %v555
    %v557 = vpop.f32.mrf.mxu0
    %v558 = vadd.f32 %v149, %v557
    %559 = vmatmul.bf16.gmra.mxu0 %v230
    %v560 = vpop.f32.mrf.mxu0
    %v561 = vadd.f32 %v149, %v560
    %v562 = vpop.f32.mrf.mxu0
    %v563 = vadd.f32 %v149, %v562
    %564 = vmatmul.bf16.gmra.mxu0 %v231
    %v565 = vpop.f32.mrf.mxu0
    %v566 = vadd.f32 %v149, %v565
    %v567 = vpop.f32.mrf.mxu0
    %v568 = vadd.f32 %v149, %v567
    %569 = vmatmul.bf16.gmra.mxu0 %v232
    %v570 = vpop.f32.mrf.mxu0
    %v571 = vadd.f32 %v149, %v570
    %v572 = vpop.f32.mrf.mxu0
    %v573 = vadd.f32 %v149, %v572
    %574 = vmatmul.bf16.gmra.mxu0 %v233
    %v575 = vpop.f32.mrf.mxu0
    %v576 = vadd.f32 %v149, %v575
    %v577 = vpop.f32.mrf.mxu0
    %v578 = vadd.f32 %v149, %v577
    %579 = vmatmul.bf16.gmra.mxu0 %v234
    %v580 = vpop.f32.mrf.mxu0
    %v581 = vadd.f32 %v149, %v580
    %v582 = vpop.f32.mrf.mxu0
    %v583 = vadd.f32 %v149, %v582
    %584 = vmatmul.bf16.gmra.mxu0 %v235
    %v585 = vpop.f32.mrf.mxu0
    %v586 = vadd.f32 %v149, %v585
    %v587 = vpop.f32.mrf.mxu0
    %v588 = vadd.f32 %v149, %v587
    %589 = vdwg.mxu0
    %590 = vmatpush.bf16.msra.mxu0 %v378
    %591 = vmatpush.bf16.msra.mxu0 %v374
    %592 = vmatpush.bf16.msra.mxu0 %v370
    %593 = vmatpush.bf16.msra.mxu0 %v366
    %594 = vmatpush.bf16.msra.mxu0 %v362
    %595 = vmatpush.bf16.msra.mxu0 %v358
    %596 = vmatpush.bf16.msra.mxu0 %v354
    %597 = vmatpush.bf16.msra.mxu0 %v350
    %598 = vmatmul.bf16.gmra.mxu0 %v220
    %v599 = vpop.f32.mrf.mxu0
    %v600 = vadd.f32 %v150, %v599
    %v601 = vpop.f32.mrf.mxu0
    %v602 = vadd.f32 %v150, %v601
    %603 = vmatmul.bf16.gmra.mxu0 %v221
    %v604 = vpop.f32.mrf.mxu0
    %v605 = vadd.f32 %v150, %v604
    %v606 = vpop.f32.mrf.mxu0
    %v607 = vadd.f32 %v150, %v606
    %608 = vmatmul.bf16.gmra.mxu0 %v222
    %v609 = vpop.f32.mrf.mxu0
    %v610 = vadd.f32 %v150, %v609
    %v611 = vpop.f32.mrf.mxu0
    %v612 = vadd.f32 %v150, %v611
    %613 = vmatmul.bf16.gmra.mxu0 %v223
    %v614 = vpop.f32.mrf.mxu0
    %v615 = vadd.f32 %v150, %v614
    %v616 = vpop.f32.mrf.mxu0
    %v617 = vadd.f32 %v150, %v616
    %618 = vmatmul.bf16.gmra.mxu0 %v224
    %v619 = vpop.f32.mrf.mxu0
    %v620 = vadd.f32 %v150, %v619
    %v621 = vpop.f32.mrf.mxu0
    %v622 = vadd.f32 %v150, %v621
    %623 = vmatmul.bf16.gmra.mxu0 %v225
    %v624 = vpop.f32.mrf.mxu0
    %v625 = vadd.f32 %v150, %v624
    %v626 = vpop.f32.mrf.mxu0
    %v627 = vadd.f32 %v150, %v626
    %628 = vmatmul.bf16.gmra.mxu0 %v226
    %v629 = vpop.f32.mrf.mxu0
    %v630 = vadd.f32 %v150, %v629
    %v631 = vpop.f32.mrf.mxu0
    %v632 = vadd.f32 %v150, %v631
    %633 = vmatmul.bf16.gmra.mxu0 %v227
    %v634 = vpop.f32.mrf.mxu0
    %v635 = vadd.f32 %v150, %v634
    %v636 = vpop.f32.mrf.mxu0
    %v637 = vadd.f32 %v150, %v636
    %638 = vmatmul.bf16.gmra.mxu0 %v228
    %v639 = vpop.f32.mrf.mxu0
    %v640 = vadd.f32 %v150, %v639
    %v641 = vpop.f32.mrf.mxu0
    %v642 = vadd.f32 %v150, %v641
    %643 = vmatmul.bf16.gmra.mxu0 %v229
    %v644 = vpop.f32.mrf.mxu0
    %v645 = vadd.f32 %v150, %v644
    %v646 = vpop.f32.mrf.mxu0
    %v647 = vadd.f32 %v150, %v646
    %648 = vmatmul.bf16.gmra.mxu0 %v230
    %v649 = vpop.f32.mrf.mxu0
    %v650 = vadd.f32 %v150, %v649
    %v651 = vpop.f32.mrf.mxu0
    %v652 = vadd.f32 %v150, %v651
    %653 = vmatmul.bf16.gmra.mxu0 %v231
    %v654 = vpop.f32.mrf.mxu0
    %v655 = vadd.f32 %v150, %v654
    %v656 = vpop.f32.mrf.mxu0
    %v657 = vadd.f32 %v150, %v656
    %658 = vmatmul.bf16.gmra.mxu0 %v232
    %v659 = vpop.f32.mrf.mxu0
    %v660 = vadd.f32 %v150, %v659
    %v661 = vpop.f32.mrf.mxu0
    %v662 = vadd.f32 %v150, %v661
    %663 = vmatmul.bf16.gmra.mxu0 %v233
    %v664 = vpop.f32.mrf.mxu0
    %v665 = vadd.f32 %v150, %v664
    %v666 = vpop.f32.mrf.mxu0
    %v667 = vadd.f32 %v150, %v666
    %668 = vmatmul.bf16.gmra.mxu0 %v234
    %v669 = vpop.f32.mrf.mxu0
    %v670 = vadd.f32 %v150, %v669
    %v671 = vpop.f32.mrf.mxu0
    %v672 = vadd.f32 %v150, %v671
    %673 = vmatmul.bf16.gmra.mxu0 %v235
    %v674 = vpop.f32.mrf.mxu0
    %v675 = vadd.f32 %v150, %v674
    %v676 = vpop.f32.mrf.mxu0
    %v677 = vadd.f32 %v150, %v676
    %678 = vdwg.mxu0
    %679 = vmatpush.bf16.msra.mxu0 %v379
    %680 = vmatpush.bf16.msra.mxu0 %v375
    %681 = vmatpush.bf16.msra.mxu0 %v371
    %682 = vmatpush.bf16.msra.mxu0 %v367
    %683 = vmatpush.bf16.msra.mxu0 %v363
    %684 = vmatpush.bf16.msra.mxu0 %v359
    %685 = vmatpush.bf16.msra.mxu0 %v355
    %686 = vmatpush.bf16.msra.mxu0 %v351
    %687 = vmatmul.bf16.gmra.mxu0 %v220
    %v688 = vpop.f32.mrf.mxu0
    %v689 = vadd.f32 %v151, %v688
    %v690 = vpop.f32.mrf.mxu0
    %v691 = vadd.f32 %v151, %v690
    %692 = vmatmul.bf16.gmra.mxu0 %v221
    %v693 = vpop.f32.mrf.mxu0
    %v694 = vadd.f32 %v151, %v693
    %v695 = vpop.f32.mrf.mxu0
    %v696 = vadd.f32 %v151, %v695
    %697 = vmatmul.bf16.gmra.mxu0 %v222
    %v698 = vpop.f32.mrf.mxu0
    %v699 = vadd.f32 %v151, %v698
    %v700 = vpop.f32.mrf.mxu0
    %v701 = vadd.f32 %v151, %v700
    %702 = vmatmul.bf16.gmra.mxu0 %v223
    %v703 = vpop.f32.mrf.mxu0
    %v704 = vadd.f32 %v151, %v703
    %v705 = vpop.f32.mrf.mxu0
    %v706 = vadd.f32 %v151, %v705
    %707 = vmatmul.bf16.gmra.mxu0 %v224
    %v708 = vpop.f32.mrf.mxu0
    %v709 = vadd.f32 %v151, %v708
    %v710 = vpop.f32.mrf.mxu0
    %v711 = vadd.f32 %v151, %v710
    %712 = vmatmul.bf16.gmra.mxu0 %v225
    %v713 = vpop.f32.mrf.mxu0
    %v714 = vadd.f32 %v151, %v713
    %v715 = vpop.f32.mrf.mxu0
    %v716 = vadd.f32 %v151, %v715
    %717 = vmatmul.bf16.gmra.mxu0 %v226
    %v718 = vpop.f32.mrf.mxu0
    %v719 = vadd.f32 %v151, %v718
    %v720 = vpop.f32.mrf.mxu0
    %v721 = vadd.f32 %v151, %v720
    %722 = vmatmul.bf16.gmra.mxu0 %v227
    %v723 = vpop.f32.mrf.mxu0
    %v724 = vadd.f32 %v151, %v723
    %v725 = vpop.f32.mrf.mxu0
    %v726 = vadd.f32 %v151, %v725
    %727 = vmatmul.bf16.gmra.mxu0 %v228
    %v728 = vpop.f32.mrf.mxu0
    %v729 = vadd.f32 %v151, %v728
    %v730 = vpop.f32.mrf.mxu0
    %v731 = vadd.f32 %v151, %v730
    %732 = vmatmul.bf16.gmra.mxu0 %v229
    %v733 = vpop.f32.mrf.mxu0
    %v734 = vadd.f32 %v151, %v733
    %v735 = vpop.f32.mrf.mxu0
    %v736 = vadd.f32 %v151, %v735
    %737 = vmatmul.bf16.gmra.mxu0 %v230
    %v738 = vpop.f32.mrf.mxu0
    %v739 = vadd.f32 %v151, %v738
    %v740 = vpop.f32.mrf.mxu0
    %v741 = vadd.f32 %v151, %v740
    %742 = vmatmul.bf16.gmra.mxu0 %v231
    %v743 = vpop.f32.mrf.mxu0
    %v744 = vadd.f32 %v151, %v743
    %v745 = vpop.f32.mrf.mxu0
    %v746 = vadd.f32 %v151, %v745
    %747 = vmatmul.bf16.gmra.mxu0 %v232
    %v748 = vpop.f32.mrf.mxu0
    %v749 = vadd.f32 %v151, %v748
    %v750 = vpop.f32.mrf.mxu0
    %v751 = vadd.f32 %v151, %v750
    %752 = vmatmul.bf16.gmra.mxu0 %v233
    %v753 = vpop.f32.mrf.mxu0
    %v754 = vadd.f32 %v151, %v753
    %v755 = vpop.f32.mrf.mxu0
    %v756 = vadd.f32 %v151, %v755
    %757 = vmatmul.bf16.gmra.mxu0 %v234
    %v758 = vpop.f32.mrf.mxu0
    %v759 = vadd.f32 %v151, %v758
    %v760 = vpop.f32.mrf.mxu0
    %v761 = vadd.f32 %v151, %v760
    %762 = vmatmul.bf16.gmra.mxu0 %v235
    %v763 = vpop.f32.mrf.mxu0
    %v764 = vadd.f32 %v151, %v763
    %v765 = vpop.f32.mrf.mxu0
    %v766 = vadd.f32 %v151, %v765
    %767 = vdwg.mxu0
    %v768 = vmul.f32 %v422, %v422
    %v769 = vmul.f32 %v511, %v511
    %v770 = vmul.f32 %v600, %v600
    %v771 = vmul.f32 %v689, %v689
    %v772 = vmul.f32 %v424, %v424
    %v773 = vmul.f32 %v513, %v513
    %v774 = vmul.f32 %v602, %v602
    %v775 = vmul.f32 %v691, %v691
    %v776 = vmul.f32 %v427, %v427
    %v777 = vmul.f32 %v516, %v516
    %v778 = vmul.f32 %v605, %v605
    %v779 = vmul.f32 %v694, %v694
    %v780 = vmul.f32 %v429, %v429
    %v781 = vmul.f32 %v518, %v518
    %v782 = vmul.f32 %v607, %v607
    %v783 = vmul.f32 %v696, %v696
    %v784 = vmul.f32 %v432, %v432
    %v785 = vmul.f32 %v521, %v521
    %v786 = vmul.f32 %v610, %v610
    %v787 = vmul.f32 %v699, %v699
    %v788 = vmul.f32 %v434, %v434
    %v789 = vmul.f32 %v523, %v523
    %v790 = vmul.f32 %v612, %v612
    %v791 = vmul.f32 %v701, %v701
    %v792 = vmul.f32 %v437, %v437
    %v793 = vmul.f32 %v526, %v526
    %v794 = vmul.f32 %v615, %v615
    %v795 = vmul.f32 %v704, %v704
    %v796 = vmul.f32 %v439, %v439
    %v797 = vmul.f32 %v528, %v528
    %v798 = vmul.f32 %v617, %v617
    %v799 = vmul.f32 %v706, %v706
    %v800 = vmul.f32 %v442, %v442
    %v801 = vmul.f32 %v531, %v531
    %v802 = vmul.f32 %v620, %v620
    %v803 = vmul.f32 %v709, %v709
    %v804 = vmul.f32 %v444, %v444
    %v805 = vmul.f32 %v533, %v533
    %v806 = vmul.f32 %v622, %v622
    %v807 = vmul.f32 %v711, %v711
    %v808 = vmul.f32 %v447, %v447
    %v809 = vmul.f32 %v536, %v536
    %v810 = vmul.f32 %v625, %v625
    %v811 = vmul.f32 %v714, %v714
    %v812 = vmul.f32 %v449, %v449
    %v813 = vmul.f32 %v538, %v538
    %v814 = vmul.f32 %v627, %v627
    %v815 = vmul.f32 %v716, %v716
    %v816 = vmul.f32 %v452, %v452
    %v817 = vmul.f32 %v541, %v541
    %v818 = vmul.f32 %v630, %v630
    %v819 = vmul.f32 %v719, %v719
    %v820 = vmul.f32 %v454, %v454
    %v821 = vmul.f32 %v543, %v543
    %v822 = vmul.f32 %v632, %v632
    %v823 = vmul.f32 %v721, %v721
    %v824 = vmul.f32 %v457, %v457
    %v825 = vmul.f32 %v546, %v546
    %v826 = vmul.f32 %v635, %v635
    %v827 = vmul.f32 %v724, %v724
    %v828 = vmul.f32 %v459, %v459
    %v829 = vmul.f32 %v548, %v548
    %v830 = vmul.f32 %v637, %v637
    %v831 = vmul.f32 %v726, %v726
    %v832 = vmul.f32 %v462, %v462
    %v833 = vmul.f32 %v551, %v551
    %v834 = vmul.f32 %v640, %v640
    %v835 = vmul.f32 %v729, %v729
    %v836 = vmul.f32 %v464, %v464
    %v837 = vmul.f32 %v553, %v553
    %v838 = vmul.f32 %v642, %v642
    %v839 = vmul.f32 %v731, %v731
    %v840 = vmul.f32 %v467, %v467
    %v841 = vmul.f32 %v556, %v556
    %v842 = vmul.f32 %v645, %v645
    %v843 = vmul.f32 %v734, %v734
    %v844 = vmul.f32 %v469, %v469
    %v845 = vmul.f32 %v558, %v558
    %v846 = vmul.f32 %v647, %v647
    %v847 = vmul.f32 %v736, %v736
    %v848 = vmul.f32 %v472, %v472
    %v849 = vmul.f32 %v561, %v561
    %v850 = vmul.f32 %v650, %v650
    %v851 = vmul.f32 %v739, %v739
    %v852 = vmul.f32 %v474, %v474
    %v853 = vmul.f32 %v563, %v563
    %v854 = vmul.f32 %v652, %v652
    %v855 = vmul.f32 %v741, %v741
    %v856 = vmul.f32 %v477, %v477
    %v857 = vmul.f32 %v566, %v566
    %v858 = vmul.f32 %v655, %v655
    %v859 = vmul.f32 %v744, %v744
    %v860 = vmul.f32 %v479, %v479
    %v861 = vmul.f32 %v568, %v568
    %v862 = vmul.f32 %v657, %v657
    %v863 = vmul.f32 %v746, %v746
    %v864 = vmul.f32 %v482, %v482
    %v865 = vmul.f32 %v571, %v571
    %v866 = vmul.f32 %v660, %v660
    %v867 = vmul.f32 %v749, %v749
    %v868 = vmul.f32 %v484, %v484
    %v869 = vmul.f32 %v573, %v573
    %v870 = vmul.f32 %v662, %v662
    %v871 = vmul.f32 %v751, %v751
    %v872 = vmul.f32 %v487, %v487
    %v873 = vmul.f32 %v576, %v576
    %v874 = vmul.f32 %v665, %v665
    %v875 = vmul.f32 %v754, %v754
    %v876 = vmul.f32 %v489, %v489
    %v877 = vmul.f32 %v578, %v578
    %v878 = vmul.f32 %v667, %v667
    %v879 = vmul.f32 %v756, %v756
    %v880 = vmul.f32 %v492, %v492
    %v881 = vmul.f32 %v581, %v581
    %v882 = vmul.f32 %v670, %v670
    %v883 = vmul.f32 %v759, %v759
    %v884 = vmul.f32 %v494, %v494
    %v885 = vmul.f32 %v583, %v583
    %v886 = vmul.f32 %v672, %v672
    %v887 = vmul.f32 %v761, %v761
    %v888 = vmul.f32 %v497, %v497
    %v889 = vmul.f32 %v586, %v586
    %v890 = vmul.f32 %v675, %v675
    %v891 = vmul.f32 %v764, %v764
    %v892 = vmul.f32 %v499, %v499
    %v893 = vmul.f32 %v588, %v588
    %v894 = vmul.f32 %v677, %v677
    %v895 = vmul.f32 %v766, %v766
    %v896 = vmul.f32 %v768, 0.035677407
    %v897 = vmul.f32 %v769, 0.035677407
    %v898 = vmul.f32 %v770, 0.035677407
    %v899 = vmul.f32 %v771, 0.035677407
    %v900 = vmul.f32 %v772, 0.035677407
    %v901 = vmul.f32 %v773, 0.035677407
    %v902 = vmul.f32 %v774, 0.035677407
    %v903 = vmul.f32 %v775, 0.035677407
    %v904 = vmul.f32 %v776, 0.035677407
    %v905 = vmul.f32 %v777, 0.035677407
    %v906 = vmul.f32 %v778, 0.035677407
    %v907 = vmul.f32 %v779, 0.035677407
    %v908 = vmul.f32 %v780, 0.035677407
    %v909 = vmul.f32 %v781, 0.035677407
    %v910 = vmul.f32 %v782, 0.035677407
    %v911 = vmul.f32 %v783, 0.035677407
    %v912 = vmul.f32 %v784, 0.035677407
    %v913 = vmul.f32 %v785, 0.035677407
    %v914 = vmul.f32 %v786, 0.035677407
    %v915 = vmul.f32 %v787, 0.035677407
    %v916 = vmul.f32 %v788, 0.035677407
    %v917 = vmul.f32 %v789, 0.035677407
    %v918 = vmul.f32 %v790, 0.035677407
    %v919 = vmul.f32 %v791, 0.035677407
    %v920 = vmul.f32 %v792, 0.035677407
    %v921 = vmul.f32 %v793, 0.035677407
    %v922 = vmul.f32 %v794, 0.035677407
    %v923 = vmul.f32 %v795, 0.035677407
    %v924 = vmul.f32 %v796, 0.035677407
    %v925 = vmul.f32 %v797, 0.035677407
    %v926 = vmul.f32 %v798, 0.035677407
    %v927 = vmul.f32 %v799, 0.035677407
    %v928 = vmul.f32 %v800, 0.035677407
    %v929 = vmul.f32 %v801, 0.035677407
    %v930 = vmul.f32 %v802, 0.035677407
    %v931 = vmul.f32 %v803, 0.035677407
    %v932 = vmul.f32 %v804, 0.035677407
    %v933 = vmul.f32 %v805, 0.035677407
    %v934 = vmul.f32 %v806, 0.035677407
    %v935 = vmul.f32 %v807, 0.035677407
    %v936 = vmul.f32 %v808, 0.035677407
    %v937 = vmul.f32 %v809, 0.035677407
    %v938 = vmul.f32 %v810, 0.035677407
    %v939 = vmul.f32 %v811, 0.035677407
    %v940 = vmul.f32 %v812, 0.035677407
    %v941 = vmul.f32 %v813, 0.035677407
    %v942 = vmul.f32 %v814, 0.035677407
    %v943 = vmul.f32 %v815, 0.035677407
    %v944 = vmul.f32 %v816, 0.035677407
    %v945 = vmul.f32 %v817, 0.035677407
    %v946 = vmul.f32 %v818, 0.035677407
    %v947 = vmul.f32 %v819, 0.035677407
    %v948 = vmul.f32 %v820, 0.035677407
    %v949 = vmul.f32 %v821, 0.035677407
    %v950 = vmul.f32 %v822, 0.035677407
    %v951 = vmul.f32 %v823, 0.035677407
    %v952 = vmul.f32 %v824, 0.035677407
    %v953 = vmul.f32 %v825, 0.035677407
    %v954 = vmul.f32 %v826, 0.035677407
    %v955 = vmul.f32 %v827, 0.035677407
    %v956 = vmul.f32 %v828, 0.035677407
    %v957 = vmul.f32 %v829, 0.035677407
    %v958 = vmul.f32 %v830, 0.035677407
    %v959 = vmul.f32 %v831, 0.035677407
    %v960 = vmul.f32 %v832, 0.035677407
    %v961 = vmul.f32 %v833, 0.035677407
    %v962 = vmul.f32 %v834, 0.035677407
    %v963 = vmul.f32 %v835, 0.035677407
    %v964 = vmul.f32 %v836, 0.035677407
    %v965 = vmul.f32 %v837, 0.035677407
    %v966 = vmul.f32 %v838, 0.035677407
    %v967 = vmul.f32 %v839, 0.035677407
    %v968 = vmul.f32 %v840, 0.035677407
    %v969 = vmul.f32 %v841, 0.035677407
    %v970 = vmul.f32 %v842, 0.035677407
    %v971 = vmul.f32 %v843, 0.035677407
    %v972 = vmul.f32 %v844, 0.035677407
    %v973 = vmul.f32 %v845, 0.035677407
    %v974 = vmul.f32 %v846, 0.035677407
    %v975 = vmul.f32 %v847, 0.035677407
    %v976 = vmul.f32 %v848, 0.035677407
    %v977 = vmul.f32 %v849, 0.035677407
    %v978 = vmul.f32 %v850, 0.035677407
    %v979 = vmul.f32 %v851, 0.035677407
    %v980 = vmul.f32 %v852, 0.035677407
    %v981 = vmul.f32 %v853, 0.035677407
    %v982 = vmul.f32 %v854, 0.035677407
    %v983 = vmul.f32 %v855, 0.035677407
    %v984 = vmul.f32 %v856, 0.035677407
    %v985 = vmul.f32 %v857, 0.035677407
    %v986 = vmul.f32 %v858, 0.035677407
    %v987 = vmul.f32 %v859, 0.035677407
    %v988 = vmul.f32 %v860, 0.035677407
    %v989 = vmul.f32 %v861, 0.035677407
    %v990 = vmul.f32 %v862, 0.035677407
    %v991 = vmul.f32 %v863, 0.035677407
    %v992 = vmul.f32 %v864, 0.035677407
    %v993 = vmul.f32 %v865, 0.035677407
    %v994 = vmul.f32 %v866, 0.035677407
    %v995 = vmul.f32 %v867, 0.035677407
    %v996 = vmul.f32 %v868, 0.035677407
    %v997 = vmul.f32 %v869, 0.035677407
    %v998 = vmul.f32 %v870, 0.035677407
    %v999 = vmul.f32 %v871, 0.035677407
    %v1000 = vmul.f32 %v872, 0.035677407
    %v1001 = vmul.f32 %v873, 0.035677407
    %v1002 = vmul.f32 %v874, 0.035677407
    %v1003 = vmul.f32 %v875, 0.035677407
    %v1004 = vmul.f32 %v876, 0.035677407
    %v1005 = vmul.f32 %v877, 0.035677407
    %v1006 = vmul.f32 %v878, 0.035677407
    %v1007 = vmul.f32 %v879, 0.035677407
    %v1008 = vmul.f32 %v880, 0.035677407
    %v1009 = vmul.f32 %v881, 0.035677407
    %v1010 = vmul.f32 %v882, 0.035677407
    %v1011 = vmul.f32 %v883, 0.035677407
    %v1012 = vmul.f32 %v884, 0.035677407
    %v1013 = vmul.f32 %v885, 0.035677407
    %v1014 = vmul.f32 %v886, 0.035677407
    %v1015 = vmul.f32 %v887, 0.035677407
    %v1016 = vmul.f32 %v888, 0.035677407
    %v1017 = vmul.f32 %v889, 0.035677407
    %v1018 = vmul.f32 %v890, 0.035677407
    %v1019 = vmul.f32 %v891, 0.035677407
    %v1020 = vmul.f32 %v892, 0.035677407
    %v1021 = vmul.f32 %v893, 0.035677407
    %v1022 = vmul.f32 %v894, 0.035677407
    %v1023 = vmul.f32 %v895, 0.035677407
    %v1024 = vadd.f32 %v896, 0.7978846
    %v1025 = vadd.f32 %v897, 0.7978846
    %v1026 = vadd.f32 %v898, 0.7978846
    %v1027 = vadd.f32 %v899, 0.7978846
    %v1028 = vadd.f32 %v900, 0.7978846
    %v1029 = vadd.f32 %v901, 0.7978846
    %v1030 = vadd.f32 %v902, 0.7978846
    %v1031 = vadd.f32 %v903, 0.7978846
    %v1032 = vadd.f32 %v904, 0.7978846
    %v1033 = vadd.f32 %v905, 0.7978846
    %v1034 = vadd.f32 %v906, 0.7978846
    %v1035 = vadd.f32 %v907, 0.7978846
    %v1036 = vadd.f32 %v908, 0.7978846
    %v1037 = vadd.f32 %v909, 0.7978846
    %v1038 = vadd.f32 %v910, 0.7978846
    %v1039 = vadd.f32 %v911, 0.7978846
    %v1040 = vadd.f32 %v912, 0.7978846
    %v1041 = vadd.f32 %v913, 0.7978846
    %v1042 = vadd.f32 %v914, 0.7978846
    %v1043 = vadd.f32 %v915, 0.7978846
    %v1044 = vadd.f32 %v916, 0.7978846
    %v1045 = vadd.f32 %v917, 0.7978846
    %v1046 = vadd.f32 %v918, 0.7978846
    %v1047 = vadd.f32 %v919, 0.7978846
    %v1048 = vadd.f32 %v920, 0.7978846
    %v1049 = vadd.f32 %v921, 0.7978846
    %v1050 = vadd.f32 %v922, 0.7978846
    %v1051 = vadd.f32 %v923, 0.7978846
    %v1052 = vadd.f32 %v924, 0.7978846
    %v1053 = vadd.f32 %v925, 0.7978846
    %v1054 = vadd.f32 %v926, 0.7978846
    %v1055 = vadd.f32 %v927, 0.7978846
    %v1056 = vadd.f32 %v928, 0.7978846
    %v1057 = vadd.f32 %v929, 0.7978846
    %v1058 = vadd.f32 %v930, 0.7978846
    %v1059 = vadd.f32 %v931, 0.7978846
    %v1060 = vadd.f32 %v932, 0.7978846
    %v1061 = vadd.f32 %v933, 0.7978846
    %v1062 = vadd.f32 %v934, 0.7978846
    %v1063 = vadd.f32 %v935, 0.7978846
    %v1064 = vadd.f32 %v936, 0.7978846
    %v1065 = vadd.f32 %v937, 0.7978846
    %v1066 = vadd.f32 %v938, 0.7978846
    %v1067 = vadd.f32 %v939, 0.7978846
    %v1068 = vadd.f32 %v940, 0.7978846
    %v1069 = vadd.f32 %v941, 0.7978846
    %v1070 = vadd.f32 %v942, 0.7978846
    %v1071 = vadd.f32 %v943, 0.7978846
    %v1072 = vadd.f32 %v944, 0.7978846
    %v1073 = vadd.f32 %v945, 0.7978846
    %v1074 = vadd.f32 %v946, 0.7978846
    %v1075 = vadd.f32 %v947, 0.7978846
    %v1076 = vadd.f32 %v948, 0.7978846
    %v1077 = vadd.f32 %v949, 0.7978846
    %v1078 = vadd.f32 %v950, 0.7978846
    %v1079 = vadd.f32 %v951, 0.7978846
    %v1080 = vadd.f32 %v952, 0.7978846
    %v1081 = vadd.f32 %v953, 0.7978846
    %v1082 = vadd.f32 %v954, 0.7978846
    %v1083 = vadd.f32 %v955, 0.7978846
    %v1084 = vadd.f32 %v956, 0.7978846
    %v1085 = vadd.f32 %v957, 0.7978846
    %v1086 = vadd.f32 %v958, 0.7978846
    %v1087 = vadd.f32 %v959, 0.7978846
    %v1088 = vadd.f32 %v960, 0.7978846
    %v1089 = vadd.f32 %v961, 0.7978846
    %v1090 = vadd.f32 %v962, 0.7978846
    %v1091 = vadd.f32 %v963, 0.7978846
    %v1092 = vadd.f32 %v964, 0.7978846
    %v1093 = vadd.f32 %v965, 0.7978846
    %v1094 = vadd.f32 %v966, 0.7978846
    %v1095 = vadd.f32 %v967, 0.7978846
    %v1096 = vadd.f32 %v968, 0.7978846
    %v1097 = vadd.f32 %v969, 0.7978846
    %v1098 = vadd.f32 %v970, 0.7978846
    %v1099 = vadd.f32 %v971, 0.7978846
    %v1100 = vadd.f32 %v972, 0.7978846
    %v1101 = vadd.f32 %v973, 0.7978846
    %v1102 = vadd.f32 %v974, 0.7978846
    %v1103 = vadd.f32 %v975, 0.7978846
    %v1104 = vadd.f32 %v976, 0.7978846
    %v1105 = vadd.f32 %v977, 0.7978846
    %v1106 = vadd.f32 %v978, 0.7978846
    %v1107 = vadd.f32 %v979, 0.7978846
    %v1108 = vadd.f32 %v980, 0.7978846
    %v1109 = vadd.f32 %v981, 0.7978846
    %v1110 = vadd.f32 %v982, 0.7978846
    %v1111 = vadd.f32 %v983, 0.7978846
    %v1112 = vadd.f32 %v984, 0.7978846
    %v1113 = vadd.f32 %v985, 0.7978846
    %v1114 = vadd.f32 %v986, 0.7978846
    %v1115 = vadd.f32 %v987, 0.7978846
    %v1116 = vadd.f32 %v988, 0.7978846
    %v1117 = vadd.f32 %v989, 0.7978846
    %v1118 = vadd.f32 %v990, 0.7978846
    %v1119 = vadd.f32 %v991, 0.7978846
    %v1120 = vadd.f32 %v992, 0.7978846
    %v1121 = vadd.f32 %v993, 0.7978846
    %v1122 = vadd.f32 %v994, 0.7978846
    %v1123 = vadd.f32 %v995, 0.7978846
    %v1124 = vadd.f32 %v996, 0.7978846
    %v1125 = vadd.f32 %v997, 0.7978846
    %v1126 = vadd.f32 %v998, 0.7978846
    %v1127 = vadd.f32 %v999, 0.7978846
    %v1128 = vadd.f32 %v1000, 0.7978846
    %v1129 = vadd.f32 %v1001, 0.7978846
    %v1130 = vadd.f32 %v1002, 0.7978846
    %v1131 = vadd.f32 %v1003, 0.7978846
    %v1132 = vadd.f32 %v1004, 0.7978846
    %v1133 = vadd.f32 %v1005, 0.7978846
    %v1134 = vadd.f32 %v1006, 0.7978846
    %v1135 = vadd.f32 %v1007, 0.7978846
    %v1136 = vadd.f32 %v1008, 0.7978846
    %v1137 = vadd.f32 %v1009, 0.7978846
    %v1138 = vadd.f32 %v1010, 0.7978846
    %v1139 = vadd.f32 %v1011, 0.7978846
    %v1140 = vadd.f32 %v1012, 0.7978846
    %v1141 = vadd.f32 %v1013, 0.7978846
    %v1142 = vadd.f32 %v1014, 0.7978846
    %v1143 = vadd.f32 %v1015, 0.7978846
    %v1144 = vadd.f32 %v1016, 0.7978846
    %v1145 = vadd.f32 %v1017, 0.7978846
    %v1146 = vadd.f32 %v1018, 0.7978846
    %v1147 = vadd.f32 %v1019, 0.7978846
    %v1148 = vadd.f32 %v1020, 0.7978846
    %v1149 = vadd.f32 %v1021, 0.7978846
    %v1150 = vadd.f32 %v1022, 0.7978846
    %v1151 = vadd.f32 %v1023, 0.7978846
    %v1152 = vmul.f32 %v422, %v1024
    %v1153 = vmul.f32 %v511, %v1025
    %v1154 = vmul.f32 %v600, %v1026
    %v1155 = vmul.f32 %v689, %v1027
    %v1156 = vmul.f32 %v424, %v1028
    %v1157 = vmul.f32 %v513, %v1029
    %v1158 = vmul.f32 %v602, %v1030
    %v1159 = vmul.f32 %v691, %v1031
    %v1160 = vmul.f32 %v427, %v1032
    %v1161 = vmul.f32 %v516, %v1033
    %v1162 = vmul.f32 %v605, %v1034
    %v1163 = vmul.f32 %v694, %v1035
    %v1164 = vmul.f32 %v429, %v1036
    %v1165 = vmul.f32 %v518, %v1037
    %v1166 = vmul.f32 %v607, %v1038
    %v1167 = vmul.f32 %v696, %v1039
    %v1168 = vmul.f32 %v432, %v1040
    %v1169 = vmul.f32 %v521, %v1041
    %v1170 = vmul.f32 %v610, %v1042
    %v1171 = vmul.f32 %v699, %v1043
    %v1172 = vmul.f32 %v434, %v1044
    %v1173 = vmul.f32 %v523, %v1045
    %v1174 = vmul.f32 %v612, %v1046
    %v1175 = vmul.f32 %v701, %v1047
    %v1176 = vmul.f32 %v437, %v1048
    %v1177 = vmul.f32 %v526, %v1049
    %v1178 = vmul.f32 %v615, %v1050
    %v1179 = vmul.f32 %v704, %v1051
    %v1180 = vmul.f32 %v439, %v1052
    %v1181 = vmul.f32 %v528, %v1053
    %v1182 = vmul.f32 %v617, %v1054
    %v1183 = vmul.f32 %v706, %v1055
    %v1184 = vmul.f32 %v442, %v1056
    %v1185 = vmul.f32 %v531, %v1057
    %v1186 = vmul.f32 %v620, %v1058
    %v1187 = vmul.f32 %v709, %v1059
    %v1188 = vmul.f32 %v444, %v1060
    %v1189 = vmul.f32 %v533, %v1061
    %v1190 = vmul.f32 %v622, %v1062
    %v1191 = vmul.f32 %v711, %v1063
    %v1192 = vmul.f32 %v447, %v1064
    %v1193 = vmul.f32 %v536, %v1065
    %v1194 = vmul.f32 %v625, %v1066
    %v1195 = vmul.f32 %v714, %v1067
    %v1196 = vmul.f32 %v449, %v1068
    %v1197 = vmul.f32 %v538, %v1069
    %v1198 = vmul.f32 %v627, %v1070
    %v1199 = vmul.f32 %v716, %v1071
    %v1200 = vmul.f32 %v452, %v1072
    %v1201 = vmul.f32 %v541, %v1073
    %v1202 = vmul.f32 %v630, %v1074
    %v1203 = vmul.f32 %v719, %v1075
    %v1204 = vmul.f32 %v454, %v1076
    %v1205 = vmul.f32 %v543, %v1077
    %v1206 = vmul.f32 %v632, %v1078
    %v1207 = vmul.f32 %v721, %v1079
    %v1208 = vmul.f32 %v457, %v1080
    %v1209 = vmul.f32 %v546, %v1081
    %v1210 = vmul.f32 %v635, %v1082
    %v1211 = vmul.f32 %v724, %v1083
    %v1212 = vmul.f32 %v459, %v1084
    %v1213 = vmul.f32 %v548, %v1085
    %v1214 = vmul.f32 %v637, %v1086
    %v1215 = vmul.f32 %v726, %v1087
    %v1216 = vmul.f32 %v462, %v1088
    %v1217 = vmul.f32 %v551, %v1089
    %v1218 = vmul.f32 %v640, %v1090
    %v1219 = vmul.f32 %v729, %v1091
    %v1220 = vmul.f32 %v464, %v1092
    %v1221 = vmul.f32 %v553, %v1093
    %v1222 = vmul.f32 %v642, %v1094
    %v1223 = vmul.f32 %v731, %v1095
    %v1224 = vmul.f32 %v467, %v1096
    %v1225 = vmul.f32 %v556, %v1097
    %v1226 = vmul.f32 %v645, %v1098
    %v1227 = vmul.f32 %v734, %v1099
    %v1228 = vmul.f32 %v469, %v1100
    %v1229 = vmul.f32 %v558, %v1101
    %v1230 = vmul.f32 %v647, %v1102
    %v1231 = vmul.f32 %v736, %v1103
    %v1232 = vmul.f32 %v472, %v1104
    %v1233 = vmul.f32 %v561, %v1105
    %v1234 = vmul.f32 %v650, %v1106
    %v1235 = vmul.f32 %v739, %v1107
    %v1236 = vmul.f32 %v474, %v1108
    %v1237 = vmul.f32 %v563, %v1109
    %v1238 = vmul.f32 %v652, %v1110
    %v1239 = vmul.f32 %v741, %v1111
    %v1240 = vmul.f32 %v477, %v1112
    %v1241 = vmul.f32 %v566, %v1113
    %v1242 = vmul.f32 %v655, %v1114
    %v1243 = vmul.f32 %v744, %v1115
    %v1244 = vmul.f32 %v479, %v1116
    %v1245 = vmul.f32 %v568, %v1117
    %v1246 = vmul.f32 %v657, %v1118
    %v1247 = vmul.f32 %v746, %v1119
    %v1248 = vmul.f32 %v482, %v1120
    %v1249 = vmul.f32 %v571, %v1121
    %v1250 = vmul.f32 %v660, %v1122
    %v1251 = vmul.f32 %v749, %v1123
    %v1252 = vmul.f32 %v484, %v1124
    %v1253 = vmul.f32 %v573, %v1125
    %v1254 = vmul.f32 %v662, %v1126
    %v1255 = vmul.f32 %v751, %v1127
    %v1256 = vmul.f32 %v487, %v1128
    %v1257 = vmul.f32 %v576, %v1129
    %v1258 = vmul.f32 %v665, %v1130
    %v1259 = vmul.f32 %v754, %v1131
    %v1260 = vmul.f32 %v489, %v1132
    %v1261 = vmul.f32 %v578, %v1133
    %v1262 = vmul.f32 %v667, %v1134
    %v1263 = vmul.f32 %v756, %v1135
    %v1264 = vmul.f32 %v492, %v1136
    %v1265 = vmul.f32 %v581, %v1137
    %v1266 = vmul.f32 %v670, %v1138
    %v1267 = vmul.f32 %v759, %v1139
    %v1268 = vmul.f32 %v494, %v1140
    %v1269 = vmul.f32 %v583, %v1141
    %v1270 = vmul.f32 %v672, %v1142
    %v1271 = vmul.f32 %v761, %v1143
    %v1272 = vmul.f32 %v497, %v1144
    %v1273 = vmul.f32 %v586, %v1145
    %v1274 = vmul.f32 %v675, %v1146
    %v1275 = vmul.f32 %v764, %v1147
    %v1276 = vmul.f32 %v499, %v1148
    %v1277 = vmul.f32 %v588, %v1149
    %v1278 = vmul.f32 %v677, %v1150
    %v1279 = vmul.f32 %v766, %v1151
    %v1280 = vmul.f32 %v422, 0.5
    %v1281 = vmul.f32 %v511, 0.5
    %v1282 = vmul.f32 %v600, 0.5
    %v1283 = vmul.f32 %v689, 0.5
    %v1284 = vmul.f32 %v424, 0.5
    %v1285 = vmul.f32 %v513, 0.5
    %v1286 = vmul.f32 %v602, 0.5
    %v1287 = vmul.f32 %v691, 0.5
    %v1288 = vmul.f32 %v427, 0.5
    %v1289 = vmul.f32 %v516, 0.5
    %v1290 = vmul.f32 %v605, 0.5
    %v1291 = vmul.f32 %v694, 0.5
    %v1292 = vmul.f32 %v429, 0.5
    %v1293 = vmul.f32 %v518, 0.5
    %v1294 = vmul.f32 %v607, 0.5
    %v1295 = vmul.f32 %v696, 0.5
    %v1296 = vmul.f32 %v432, 0.5
    %v1297 = vmul.f32 %v521, 0.5
    %v1298 = vmul.f32 %v610, 0.5
    %v1299 = vmul.f32 %v699, 0.5
    %v1300 = vmul.f32 %v434, 0.5
    %v1301 = vmul.f32 %v523, 0.5
    %v1302 = vmul.f32 %v612, 0.5
    %v1303 = vmul.f32 %v701, 0.5
    %v1304 = vmul.f32 %v437, 0.5
    %v1305 = vmul.f32 %v526, 0.5
    %v1306 = vmul.f32 %v615, 0.5
    %v1307 = vmul.f32 %v704, 0.5
    %v1308 = vmul.f32 %v439, 0.5
    %v1309 = vmul.f32 %v528, 0.5
    %v1310 = vmul.f32 %v617, 0.5
    %v1311 = vmul.f32 %v706, 0.5
    %v1312 = vmul.f32 %v442, 0.5
    %v1313 = vmul.f32 %v531, 0.5
    %v1314 = vmul.f32 %v620, 0.5
    %v1315 = vmul.f32 %v709, 0.5
    %v1316 = vmul.f32 %v444, 0.5
    %v1317 = vmul.f32 %v533, 0.5
    %v1318 = vmul.f32 %v622, 0.5
    %v1319 = vmul.f32 %v711, 0.5
    %v1320 = vmul.f32 %v447, 0.5
    %v1321 = vmul.f32 %v536, 0.5
    %v1322 = vmul.f32 %v625, 0.5
    %v1323 = vmul.f32 %v714, 0.5
    %v1324 = vmul.f32 %v449, 0.5
    %v1325 = vmul.f32 %v538, 0.5
    %v1326 = vmul.f32 %v627, 0.5
    %v1327 = vmul.f32 %v716, 0.5
    %v1328 = vmul.f32 %v452, 0.5
    %v1329 = vmul.f32 %v541, 0.5
    %v1330 = vmul.f32 %v630, 0.5
    %v1331 = vmul.f32 %v719, 0.5
    %v1332 = vmul.f32 %v454, 0.5
    %v1333 = vmul.f32 %v543, 0.5
    %v1334 = vmul.f32 %v632, 0.5
    %v1335 = vmul.f32 %v721, 0.5
    %v1336 = vmul.f32 %v457, 0.5
    %v1337 = vmul.f32 %v546, 0.5
    %v1338 = vmul.f32 %v635, 0.5
    %v1339 = vmul.f32 %v724, 0.5
    %v1340 = vmul.f32 %v459, 0.5
    %v1341 = vmul.f32 %v548, 0.5
    %v1342 = vmul.f32 %v637, 0.5
    %v1343 = vmul.f32 %v726, 0.5
    %v1344 = vmul.f32 %v462, 0.5
    %v1345 = vmul.f32 %v551, 0.5
    %v1346 = vmul.f32 %v640, 0.5
    %v1347 = vmul.f32 %v729, 0.5
    %v1348 = vmul.f32 %v464, 0.5
    %v1349 = vmul.f32 %v553, 0.5
    %v1350 = vmul.f32 %v642, 0.5
    %v1351 = vmul.f32 %v731, 0.5
    %v1352 = vmul.f32 %v467, 0.5
    %v1353 = vmul.f32 %v556, 0.5
    %v1354 = vmul.f32 %v645, 0.5
    %v1355 = vmul.f32 %v734, 0.5
    %v1356 = vmul.f32 %v469, 0.5
    %v1357 = vmul.f32 %v558, 0.5
    %v1358 = vmul.f32 %v647, 0.5
    %v1359 = vmul.f32 %v736, 0.5
    %v1360 = vmul.f32 %v472, 0.5
    %v1361 = vmul.f32 %v561, 0.5
    %v1362 = vmul.f32 %v650, 0.5
    %v1363 = vmul.f32 %v739, 0.5
    %v1364 = vmul.f32 %v474, 0.5
    %v1365 = vmul.f32 %v563, 0.5
    %v1366 = vmul.f32 %v652, 0.5
    %v1367 = vmul.f32 %v741, 0.5
    %v1368 = vmul.f32 %v477, 0.5
    %v1369 = vmul.f32 %v566, 0.5
    %v1370 = vmul.f32 %v655, 0.5
    %v1371 = vmul.f32 %v744, 0.5
    %v1372 = vmul.f32 %v479, 0.5
    %v1373 = vmul.f32 %v568, 0.5
    %v1374 = vmul.f32 %v657, 0.5
    %v1375 = vmul.f32 %v746, 0.5
    %v1376 = vmul.f32 %v482, 0.5
    %v1377 = vmul.f32 %v571, 0.5
    %v1378 = vmul.f32 %v660, 0.5
    %v1379 = vmul.f32 %v749, 0.5
    %v1380 = vmul.f32 %v484, 0.5
    %v1381 = vmul.f32 %v573, 0.5
    %v1382 = vmul.f32 %v662, 0.5
    %v1383 = vmul.f32 %v751, 0.5
    %v1384 = vmul.f32 %v487, 0.5
    %v1385 = vmul.f32 %v576, 0.5
    %v1386 = vmul.f32 %v665, 0.5
    %v1387 = vmul.f32 %v754, 0.5
    %v1388 = vmul.f32 %v489, 0.5
    %v1389 = vmul.f32 %v578, 0.5
    %v1390 = vmul.f32 %v667, 0.5
    %v1391 = vmul.f32 %v756, 0.5
    %v1392 = vmul.f32 %v492, 0.5
    %v1393 = vmul.f32 %v581, 0.5
    %v1394 = vmul.f32 %v670, 0.5
    %v1395 = vmul.f32 %v759, 0.5
    %v1396 = vmul.f32 %v494, 0.5
    %v1397 = vmul.f32 %v583, 0.5
    %v1398 = vmul.f32 %v672, 0.5
    %v1399 = vmul.f32 %v761, 0.5
    %v1400 = vmul.f32 %v497, 0.5
    %v1401 = vmul.f32 %v586, 0.5
    %v1402 = vmul.f32 %v675, 0.5
    %v1403 = vmul.f32 %v764, 0.5
    %v1404 = vmul.f32 %v499, 0.5
    %v1405 = vmul.f32 %v588, 0.5
    %v1406 = vmul.f32 %v677, 0.5
    %v1407 = vmul.f32 %v766, 0.5
    %v1408 = vtanh.pop %v1152
    %v1409 = vtanh.pop %v1153
    %v1410 = vtanh.pop %v1154
    %v1411 = vtanh.pop %v1155
    %v1412 = vtanh.pop %v1156
    %v1413 = vtanh.pop %v1157
    %v1414 = vtanh.pop %v1158
    %v1415 = vtanh.pop %v1159
    %v1416 = vtanh.pop %v1160
    %v1417 = vtanh.pop %v1161
    %v1418 = vtanh.pop %v1162
    %v1419 = vtanh.pop %v1163
    %v1420 = vtanh.pop %v1164
    %v1421 = vtanh.pop %v1165
    %v1422 = vtanh.pop %v1166
    %v1423 = vtanh.pop %v1167
    %v1424 = vtanh.pop %v1168
    %v1425 = vtanh.pop %v1169
    %v1426 = vtanh.pop %v1170
    %v1427 = vtanh.pop %v1171
    %v1428 = vtanh.pop %v1172
    %v1429 = vtanh.pop %v1173
    %v1430 = vtanh.pop %v1174
    %v1431 = vtanh.pop %v1175
    %v1432 = vtanh.pop %v1176
    %v1433 = vtanh.pop %v1177
    %v1434 = vtanh.pop %v1178
    %v1435 = vtanh.pop %v1179
    %v1436 = vtanh.pop %v1180
    %v1437 = vtanh.pop %v1181
    %v1438 = vtanh.pop %v1182
    %v1439 = vtanh.pop %v1183
    %v1440 = vtanh.pop %v1184
    %v1441 = vtanh.pop %v1185
    %v1442 = vtanh.pop %v1186
    %v1443 = vtanh.pop %v1187
    %v1444 = vtanh.pop %v1188
    %v1445 = vtanh.pop %v1189
    %v1446 = vtanh.pop %v1190
    %v1447 = vtanh.pop %v1191
    %v1448 = vtanh.pop %v1192
    %v1449 = vtanh.pop %v1193
    %v1450 = vtanh.pop %v1194
    %v1451 = vtanh.pop %v1195
    %v1452 = vtanh.pop %v1196
    %v1453 = vtanh.pop %v1197
    %v1454 = vtanh.pop %v1198
    %v1455 = vtanh.pop %v1199
    %v1456 = vtanh.pop %v1200
    %v1457 = vtanh.pop %v1201
    %v1458 = vtanh.pop %v1202
    %v1459 = vtanh.pop %v1203
    %v1460 = vtanh.pop %v1204
    %v1461 = vtanh.pop %v1205
    %v1462 = vtanh.pop %v1206
    %v1463 = vtanh.pop %v1207
    %v1464 = vtanh.pop %v1208
    %v1465 = vtanh.pop %v1209
    %v1466 = vtanh.pop %v1210
    %v1467 = vtanh.pop %v1211
    %v1468 = vtanh.pop %v1212
    %v1469 = vtanh.pop %v1213
    %v1470 = vtanh.pop %v1214
    %v1471 = vtanh.pop %v1215
    %v1472 = vtanh.pop %v1216
    %v1473 = vtanh.pop %v1217
    %v1474 = vtanh.pop %v1218
    %v1475 = vtanh.pop %v1219
    %v1476 = vtanh.pop %v1220
    %v1477 = vtanh.pop %v1221
    %v1478 = vtanh.pop %v1222
    %v1479 = vtanh.pop %v1223
    %v1480 = vtanh.pop %v1224
    %v1481 = vtanh.pop %v1225
    %v1482 = vtanh.pop %v1226
    %v1483 = vtanh.pop %v1227
    %v1484 = vtanh.pop %v1228
    %v1485 = vtanh.pop %v1229
    %v1486 = vtanh.pop %v1230
    %v1487 = vtanh.pop %v1231
    %v1488 = vtanh.pop %v1232
    %v1489 = vtanh.pop %v1233
    %v1490 = vtanh.pop %v1234
    %v1491 = vtanh.pop %v1235
    %v1492 = vtanh.pop %v1236
    %v1493 = vtanh.pop %v1237
    %v1494 = vtanh.pop %v1238
    %v1495 = vtanh.pop %v1239
    %v1496 = vtanh.pop %v1240
    %v1497 = vtanh.pop %v1241
    %v1498 = vtanh.pop %v1242
    %v1499 = vtanh.pop %v1243
    %v1500 = vtanh.pop %v1244
    %v1501 = vtanh.pop %v1245
    %v1502 = vtanh.pop %v1246
    %v1503 = vtanh.pop %v1247
    %v1504 = vtanh.pop %v1248
    %v1505 = vtanh.pop %v1249
    %v1506 = vtanh.pop %v1250
    %v1507 = vtanh.pop %v1251
    %v1508 = vtanh.pop %v1252
    %v1509 = vtanh.pop %v1253
    %v1510 = vtanh.pop %v1254
    %v1511 = vtanh.pop %v1255
    %v1512 = vtanh.pop %v1256
    %v1513 = vtanh.pop %v1257
    %v1514 = vtanh.pop %v1258
    %v1515 = vtanh.pop %v1259
    %v1516 = vtanh.pop %v1260
    %v1517 = vtanh.pop %v1261
    %v1518 = vtanh.pop %v1262
    %v1519 = vtanh.pop %v1263
    %v1520 = vtanh.pop %v1264
    %v1521 = vtanh.pop %v1265
    %v1522 = vtanh.pop %v1266
    %v1523 = vtanh.pop %v1267
    %v1524 = vtanh.pop %v1268
    %v1525 = vtanh.pop %v1269
    %v1526 = vtanh.pop %v1270
    %v1527 = vtanh.pop %v1271
    %v1528 = vtanh.pop %v1272
    %v1529 = vtanh.pop %v1273
    %v1530 = vtanh.pop %v1274
    %v1531 = vtanh.pop %v1275
    %v1532 = vtanh.pop %v1276
    %v1533 = vtanh.pop %v1277
    %v1534 = vtanh.pop %v1278
    %v1535 = vtanh.pop %v1279
    %v1536 = vadd.f32 %v1408, 1.0
    %v1537 = vadd.f32 %v1409, 1.0
    %v1538 = vadd.f32 %v1410, 1.0
    %v1539 = vadd.f32 %v1411, 1.0
    %v1540 = vadd.f32 %v1412, 1.0
    %v1541 = vadd.f32 %v1413, 1.0
    %v1542 = vadd.f32 %v1414, 1.0
    %v1543 = vadd.f32 %v1415, 1.0
    %v1544 = vadd.f32 %v1416, 1.0
    %v1545 = vadd.f32 %v1417, 1.0
    %v1546 = vadd.f32 %v1418, 1.0
    %v1547 = vadd.f32 %v1419, 1.0
    %v1548 = vadd.f32 %v1420, 1.0
    %v1549 = vadd.f32 %v1421, 1.0
    %v1550 = vadd.f32 %v1422, 1.0
    %v1551 = vadd.f32 %v1423, 1.0
    %v1552 = vadd.f32 %v1424, 1.0
    %v1553 = vadd.f32 %v1425, 1.0
    %v1554 = vadd.f32 %v1426, 1.0
    %v1555 = vadd.f32 %v1427, 1.0
    %v1556 = vadd.f32 %v1428, 1.0
    %v1557 = vadd.f32 %v1429, 1.0
    %v1558 = vadd.f32 %v1430, 1.0
    %v1559 = vadd.f32 %v1431, 1.0
    %v1560 = vadd.f32 %v1432, 1.0
    %v1561 = vadd.f32 %v1433, 1.0
    %v1562 = vadd.f32 %v1434, 1.0
    %v1563 = vadd.f32 %v1435, 1.0
    %v1564 = vadd.f32 %v1436, 1.0
    %v1565 = vadd.f32 %v1437, 1.0
    %v1566 = vadd.f32 %v1438, 1.0
    %v1567 = vadd.f32 %v1439, 1.0
    %v1568 = vadd.f32 %v1440, 1.0
    %v1569 = vadd.f32 %v1441, 1.0
    %v1570 = vadd.f32 %v1442, 1.0
    %v1571 = vadd.f32 %v1443, 1.0
    %v1572 = vadd.f32 %v1444, 1.0
    %v1573 = vadd.f32 %v1445, 1.0
    %v1574 = vadd.f32 %v1446, 1.0
    %v1575 = vadd.f32 %v1447, 1.0
    %v1576 = vadd.f32 %v1448, 1.0
    %v1577 = vadd.f32 %v1449, 1.0
    %v1578 = vadd.f32 %v1450, 1.0
    %v1579 = vadd.f32 %v1451, 1.0
    %v1580 = vadd.f32 %v1452, 1.0
    %v1581 = vadd.f32 %v1453, 1.0
    %v1582 = vadd.f32 %v1454, 1.0
    %v1583 = vadd.f32 %v1455, 1.0
    %v1584 = vadd.f32 %v1456, 1.0
    %v1585 = vadd.f32 %v1457, 1.0
    %v1586 = vadd.f32 %v1458, 1.0
    %v1587 = vadd.f32 %v1459, 1.0
    %v1588 = vadd.f32 %v1460, 1.0
    %v1589 = vadd.f32 %v1461, 1.0
    %v1590 = vadd.f32 %v1462, 1.0
    %v1591 = vadd.f32 %v1463, 1.0
    %v1592 = vadd.f32 %v1464, 1.0
    %v1593 = vadd.f32 %v1465, 1.0
    %v1594 = vadd.f32 %v1466, 1.0
    %v1595 = vadd.f32 %v1467, 1.0
    %v1596 = vadd.f32 %v1468, 1.0
    %v1597 = vadd.f32 %v1469, 1.0
    %v1598 = vadd.f32 %v1470, 1.0
    %v1599 = vadd.f32 %v1471, 1.0
    %v1600 = vadd.f32 %v1472, 1.0
    %v1601 = vadd.f32 %v1473, 1.0
    %v1602 = vadd.f32 %v1474, 1.0
    %v1603 = vadd.f32 %v1475, 1.0
    %v1604 = vadd.f32 %v1476, 1.0
    %v1605 = vadd.f32 %v1477, 1.0
    %v1606 = vadd.f32 %v1478, 1.0
    %v1607 = vadd.f32 %v1479, 1.0
    %v1608 = vadd.f32 %v1480, 1.0
    %v1609 = vadd.f32 %v1481, 1.0
    %v1610 = vadd.f32 %v1482, 1.0
    %v1611 = vadd.f32 %v1483, 1.0
    %v1612 = vadd.f32 %v1484, 1.0
    %v1613 = vadd.f32 %v1485, 1.0
    %v1614 = vadd.f32 %v1486, 1.0
    %v1615 = vadd.f32 %v1487, 1.0
    %v1616 = vadd.f32 %v1488, 1.0
    %v1617 = vadd.f32 %v1489, 1.0
    %v1618 = vadd.f32 %v1490, 1.0
    %v1619 = vadd.f32 %v1491, 1.0
    %v1620 = vadd.f32 %v1492, 1.0
    %v1621 = vadd.f32 %v1493, 1.0
    %v1622 = vadd.f32 %v1494, 1.0
    %v1623 = vadd.f32 %v1495, 1.0
    %v1624 = vadd.f32 %v1496, 1.0
    %v1625 = vadd.f32 %v1497, 1.0
    %v1626 = vadd.f32 %v1498, 1.0
    %v1627 = vadd.f32 %v1499, 1.0
    %v1628 = vadd.f32 %v1500, 1.0
    %v1629 = vadd.f32 %v1501, 1.0
    %v1630 = vadd.f32 %v1502, 1.0
    %v1631 = vadd.f32 %v1503, 1.0
    %v1632 = vadd.f32 %v1504, 1.0
    %v1633 = vadd.f32 %v1505, 1.0
    %v1634 = vadd.f32 %v1506, 1.0
    %v1635 = vadd.f32 %v1507, 1.0
    %v1636 = vadd.f32 %v1508, 1.0
    %v1637 = vadd.f32 %v1509, 1.0
    %v1638 = vadd.f32 %v1510, 1.0
    %v1639 = vadd.f32 %v1511, 1.0
    %v1640 = vadd.f32 %v1512, 1.0
    %v1641 = vadd.f32 %v1513, 1.0
    %v1642 = vadd.f32 %v1514, 1.0
    %v1643 = vadd.f32 %v1515, 1.0
    %v1644 = vadd.f32 %v1516, 1.0
    %v1645 = vadd.f32 %v1517, 1.0
    %v1646 = vadd.f32 %v1518, 1.0
    %v1647 = vadd.f32 %v1519, 1.0
    %v1648 = vadd.f32 %v1520, 1.0
    %v1649 = vadd.f32 %v1521, 1.0
    %v1650 = vadd.f32 %v1522, 1.0
    %v1651 = vadd.f32 %v1523, 1.0
    %v1652 = vadd.f32 %v1524, 1.0
    %v1653 = vadd.f32 %v1525, 1.0
    %v1654 = vadd.f32 %v1526, 1.0
    %v1655 = vadd.f32 %v1527, 1.0
    %v1656 = vadd.f32 %v1528, 1.0
    %v1657 = vadd.f32 %v1529, 1.0
    %v1658 = vadd.f32 %v1530, 1.0
    %v1659 = vadd.f32 %v1531, 1.0
    %v1660 = vadd.f32 %v1532, 1.0
    %v1661 = vadd.f32 %v1533, 1.0
    %v1662 = vadd.f32 %v1534, 1.0
    %v1663 = vadd.f32 %v1535, 1.0
    %v1664 = vmul.f32 %v1280, %v1536
    %v1665 = vmul.f32 %v1281, %v1537
    %v1666 = vmul.f32 %v1282, %v1538
    %v1667 = vmul.f32 %v1283, %v1539
    %v1668 = vmul.f32 %v1284, %v1540
    %v1669 = vmul.f32 %v1285, %v1541
    %v1670 = vmul.f32 %v1286, %v1542
    %v1671 = vmul.f32 %v1287, %v1543
    %v1672 = vmul.f32 %v1288, %v1544
    %v1673 = vmul.f32 %v1289, %v1545
    %v1674 = vmul.f32 %v1290, %v1546
    %v1675 = vmul.f32 %v1291, %v1547
    %v1676 = vmul.f32 %v1292, %v1548
    %v1677 = vmul.f32 %v1293, %v1549
    %v1678 = vmul.f32 %v1294, %v1550
    %v1679 = vmul.f32 %v1295, %v1551
    %v1680 = vmul.f32 %v1296, %v1552
    %v1681 = vmul.f32 %v1297, %v1553
    %v1682 = vmul.f32 %v1298, %v1554
    %v1683 = vmul.f32 %v1299, %v1555
    %v1684 = vmul.f32 %v1300, %v1556
    %v1685 = vmul.f32 %v1301, %v1557
    %v1686 = vmul.f32 %v1302, %v1558
    %v1687 = vmul.f32 %v1303, %v1559
    %v1688 = vmul.f32 %v1304, %v1560
    %v1689 = vmul.f32 %v1305, %v1561
    %v1690 = vmul.f32 %v1306, %v1562
    %v1691 = vmul.f32 %v1307, %v1563
    %v1692 = vmul.f32 %v1308, %v1564
    %v1693 = vmul.f32 %v1309, %v1565
    %v1694 = vmul.f32 %v1310, %v1566
    %v1695 = vmul.f32 %v1311, %v1567
    %v1696 = vmul.f32 %v1312, %v1568
    %v1697 = vmul.f32 %v1313, %v1569
    %v1698 = vmul.f32 %v1314, %v1570
    %v1699 = vmul.f32 %v1315, %v1571
    %v1700 = vmul.f32 %v1316, %v1572
    %v1701 = vmul.f32 %v1317, %v1573
    %v1702 = vmul.f32 %v1318, %v1574
    %v1703 = vmul.f32 %v1319, %v1575
    %v1704 = vmul.f32 %v1320, %v1576
    %v1705 = vmul.f32 %v1321, %v1577
    %v1706 = vmul.f32 %v1322, %v1578
    %v1707 = vmul.f32 %v1323, %v1579
    %v1708 = vmul.f32 %v1324, %v1580
    %v1709 = vmul.f32 %v1325, %v1581
    %v1710 = vmul.f32 %v1326, %v1582
    %v1711 = vmul.f32 %v1327, %v1583
    %v1712 = vmul.f32 %v1328, %v1584
    %v1713 = vmul.f32 %v1329, %v1585
    %v1714 = vmul.f32 %v1330, %v1586
    %v1715 = vmul.f32 %v1331, %v1587
    %v1716 = vmul.f32 %v1332, %v1588
    %v1717 = vmul.f32 %v1333, %v1589
    %v1718 = vmul.f32 %v1334, %v1590
    %v1719 = vmul.f32 %v1335, %v1591
    %v1720 = vmul.f32 %v1336, %v1592
    %v1721 = vmul.f32 %v1337, %v1593
    %v1722 = vmul.f32 %v1338, %v1594
    %v1723 = vmul.f32 %v1339, %v1595
    %v1724 = vmul.f32 %v1340, %v1596
    %v1725 = vmul.f32 %v1341, %v1597
    %v1726 = vmul.f32 %v1342, %v1598
    %v1727 = vmul.f32 %v1343, %v1599
    %v1728 = vmul.f32 %v1344, %v1600
    %v1729 = vmul.f32 %v1345, %v1601
    %v1730 = vmul.f32 %v1346, %v1602
    %v1731 = vmul.f32 %v1347, %v1603
    %v1732 = vmul.f32 %v1348, %v1604
    %v1733 = vmul.f32 %v1349, %v1605
    %v1734 = vmul.f32 %v1350, %v1606
    %v1735 = vmul.f32 %v1351, %v1607
    %v1736 = vmul.f32 %v1352, %v1608
    %v1737 = vmul.f32 %v1353, %v1609
    %v1738 = vmul.f32 %v1354, %v1610
    %v1739 = vmul.f32 %v1355, %v1611
    %v1740 = vmul.f32 %v1356, %v1612
    %v1741 = vmul.f32 %v1357, %v1613
    %v1742 = vmul.f32 %v1358, %v1614
    %v1743 = vmul.f32 %v1359, %v1615
    %v1744 = vmul.f32 %v1360, %v1616
    %v1745 = vmul.f32 %v1361, %v1617
    %v1746 = vmul.f32 %v1362, %v1618
    %v1747 = vmul.f32 %v1363, %v1619
    %v1748 = vmul.f32 %v1364, %v1620
    %v1749 = vmul.f32 %v1365, %v1621
    %v1750 = vmul.f32 %v1366, %v1622
    %v1751 = vmul.f32 %v1367, %v1623
    %v1752 = vmul.f32 %v1368, %v1624
    %v1753 = vmul.f32 %v1369, %v1625
    %v1754 = vmul.f32 %v1370, %v1626
    %v1755 = vmul.f32 %v1371, %v1627
    %v1756 = vmul.f32 %v1372, %v1628
    %v1757 = vmul.f32 %v1373, %v1629
    %v1758 = vmul.f32 %v1374, %v1630
    %v1759 = vmul.f32 %v1375, %v1631
    %v1760 = vmul.f32 %v1376, %v1632
    %v1761 = vmul.f32 %v1377, %v1633
    %v1762 = vmul.f32 %v1378, %v1634
    %v1763 = vmul.f32 %v1379, %v1635
    %v1764 = vmul.f32 %v1380, %v1636
    %v1765 = vmul.f32 %v1381, %v1637
    %v1766 = vmul.f32 %v1382, %v1638
    %v1767 = vmul.f32 %v1383, %v1639
    %v1768 = vmul.f32 %v1384, %v1640
    %v1769 = vmul.f32 %v1385, %v1641
    %v1770 = vmul.f32 %v1386, %v1642
    %v1771 = vmul.f32 %v1387, %v1643
    %v1772 = vmul.f32 %v1388, %v1644
    %v1773 = vmul.f32 %v1389, %v1645
    %v1774 = vmul.f32 %v1390, %v1646
    %v1775 = vmul.f32 %v1391, %v1647
    %v1776 = vmul.f32 %v1392, %v1648
    %v1777 = vmul.f32 %v1393, %v1649
    %v1778 = vmul.f32 %v1394, %v1650
    %v1779 = vmul.f32 %v1395, %v1651
    %v1780 = vmul.f32 %v1396, %v1652
    %v1781 = vmul.f32 %v1397, %v1653
    %v1782 = vmul.f32 %v1398, %v1654
    %v1783 = vmul.f32 %v1399, %v1655
    %v1784 = vmul.f32 %v1400, %v1656
    %v1785 = vmul.f32 %v1401, %v1657
    %v1786 = vmul.f32 %v1402, %v1658
    %v1787 = vmul.f32 %v1403, %v1659
    %v1788 = vmul.f32 %v1404, %v1660
    %v1789 = vmul.f32 %v1405, %v1661
    %v1790 = vmul.f32 %v1406, %v1662
    %v1791 = vmul.f32 %v1407, %v1663
    %v1792 = vpack.c.bf16 %v1668, %v1664
    %v1793 = vpack.c.bf16 %v1669, %v1665
    %v1794 = vpack.c.bf16 %v1670, %v1666
    %v1795 = vpack.c.bf16 %v1671, %v1667
    %v1796 = vpack.c.bf16 %v1676, %v1672
    %v1797 = vpack.c.bf16 %v1677, %v1673
    %v1798 = vpack.c.bf16 %v1678, %v1674
    %v1799 = vpack.c.bf16 %v1679, %v1675
    %v1800 = vpack.c.bf16 %v1684, %v1680
    %v1801 = vpack.c.bf16 %v1685, %v1681
    %v1802 = vpack.c.bf16 %v1686, %v1682
    %v1803 = vpack.c.bf16 %v1687, %v1683
    %v1804 = vpack.c.bf16 %v1692, %v1688
    %v1805 = vpack.c.bf16 %v1693, %v1689
    %v1806 = vpack.c.bf16 %v1694, %v1690
    %v1807 = vpack.c.bf16 %v1695, %v1691
    %v1808 = vpack.c.bf16 %v1700, %v1696
    %v1809 = vpack.c.bf16 %v1701, %v1697
    %v1810 = vpack.c.bf16 %v1702, %v1698
    %v1811 = vpack.c.bf16 %v1703, %v1699
    %v1812 = vpack.c.bf16 %v1708, %v1704
    %v1813 = vpack.c.bf16 %v1709, %v1705
    %v1814 = vpack.c.bf16 %v1710, %v1706
    %v1815 = vpack.c.bf16 %v1711, %v1707
    %v1816 = vpack.c.bf16 %v1716, %v1712
    %v1817 = vpack.c.bf16 %v1717, %v1713
    %v1818 = vpack.c.bf16 %v1718, %v1714
    %v1819 = vpack.c.bf16 %v1719, %v1715
    %v1820 = vpack.c.bf16 %v1724, %v1720
    %v1821 = vpack.c.bf16 %v1725, %v1721
    %v1822 = vpack.c.bf16 %v1726, %v1722
    %v1823 = vpack.c.bf16 %v1727, %v1723
    %v1824 = vpack.c.bf16 %v1732, %v1728
    %v1825 = vpack.c.bf16 %v1733, %v1729
    %v1826 = vpack.c.bf16 %v1734, %v1730
    %v1827 = vpack.c.bf16 %v1735, %v1731
    %v1828 = vpack.c.bf16 %v1740, %v1736
    %v1829 = vpack.c.bf16 %v1741, %v1737
    %v1830 = vpack.c.bf16 %v1742, %v1738
    %v1831 = vpack.c.bf16 %v1743, %v1739
    %v1832 = vpack.c.bf16 %v1748, %v1744
    %v1833 = vpack.c.bf16 %v1749, %v1745
    %v1834 = vpack.c.bf16 %v1750, %v1746
    %v1835 = vpack.c.bf16 %v1751, %v1747
    %v1836 = vpack.c.bf16 %v1756, %v1752
    %v1837 = vpack.c.bf16 %v1757, %v1753
    %v1838 = vpack.c.bf16 %v1758, %v1754
    %v1839 = vpack.c.bf16 %v1759, %v1755
    %v1840 = vpack.c.bf16 %v1764, %v1760
    %v1841 = vpack.c.bf16 %v1765, %v1761
    %v1842 = vpack.c.bf16 %v1766, %v1762
    %v1843 = vpack.c.bf16 %v1767, %v1763
    %v1844 = vpack.c.bf16 %v1772, %v1768
    %v1845 = vpack.c.bf16 %v1773, %v1769
    %v1846 = vpack.c.bf16 %v1774, %v1770
    %v1847 = vpack.c.bf16 %v1775, %v1771
    %v1848 = vpack.c.bf16 %v1780, %v1776
    %v1849 = vpack.c.bf16 %v1781, %v1777
    %v1850 = vpack.c.bf16 %v1782, %v1778
    %v1851 = vpack.c.bf16 %v1783, %v1779
    %v1852 = vpack.c.bf16 %v1788, %v1784
    %v1853 = vpack.c.bf16 %v1789, %v1785
    %v1854 = vpack.c.bf16 %v1790, %v1786
    %v1855 = vpack.c.bf16 %v1791, %v1787
    %v1856 = vld [vmem:[#allocation8] sm:$0xf]
    %v1857 = vld [vmem:[#allocation8 + $0x4] sm:$0xf]
    %v1858 = vld [vmem:[#allocation8 + $0x8] sm:$0xf]
    %v1859 = vld [vmem:[#allocation8 + $0xc] sm:$0xf]
    %v1860 = vld [vmem:[#allocation8 + $0x10] sm:$0xf]
    %v1861 = vld [vmem:[#allocation8 + $0x14] sm:$0xf]
    %v1862 = vld [vmem:[#allocation8 + $0x18] sm:$0xf]
    %v1863 = vld [vmem:[#allocation8 + $0x1c] sm:$0xf]
    %v1864 = vld [vmem:[#allocation8 + $0x20] sm:$0xf]
    %v1865 = vld [vmem:[#allocation8 + $0x24] sm:$0xf]
    %v1866 = vld [vmem:[#allocation8 + $0x28] sm:$0xf]
    %v1867 = vld [vmem:[#allocation8 + $0x2c] sm:$0xf]
    %v1868 = vld [vmem:[#allocation8 + $0x30] sm:$0xf]
    %v1869 = vld [vmem:[#allocation8 + $0x34] sm:$0xf]
    %v1870 = vld [vmem:[#allocation8 + $0x38] sm:$0xf]
    %v1871 = vld [vmem:[#allocation8 + $0x3c] sm:$0xf]
    %v1872 = vld [vmem:[#allocation8 + $0x40] sm:$0xf]
    %v1873 = vld [vmem:[#allocation8 + $0x44] sm:$0xf]
    %v1874 = vld [vmem:[#allocation8 + $0x48] sm:$0xf]
    %v1875 = vld [vmem:[#allocation8 + $0x4c] sm:$0xf]
    %v1876 = vld [vmem:[#allocation8 + $0x50] sm:$0xf]
    %v1877 = vld [vmem:[#allocation8 + $0x54] sm:$0xf]
    %v1878 = vld [vmem:[#allocation8 + $0x58] sm:$0xf]
    %v1879 = vld [vmem:[#allocation8 + $0x5c] sm:$0xf]
    %v1880 = vld [vmem:[#allocation8 + $0x60] sm:$0xf]
    %v1881 = vld [vmem:[#allocation8 + $0x64] sm:$0xf]
    %v1882 = vld [vmem:[#allocation8 + $0x68] sm:$0xf]
    %v1883 = vld [vmem:[#allocation8 + $0x6c] sm:$0xf]
    %v1884 = vld [vmem:[#allocation8 + $0x70] sm:$0xf]
    %v1885 = vld [vmem:[#allocation8 + $0x74] sm:$0xf]
    %v1886 = vld [vmem:[#allocation8 + $0x78] sm:$0xf]
    %v1887 = vld [vmem:[#allocation8 + $0x7c] sm:$0xf]
    %v1888 = vld [vmem:[#allocation8 + $0x80] sm:$0xf]
    %v1889 = vld [vmem:[#allocation8 + $0x84] sm:$0xf]
    %v1890 = vld [vmem:[#allocation8 + $0x88] sm:$0xf]
    %v1891 = vld [vmem:[#allocation8 + $0x8c] sm:$0xf]
    %v1892 = vld [vmem:[#allocation8 + $0x90] sm:$0xf]
    %v1893 = vld [vmem:[#allocation8 + $0x94] sm:$0xf]
    %v1894 = vld [vmem:[#allocation8 + $0x98] sm:$0xf]
    %v1895 = vld [vmem:[#allocation8 + $0x9c] sm:$0xf]
    %v1896 = vld [vmem:[#allocation8 + $0xa0] sm:$0xf]
    %v1897 = vld [vmem:[#allocation8 + $0xa4] sm:$0xf]
    %v1898 = vld [vmem:[#allocation8 + $0xa8] sm:$0xf]
    %v1899 = vld [vmem:[#allocation8 + $0xac] sm:$0xf]
    %v1900 = vld [vmem:[#allocation8 + $0xb0] sm:$0xf]
    %v1901 = vld [vmem:[#allocation8 + $0xb4] sm:$0xf]
    %v1902 = vld [vmem:[#allocation8 + $0xb8] sm:$0xf]
    %v1903 = vld [vmem:[#allocation8 + $0xbc] sm:$0xf]
    %v1904 = vld [vmem:[#allocation8 + $0xc0] sm:$0xf]
    %v1905 = vld [vmem:[#allocation8 + $0xc4] sm:$0xf]
    %v1906 = vld [vmem:[#allocation8 + $0xc8] sm:$0xf]
    %v1907 = vld [vmem:[#allocation8 + $0xcc] sm:$0xf]
    %v1908 = vld [vmem:[#allocation8 + $0xd0] sm:$0xf]
    %v1909 = vld [vmem:[#allocation8 + $0xd4] sm:$0xf]
    %v1910 = vld [vmem:[#allocation8 + $0xd8] sm:$0xf]
    %v1911 = vld [vmem:[#allocation8 + $0xdc] sm:$0xf]
    %v1912 = vld [vmem:[#allocation8 + $0xe0] sm:$0xf]
    %v1913 = vld [vmem:[#allocation8 + $0xe4] sm:$0xf]
    %v1914 = vld [vmem:[#allocation8 + $0xe8] sm:$0xf]
    %v1915 = vld [vmem:[#allocation8 + $0xec] sm:$0xf]
    %v1916 = vld [vmem:[#allocation8 + $0xf0] sm:$0xf]
    %v1917 = vld [vmem:[#allocation8 + $0xf4] sm:$0xf]
    %v1918 = vld [vmem:[#allocation8 + $0xf8] sm:$0xf]
    %v1919 = vld [vmem:[#allocation8 + $0xfc] sm:$0xf]
    %v1920 = vld [vmem:[%s4] sm:$0x1]
    %v1922 = vperm.slane %v1920, 0
    %v1988 = vunpack.c.l.b16 %v1856
    %v1989 = vunpack.c.l.b16 %v1857
    %v1990 = vunpack.c.l.b16 %v1858
    %v1991 = vunpack.c.l.b16 %v1859
    %v1992 = vunpack.c.l.b16 %v1860
    %v1993 = vunpack.c.l.b16 %v1861
    %v1994 = vunpack.c.l.b16 %v1862
    %v1995 = vunpack.c.l.b16 %v1863
    %v1996 = vunpack.c.l.b16 %v1864
    %v1997 = vunpack.c.l.b16 %v1865
    %v1998 = vunpack.c.l.b16 %v1866
    %v1999 = vunpack.c.l.b16 %v1867
    %v2000 = vunpack.c.l.b16 %v1868
    %v2001 = vunpack.c.l.b16 %v1869
    %v2002 = vunpack.c.l.b16 %v1870
    %v2003 = vunpack.c.l.b16 %v1871
    %v2004 = vunpack.c.l.b16 %v1872
    %v2005 = vunpack.c.l.b16 %v1873
    %v2006 = vunpack.c.l.b16 %v1874
    %v2007 = vunpack.c.l.b16 %v1875
    %v2008 = vunpack.c.l.b16 %v1876
    %v2009 = vunpack.c.l.b16 %v1877
    %v2010 = vunpack.c.l.b16 %v1878
    %v2011 = vunpack.c.l.b16 %v1879
    %v2012 = vunpack.c.l.b16 %v1880
    %v2013 = vunpack.c.l.b16 %v1881
    %v2014 = vunpack.c.l.b16 %v1882
    %v2015 = vunpack.c.l.b16 %v1883
    %v2016 = vunpack.c.l.b16 %v1884
    %v2017 = vunpack.c.l.b16 %v1885
    %v2018 = vunpack.c.l.b16 %v1886
    %v2019 = vunpack.c.l.b16 %v1887
    %v2020 = vunpack.c.l.b16 %v1888
    %v2021 = vunpack.c.l.b16 %v1889
    %v2022 = vunpack.c.l.b16 %v1890
    %v2023 = vunpack.c.l.b16 %v1891
    %v2024 = vunpack.c.l.b16 %v1892
    %v2025 = vunpack.c.l.b16 %v1893
    %v2026 = vunpack.c.l.b16 %v1894
    %v2027 = vunpack.c.l.b16 %v1895
    %v2028 = vunpack.c.l.b16 %v1896
    %v2029 = vunpack.c.l.b16 %v1897
    %v2030 = vunpack.c.l.b16 %v1898
    %v2031 = vunpack.c.l.b16 %v1899
    %v2032 = vunpack.c.l.b16 %v1900
    %v2033 = vunpack.c.l.b16 %v1901
    %v2034 = vunpack.c.l.b16 %v1902
    %v2035 = vunpack.c.l.b16 %v1903
    %v2036 = vunpack.c.l.b16 %v1904
    %v2037 = vunpack.c.l.b16 %v1905
    %v2038 = vunpack.c.l.b16 %v1906
    %v2039 = vunpack.c.l.b16 %v1907
    %v2040 = vunpack.c.l.b16 %v1908
    %v2041 = vunpack.c.l.b16 %v1909
    %v2042 = vunpack.c.l.b16 %v1910
    %v2043 = vunpack.c.l.b16 %v1911
    %v2044 = vunpack.c.l.b16 %v1912
    %v2045 = vunpack.c.l.b16 %v1913
    %v2046 = vunpack.c.l.b16 %v1914
    %v2047 = vunpack.c.l.b16 %v1915
    %v2048 = vunpack.c.l.b16 %v1916
    %v2049 = vunpack.c.l.b16 %v1917
    %v2050 = vunpack.c.l.b16 %v1918
    %v2051 = vunpack.c.l.b16 %v1919
    %v2052 = vpack.c.b16 %v1989, %v1988
    %v2053 = vpack.c.b16 %v1991, %v1990
    %v2054 = vpack.c.b16 %v1993, %v1992
    %v2055 = vpack.c.b16 %v1995, %v1994
    %v2056 = vpack.c.b16 %v1997, %v1996
    %v2057 = vpack.c.b16 %v1999, %v1998
    %v2058 = vpack.c.b16 %v2001, %v2000
    %v2059 = vpack.c.b16 %v2003, %v2002
    %v2060 = vpack.c.b16 %v2005, %v2004
    %v2061 = vpack.c.b16 %v2007, %v2006
    %v2062 = vpack.c.b16 %v2009, %v2008
    %v2063 = vpack.c.b16 %v2011, %v2010
    %v2064 = vpack.c.b16 %v2013, %v2012
    %v2065 = vpack.c.b16 %v2015, %v2014
    %v2066 = vpack.c.b16 %v2017, %v2016
    %v2067 = vpack.c.b16 %v2019, %v2018
    %v2068 = vpack.c.b16 %v2021, %v2020
    %v2069 = vpack.c.b16 %v2023, %v2022
    %v2070 = vpack.c.b16 %v2025, %v2024
    %v2071 = vpack.c.b16 %v2027, %v2026
    %v2072 = vpack.c.b16 %v2029, %v2028
    %v2073 = vpack.c.b16 %v2031, %v2030
    %v2074 = vpack.c.b16 %v2033, %v2032
    %v2075 = vpack.c.b16 %v2035, %v2034
    %v2076 = vpack.c.b16 %v2037, %v2036
    %v2077 = vpack.c.b16 %v2039, %v2038
    %v2078 = vpack.c.b16 %v2041, %v2040
    %v2079 = vpack.c.b16 %v2043, %v2042
    %v2080 = vpack.c.b16 %v2045, %v2044
    %v2081 = vpack.c.b16 %v2047, %v2046
    %v2082 = vpack.c.b16 %v2049, %v2048
    %v2083 = vpack.c.b16 %v2051, %v2050
    %2116 = vmatpush.bf16.msra.mxu0 %v2059
    %2117 = vmatpush.bf16.msra.mxu0 %v2058
    %2118 = vmatpush.bf16.msra.mxu0 %v2057
    %2119 = vmatpush.bf16.msra.mxu0 %v2056
    %2120 = vmatpush.bf16.msra.mxu0 %v2055
    %2121 = vmatpush.bf16.msra.mxu0 %v2054
    %2122 = vmatpush.bf16.msra.mxu0 %v2053
    %2123 = vmatpush.bf16.msra.mxu0 %v2052
    %2124 = vmatmul.bf16.gmra.mxu0 %v1792
    %v2125 = vpop.f32.mrf.mxu0
    %v2126 = vadd.f32 %v1922, %v2125
    %v2127 = vpop.f32.mrf.mxu0
    %v2128 = vadd.f32 %v1922, %v2127
    %2129 = vmatmul.bf16.gmra.mxu0 %v1796
    %v2130 = vpop.f32.mrf.mxu0
    %v2131 = vadd.f32 %v1922, %v2130
    %v2132 = vpop.f32.mrf.mxu0
    %v2133 = vadd.f32 %v1922, %v2132
    %2134 = vmatmul.bf16.gmra.mxu0 %v1800
    %v2135 = vpop.f32.mrf.mxu0
    %v2136 = vadd.f32 %v1922, %v2135
    %v2137 = vpop.f32.mrf.mxu0
    %v2138 = vadd.f32 %v1922, %v2137
    %2139 = vmatmul.bf16.gmra.mxu0 %v1804
    %v2140 = vpop.f32.mrf.mxu0
    %v2141 = vadd.f32 %v1922, %v2140
    %v2142 = vpop.f32.mrf.mxu0
    %v2143 = vadd.f32 %v1922, %v2142
    %2144 = vmatmul.bf16.gmra.mxu0 %v1808
    %v2145 = vpop.f32.mrf.mxu0
    %v2146 = vadd.f32 %v1922, %v2145
    %v2147 = vpop.f32.mrf.mxu0
    %v2148 = vadd.f32 %v1922, %v2147
    %2149 = vmatmul.bf16.gmra.mxu0 %v1812
    %v2150 = vpop.f32.mrf.mxu0
    %v2151 = vadd.f32 %v1922, %v2150
    %v2152 = vpop.f32.mrf.mxu0
    %v2153 = vadd.f32 %v1922, %v2152
    %2154 = vmatmul.bf16.gmra.mxu0 %v1816
    %v2155 = vpop.f32.mrf.mxu0
    %v2156 = vadd.f32 %v1922, %v2155
    %v2157 = vpop.f32.mrf.mxu0
    %v2158 = vadd.f32 %v1922, %v2157
    %2159 = vmatmul.bf16.gmra.mxu0 %v1820
    %v2160 = vpop.f32.mrf.mxu0
    %v2161 = vadd.f32 %v1922, %v2160
    %v2162 = vpop.f32.mrf.mxu0
    %v2163 = vadd.f32 %v1922, %v2162
    %2164 = vmatmul.bf16.gmra.mxu0 %v1824
    %v2165 = vpop.f32.mrf.mxu0
    %v2166 = vadd.f32 %v1922, %v2165
    %v2167 = vpop.f32.mrf.mxu0
    %v2168 = vadd.f32 %v1922, %v2167
    %2169 = vmatmul.bf16.gmra.mxu0 %v1828
    %v2170 = vpop.f32.mrf.mxu0
    %v2171 = vadd.f32 %v1922, %v2170
    %v2172 = vpop.f32.mrf.mxu0
    %v2173 = vadd.f32 %v1922, %v2172
    %2174 = vmatmul.bf16.gmra.mxu0 %v1832
    %v2175 = vpop.f32.mrf.mxu0
    %v2176 = vadd.f32 %v1922, %v2175
    %v2177 = vpop.f32.mrf.mxu0
    %v2178 = vadd.f32 %v1922, %v2177
    %2179 = vmatmul.bf16.gmra.mxu0 %v1836
    %v2180 = vpop.f32.mrf.mxu0
    %v2181 = vadd.f32 %v1922, %v2180
    %v2182 = vpop.f32.mrf.mxu0
    %v2183 = vadd.f32 %v1922, %v2182
    %2184 = vmatmul.bf16.gmra.mxu0 %v1840
    %v2185 = vpop.f32.mrf.mxu0
    %v2186 = vadd.f32 %v1922, %v2185
    %v2187 = vpop.f32.mrf.mxu0
    %v2188 = vadd.f32 %v1922, %v2187
    %2189 = vmatmul.bf16.gmra.mxu0 %v1844
    %v2190 = vpop.f32.mrf.mxu0
    %v2191 = vadd.f32 %v1922, %v2190
    %v2192 = vpop.f32.mrf.mxu0
    %v2193 = vadd.f32 %v1922, %v2192
    %2194 = vmatmul.bf16.gmra.mxu0 %v1848
    %v2195 = vpop.f32.mrf.mxu0
    %v2196 = vadd.f32 %v1922, %v2195
    %v2197 = vpop.f32.mrf.mxu0
    %v2198 = vadd.f32 %v1922, %v2197
    %2199 = vmatmul.bf16.gmra.mxu0 %v1852
    %v2200 = vpop.f32.mrf.mxu0
    %v2201 = vadd.f32 %v1922, %v2200
    %v2202 = vpop.f32.mrf.mxu0
    %v2203 = vadd.f32 %v1922, %v2202
    %2204 = vdwg.mxu0
    %2205 = vmatpush.bf16.msra.mxu0 %v2067
    %2206 = vmatpush.bf16.msra.mxu0 %v2066
    %2207 = vmatpush.bf16.msra.mxu0 %v2065
    %2208 = vmatpush.bf16.msra.mxu0 %v2064
    %2209 = vmatpush.bf16.msra.mxu0 %v2063
    %2210 = vmatpush.bf16.msra.mxu0 %v2062
    %2211 = vmatpush.bf16.msra.mxu0 %v2061
    %2212 = vmatpush.bf16.msra.mxu0 %v2060
    %2213 = vmatmul.bf16.gmra.mxu0 %v1793
    %v2214 = vpop.f32.mrf.mxu0
    %v2215 = vadd.f32 %v2126, %v2214
    %v2216 = vpop.f32.mrf.mxu0
    %v2217 = vadd.f32 %v2128, %v2216
    %2218 = vmatmul.bf16.gmra.mxu0 %v1797
    %v2219 = vpop.f32.mrf.mxu0
    %v2220 = vadd.f32 %v2131, %v2219
    %v2221 = vpop.f32.mrf.mxu0
    %v2222 = vadd.f32 %v2133, %v2221
    %2223 = vmatmul.bf16.gmra.mxu0 %v1801
    %v2224 = vpop.f32.mrf.mxu0
    %v2225 = vadd.f32 %v2136, %v2224
    %v2226 = vpop.f32.mrf.mxu0
    %v2227 = vadd.f32 %v2138, %v2226
    %2228 = vmatmul.bf16.gmra.mxu0 %v1805
    %v2229 = vpop.f32.mrf.mxu0
    %v2230 = vadd.f32 %v2141, %v2229
    %v2231 = vpop.f32.mrf.mxu0
    %v2232 = vadd.f32 %v2143, %v2231
    %2233 = vmatmul.bf16.gmra.mxu0 %v1809
    %v2234 = vpop.f32.mrf.mxu0
    %v2235 = vadd.f32 %v2146, %v2234
    %v2236 = vpop.f32.mrf.mxu0
    %v2237 = vadd.f32 %v2148, %v2236
    %2238 = vmatmul.bf16.gmra.mxu0 %v1813
    %v2239 = vpop.f32.mrf.mxu0
    %v2240 = vadd.f32 %v2151, %v2239
    %v2241 = vpop.f32.mrf.mxu0
    %v2242 = vadd.f32 %v2153, %v2241
    %2243 = vmatmul.bf16.gmra.mxu0 %v1817
    %v2244 = vpop.f32.mrf.mxu0
    %v2245 = vadd.f32 %v2156, %v2244
    %v2246 = vpop.f32.mrf.mxu0
    %v2247 = vadd.f32 %v2158, %v2246
    %2248 = vmatmul.bf16.gmra.mxu0 %v1821
    %v2249 = vpop.f32.mrf.mxu0
    %v2250 = vadd.f32 %v2161, %v2249
    %v2251 = vpop.f32.mrf.mxu0
    %v2252 = vadd.f32 %v2163, %v2251
    %2253 = vmatmul.bf16.gmra.mxu0 %v1825
    %v2254 = vpop.f32.mrf.mxu0
    %v2255 = vadd.f32 %v2166, %v2254
    %v2256 = vpop.f32.mrf.mxu0
    %v2257 = vadd.f32 %v2168, %v2256
    %2258 = vmatmul.bf16.gmra.mxu0 %v1829
    %v2259 = vpop.f32.mrf.mxu0
    %v2260 = vadd.f32 %v2171, %v2259
    %v2261 = vpop.f32.mrf.mxu0
    %v2262 = vadd.f32 %v2173, %v2261
    %2263 = vmatmul.bf16.gmra.mxu0 %v1833
    %v2264 = vpop.f32.mrf.mxu0
    %v2265 = vadd.f32 %v2176, %v2264
    %v2266 = vpop.f32.mrf.mxu0
    %v2267 = vadd.f32 %v2178, %v2266
    %2268 = vmatmul.bf16.gmra.mxu0 %v1837
    %v2269 = vpop.f32.mrf.mxu0
    %v2270 = vadd.f32 %v2181, %v2269
    %v2271 = vpop.f32.mrf.mxu0
    %v2272 = vadd.f32 %v2183, %v2271
    %2273 = vmatmul.bf16.gmra.mxu0 %v1841
    %v2274 = vpop.f32.mrf.mxu0
    %v2275 = vadd.f32 %v2186, %v2274
    %v2276 = vpop.f32.mrf.mxu0
    %v2277 = vadd.f32 %v2188, %v2276
    %2278 = vmatmul.bf16.gmra.mxu0 %v1845
    %v2279 = vpop.f32.mrf.mxu0
    %v2280 = vadd.f32 %v2191, %v2279
    %v2281 = vpop.f32.mrf.mxu0
    %v2282 = vadd.f32 %v2193, %v2281
    %2283 = vmatmul.bf16.gmra.mxu0 %v1849
    %v2284 = vpop.f32.mrf.mxu0
    %v2285 = vadd.f32 %v2196, %v2284
    %v2286 = vpop.f32.mrf.mxu0
    %v2287 = vadd.f32 %v2198, %v2286
    %2288 = vmatmul.bf16.gmra.mxu0 %v1853
    %v2289 = vpop.f32.mrf.mxu0
    %v2290 = vadd.f32 %v2201, %v2289
    %v2291 = vpop.f32.mrf.mxu0
    %v2292 = vadd.f32 %v2203, %v2291
    %2293 = vdwg.mxu0
    %2294 = vmatpush.bf16.msra.mxu0 %v2075
    %2295 = vmatpush.bf16.msra.mxu0 %v2074
    %2296 = vmatpush.bf16.msra.mxu0 %v2073
    %2297 = vmatpush.bf16.msra.mxu0 %v2072
    %2298 = vmatpush.bf16.msra.mxu0 %v2071
    %2299 = vmatpush.bf16.msra.mxu0 %v2070
    %2300 = vmatpush.bf16.msra.mxu0 %v2069
    %2301 = vmatpush.bf16.msra.mxu0 %v2068
    %2302 = vmatmul.bf16.gmra.mxu0 %v1794
    %v2303 = vpop.f32.mrf.mxu0
    %v2304 = vadd.f32 %v2215, %v2303
    %v2305 = vpop.f32.mrf.mxu0
    %v2306 = vadd.f32 %v2217, %v2305
    %2307 = vmatmul.bf16.gmra.mxu0 %v1798
    %v2308 = vpop.f32.mrf.mxu0
    %v2309 = vadd.f32 %v2220, %v2308
    %v2310 = vpop.f32.mrf.mxu0
    %v2311 = vadd.f32 %v2222, %v2310
    %2312 = vmatmul.bf16.gmra.mxu0 %v1802
    %v2313 = vpop.f32.mrf.mxu0
    %v2314 = vadd.f32 %v2225, %v2313
    %v2315 = vpop.f32.mrf.mxu0
    %v2316 = vadd.f32 %v2227, %v2315
    %2317 = vmatmul.bf16.gmra.mxu0 %v1806
    %v2318 = vpop.f32.mrf.mxu0
    %v2319 = vadd.f32 %v2230, %v2318
    %v2320 = vpop.f32.mrf.mxu0
    %v2321 = vadd.f32 %v2232, %v2320
    %2322 = vmatmul.bf16.gmra.mxu0 %v1810
    %v2323 = vpop.f32.mrf.mxu0
    %v2324 = vadd.f32 %v2235, %v2323
    %v2325 = vpop.f32.mrf.mxu0
    %v2326 = vadd.f32 %v2237, %v2325
    %2327 = vmatmul.bf16.gmra.mxu0 %v1814
    %v2328 = vpop.f32.mrf.mxu0
    %v2329 = vadd.f32 %v2240, %v2328
    %v2330 = vpop.f32.mrf.mxu0
    %v2331 = vadd.f32 %v2242, %v2330
    %2332 = vmatmul.bf16.gmra.mxu0 %v1818
    %v2333 = vpop.f32.mrf.mxu0
    %v2334 = vadd.f32 %v2245, %v2333
    %v2335 = vpop.f32.mrf.mxu0
    %v2336 = vadd.f32 %v2247, %v2335
    %2337 = vmatmul.bf16.gmra.mxu0 %v1822
    %v2338 = vpop.f32.mrf.mxu0
    %v2339 = vadd.f32 %v2250, %v2338
    %v2340 = vpop.f32.mrf.mxu0
    %v2341 = vadd.f32 %v2252, %v2340
    %2342 = vmatmul.bf16.gmra.mxu0 %v1826
    %v2343 = vpop.f32.mrf.mxu0
    %v2344 = vadd.f32 %v2255, %v2343
    %v2345 = vpop.f32.mrf.mxu0
    %v2346 = vadd.f32 %v2257, %v2345
    %2347 = vmatmul.bf16.gmra.mxu0 %v1830
    %v2348 = vpop.f32.mrf.mxu0
    %v2349 = vadd.f32 %v2260, %v2348
    %v2350 = vpop.f32.mrf.mxu0
    %v2351 = vadd.f32 %v2262, %v2350
    %2352 = vmatmul.bf16.gmra.mxu0 %v1834
    %v2353 = vpop.f32.mrf.mxu0
    %v2354 = vadd.f32 %v2265, %v2353
    %v2355 = vpop.f32.mrf.mxu0
    %v2356 = vadd.f32 %v2267, %v2355
    %2357 = vmatmul.bf16.gmra.mxu0 %v1838
    %v2358 = vpop.f32.mrf.mxu0
    %v2359 = vadd.f32 %v2270, %v2358
    %v2360 = vpop.f32.mrf.mxu0
    %v2361 = vadd.f32 %v2272, %v2360
    %2362 = vmatmul.bf16.gmra.mxu0 %v1842
    %v2363 = vpop.f32.mrf.mxu0
    %v2364 = vadd.f32 %v2275, %v2363
    %v2365 = vpop.f32.mrf.mxu0
    %v2366 = vadd.f32 %v2277, %v2365
    %2367 = vmatmul.bf16.gmra.mxu0 %v1846
    %v2368 = vpop.f32.mrf.mxu0
    %v2369 = vadd.f32 %v2280, %v2368
    %v2370 = vpop.f32.mrf.mxu0
    %v2371 = vadd.f32 %v2282, %v2370
    %2372 = vmatmul.bf16.gmra.mxu0 %v1850
    %v2373 = vpop.f32.mrf.mxu0
    %v2374 = vadd.f32 %v2285, %v2373
    %v2375 = vpop.f32.mrf.mxu0
    %v2376 = vadd.f32 %v2287, %v2375
    %2377 = vmatmul.bf16.gmra.mxu0 %v1854
    %v2378 = vpop.f32.mrf.mxu0
    %v2379 = vadd.f32 %v2290, %v2378
    %v2380 = vpop.f32.mrf.mxu0
    %v2381 = vadd.f32 %v2292, %v2380
    %2382 = vdwg.mxu0
    %2383 = vmatpush.bf16.msra.mxu0 %v2083
    %2384 = vmatpush.bf16.msra.mxu0 %v2082
    %2385 = vmatpush.bf16.msra.mxu0 %v2081
    %2386 = vmatpush.bf16.msra.mxu0 %v2080
    %2387 = vmatpush.bf16.msra.mxu0 %v2079
    %2388 = vmatpush.bf16.msra.mxu0 %v2078
    %2389 = vmatpush.bf16.msra.mxu0 %v2077
    %2390 = vmatpush.bf16.msra.mxu0 %v2076
    %2391 = vmatmul.bf16.gmra.mxu0 %v1795
    %v2392 = vpop.f32.mrf.mxu0
    %v2393 = vadd.f32 %v2304, %v2392
    %v2394 = vpop.f32.mrf.mxu0
    %v2395 = vadd.f32 %v2306, %v2394
    %2396 = vmatmul.bf16.gmra.mxu0 %v1799
    %v2397 = vpop.f32.mrf.mxu0
    %v2398 = vadd.f32 %v2309, %v2397
    %v2399 = vpop.f32.mrf.mxu0
    %v2400 = vadd.f32 %v2311, %v2399
    %2401 = vmatmul.bf16.gmra.mxu0 %v1803
    %v2402 = vpop.f32.mrf.mxu0
    %v2403 = vadd.f32 %v2314, %v2402
    %v2404 = vpop.f32.mrf.mxu0
    %v2405 = vadd.f32 %v2316, %v2404
    %2406 = vmatmul.bf16.gmra.mxu0 %v1807
    %v2407 = vpop.f32.mrf.mxu0
    %v2408 = vadd.f32 %v2319, %v2407
    %v2409 = vpop.f32.mrf.mxu0
    %v2410 = vadd.f32 %v2321, %v2409
    %2411 = vmatmul.bf16.gmra.mxu0 %v1811
    %v2412 = vpop.f32.mrf.mxu0
    %v2413 = vadd.f32 %v2324, %v2412
    %v2414 = vpop.f32.mrf.mxu0
    %v2415 = vadd.f32 %v2326, %v2414
    %2416 = vmatmul.bf16.gmra.mxu0 %v1815
    %v2417 = vpop.f32.mrf.mxu0
    %v2418 = vadd.f32 %v2329, %v2417
    %v2419 = vpop.f32.mrf.mxu0
    %v2420 = vadd.f32 %v2331, %v2419
    %2421 = vmatmul.bf16.gmra.mxu0 %v1819
    %v2422 = vpop.f32.mrf.mxu0
    %v2423 = vadd.f32 %v2334, %v2422
    %v2424 = vpop.f32.mrf.mxu0
    %v2425 = vadd.f32 %v2336, %v2424
    %2426 = vmatmul.bf16.gmra.mxu0 %v1823
    %v2427 = vpop.f32.mrf.mxu0
    %v2428 = vadd.f32 %v2339, %v2427
    %v2429 = vpop.f32.mrf.mxu0
    %v2430 = vadd.f32 %v2341, %v2429
    %2431 = vmatmul.bf16.gmra.mxu0 %v1827
    %v2432 = vpop.f32.mrf.mxu0
    %v2433 = vadd.f32 %v2344, %v2432
    %v2434 = vpop.f32.mrf.mxu0
    %v2435 = vadd.f32 %v2346, %v2434
    %2436 = vmatmul.bf16.gmra.mxu0 %v1831
    %v2437 = vpop.f32.mrf.mxu0
    %v2438 = vadd.f32 %v2349, %v2437
    %v2439 = vpop.f32.mrf.mxu0
    %v2440 = vadd.f32 %v2351, %v2439
    %2441 = vmatmul.bf16.gmra.mxu0 %v1835
    %v2442 = vpop.f32.mrf.mxu0
    %v2443 = vadd.f32 %v2354, %v2442
    %v2444 = vpop.f32.mrf.mxu0
    %v2445 = vadd.f32 %v2356, %v2444
    %2446 = vmatmul.bf16.gmra.mxu0 %v1839
    %v2447 = vpop.f32.mrf.mxu0
    %v2448 = vadd.f32 %v2359, %v2447
    %v2449 = vpop.f32.mrf.mxu0
    %v2450 = vadd.f32 %v2361, %v2449
    %2451 = vmatmul.bf16.gmra.mxu0 %v1843
    %v2452 = vpop.f32.mrf.mxu0
    %v2453 = vadd.f32 %v2364, %v2452
    %v2454 = vpop.f32.mrf.mxu0
    %v2455 = vadd.f32 %v2366, %v2454
    %2456 = vmatmul.bf16.gmra.mxu0 %v1847
    %v2457 = vpop.f32.mrf.mxu0
    %v2458 = vadd.f32 %v2369, %v2457
    %v2459 = vpop.f32.mrf.mxu0
    %v2460 = vadd.f32 %v2371, %v2459
    %2461 = vmatmul.bf16.gmra.mxu0 %v1851
    %v2462 = vpop.f32.mrf.mxu0
    %v2463 = vadd.f32 %v2374, %v2462
    %v2464 = vpop.f32.mrf.mxu0
    %v2465 = vadd.f32 %v2376, %v2464
    %2466 = vmatmul.bf16.gmra.mxu0 %v1855
    %v2467 = vpop.f32.mrf.mxu0
    %v2468 = vadd.f32 %v2379, %v2467
    %v2469 = vpop.f32.mrf.mxu0
    %v2470 = vadd.f32 %v2381, %v2469
    %2471 = vdwg.mxu0
    %v2472 = vpack.c.bf16 %v2393, %v2393
    %v2473 = vpack.c.bf16 %v2395, %v2395
    %v2474 = vpack.c.bf16 %v2398, %v2398
    %v2475 = vpack.c.bf16 %v2400, %v2400
    %v2476 = vpack.c.bf16 %v2403, %v2403
    %v2477 = vpack.c.bf16 %v2405, %v2405
    %v2478 = vpack.c.bf16 %v2408, %v2408
    %v2479 = vpack.c.bf16 %v2410, %v2410
    %v2480 = vpack.c.bf16 %v2413, %v2413
    %v2481 = vpack.c.bf16 %v2415, %v2415
    %v2482 = vpack.c.bf16 %v2418, %v2418
    %v2483 = vpack.c.bf16 %v2420, %v2420
    %v2484 = vpack.c.bf16 %v2423, %v2423
    %v2485 = vpack.c.bf16 %v2425, %v2425
    %v2486 = vpack.c.bf16 %v2428, %v2428
    %v2487 = vpack.c.bf16 %v2430, %v2430
    %v2488 = vpack.c.bf16 %v2433, %v2433
    %v2489 = vpack.c.bf16 %v2435, %v2435
    %v2490 = vpack.c.bf16 %v2438, %v2438
    %v2491 = vpack.c.bf16 %v2440, %v2440
    %v2492 = vpack.c.bf16 %v2443, %v2443
    %v2493 = vpack.c.bf16 %v2445, %v2445
    %v2494 = vpack.c.bf16 %v2448, %v2448
    %v2495 = vpack.c.bf16 %v2450, %v2450
    %v2496 = vpack.c.bf16 %v2453, %v2453
    %v2497 = vpack.c.bf16 %v2455, %v2455
    %v2498 = vpack.c.bf16 %v2458, %v2458
    %v2499 = vpack.c.bf16 %v2460, %v2460
    %v2500 = vpack.c.bf16 %v2463, %v2463
    %v2501 = vpack.c.bf16 %v2465, %v2465
    %v2502 = vpack.c.bf16 %v2468, %v2468
    %v2503 = vpack.c.bf16 %v2470, %v2470
    %2504 = vst [vmem:[#allocation10] sm:$0xf] %v2472
    %2505 = vst [vmem:[#allocation10 + $0x4] sm:$0xf] %v2473
    %2506 = vst [vmem:[#allocation10 + $0x8] sm:$0xf] %v2474
    %2507 = vst [vmem:[#allocation10 + $0xc] sm:$0xf] %v2475
    %2508 = vst [vmem:[#allocation10 + $0x10] sm:$0xf] %v2476
    %2509 = vst [vmem:[#allocation10 + $0x14] sm:$0xf] %v2477
    %2510 = vst [vmem:[#allocation10 + $0x18] sm:$0xf] %v2478
    %2511 = vst [vmem:[#allocation10 + $0x1c] sm:$0xf] %v2479
    %2512 = vst [vmem:[#allocation10 + $0x20] sm:$0xf] %v2480
    %2513 = vst [vmem:[#allocation10 + $0x24] sm:$0xf] %v2481
    %2514 = vst [vmem:[#allocation10 + $0x28] sm:$0xf] %v2482
    %2515 = vst [vmem:[#allocation10 + $0x2c] sm:$0xf] %v2483
    %2516 = vst [vmem:[#allocation10 + $0x30] sm:$0xf] %v2484
    %2517 = vst [vmem:[#allocation10 + $0x34] sm:$0xf] %v2485
    %2518 = vst [vmem:[#allocation10 + $0x38] sm:$0xf] %v2486
    %2519 = vst [vmem:[#allocation10 + $0x3c] sm:$0xf] %v2487
    %2520 = vst [vmem:[#allocation10 + $0x40] sm:$0xf] %v2488
    %2521 = vst [vmem:[#allocation10 + $0x44] sm:$0xf] %v2489
    %2522 = vst [vmem:[#allocation10 + $0x48] sm:$0xf] %v2490
    %2523 = vst [vmem:[#allocation10 + $0x4c] sm:$0xf] %v2491
    %2524 = vst [vmem:[#allocation10 + $0x50] sm:$0xf] %v2492
    %2525 = vst [vmem:[#allocation10 + $0x54] sm:$0xf] %v2493
    %2526 = vst [vmem:[#allocation10 + $0x58] sm:$0xf] %v2494
    %2527 = vst [vmem:[#allocation10 + $0x5c] sm:$0xf] %v2495
    %2528 = vst [vmem:[#allocation10 + $0x60] sm:$0xf] %v2496
    %2529 = vst [vmem:[#allocation10 + $0x64] sm:$0xf] %v2497
    %2530 = vst [vmem:[#allocation10 + $0x68] sm:$0xf] %v2498
    %2531 = vst [vmem:[#allocation10 + $0x6c] sm:$0xf] %v2499
    %2532 = vst [vmem:[#allocation10 + $0x70] sm:$0xf] %v2500
    %2533 = vst [vmem:[#allocation10 + $0x74] sm:$0xf] %v2501
    %2534 = vst [vmem:[#allocation10 + $0x78] sm:$0xf] %v2502
    %2535 = vst [vmem:[#allocation10 + $0x7c] sm:$0xf] %v2503
    // Predicated region
    $region38: #{tpu_custom_call.1} parent=1 // pred_check
      _
    $region39: #{tpu_custom_call.1} parent=1 // pred_check_branch
      %2537 = sbr.rel (0) target = $region41
    $region40: #{tpu_custom_call.1} parent=1 // pred_region
      %2539 = vsyncadd [#allocation4], 0
      %s2540 = sshll.u32 [#allocation10], 4
      %s2541 = int_to_ptr.vmem [resolvable:$true] %s2540
      %s2542 = sshll.u32 %s5, 4
      %s2543 = int_to_ptr.hbm [resolvable:$true] %s2542
      %2548 = dma.vmem_to_hbm [thread:$0]  %s2541, 2048, %s2543, [#allocation4], 64, 64, 4
    $region41: #{tpu_custom_call.1} parent=1 // pred_fallthru
      _
    // Predicated region
    $region42: #{tpu_custom_call.1} parent=1 // pred_check
      _
    $region43: #{tpu_custom_call.1} parent=1 // pred_check_branch
      %2550 = sbr.rel (0) target = $region45
    $region44: #{tpu_custom_call.1} parent=1 // pred_region
      %2552 = dma.done [#allocation4], 2048
    $region45: #{tpu_custom_call.1} parent=1 // pred_fallthru
      _
    %2553 = vsyncpa [#allocation3], 1
    %2554 = vsyncpa [#allocation6], 1
    %2555 = vsyncpa [#allocation9], 1
    %2556 = vsyncpa [#allocation4], 1

</llo_original>
